<compile_context>
chip_gen: v5e
topology: v5e:2x2
jax: 0.10.0
libtpu: 0.0.40
codegen_flags: <defaults>
</compile_context>

<pallas_src>
import functools
import math

import jax
import jax.numpy as jnp
from jax import lax
from jax.experimental import pallas as pl
from jax.experimental.pallas import tpu as pltpu


# ---- module hyper-parameters (the `params` object of NetResidUpsample.__init__) ----
CFG = dict(
    conv1_kernel_size1=3,
    conv1_extra_padding=0,
    conv2_kernel_size1=3,
    conv3_outchannels=8,         # conv3 emits 8 - 3 = 5 channels, cat(X) -> 8
    deconv1_inchannel_size=8,
    deconv1_outchannel_size=16,  # deconv1 emits 13, cat(X_128) -> 16
    deconv2_inchannel_size=16,
    deconv2_outchannel_size=16,
    deconv3_inchannel_size=16,
    deconv3_outchannel_size=8,
    deconv3_kernel_size=3,
)

IN_EPS = 1e-5  # torch.nn.InstanceNorm2d default eps


# ============================ tiling heuristics ============================

def _pick_tile_h(Ho, Wo, Cout):
    """Largest row-tile from {32,16,8} dividing Ho whose Cout accumulators fit in ~32 vregs."""
    lane_tiles = -(-Wo // 128)
    for th in (32, 16, 8):
        if Ho % th == 0 and Cout * (th // 8) * lane_tiles <= 32:
            return th
    return 8 if Ho % 8 == 0 else Ho


def _pick_ci_unroll(Cin, Cout, taps, budget=2600):
    """Cin-loop unroll factor keeping the traced tile body around `budget` ops."""
    per_ci = taps * (3 * Cout + 2)
    best = 1
    for d in range(1, Cin + 1):
        if Cin % d == 0 and d * per_ci <= budget:
            best = d
    return best


# ============================ Pallas kernels ============================

def _conv_in_fused_kernel(*refs, KH, KW, Cin, Cout, Ho, Wo, TH, ci_unroll, mode):
    """Fused direct conv (stride 1, pre-padded input) + InstanceNorm(+ReLU | +residual) or +bias.

    Per image (one grid step), W sits on the 128-lane axis:
      x_ref   : (Cin, Hp, Wp)           VMEM
      res_ref : (Cout, Ho, Wo)          VMEM   (only mode == "in_add")
      w_ref   : (Cout*Cin*KH*KW,)       SMEM   OIHW-flattened weights, scalar reads
      b_ref   : (Cout,)                 SMEM   (only mode == "plain"; IN cancels the bias)
      g_ref   : (Cout,)                 SMEM   (modes with InstanceNorm)
      be_ref  : (Cout,)                 SMEM
      o_ref   : (Cout, Ho, Wo)          VMEM

    Pass 1 (per H row-tile): (ci, kh, kw) outer loops, ONE x-slab load per tap reused across all
    Cout vreg accumulators; raw conv result stored to o_ref, per-channel sum/sum^2 carried as
    scalars through the tile fori.  Pass 2: per-channel scale/shift (+ReLU / +residual) in place.
    """
    it = iter(refs)
    x_ref = next(it)
    res_ref = next(it) if mode == "in_add" else None
    w_ref = next(it)
    if mode == "plain":
        b_ref = next(it)
        g_ref = be_ref = None
    else:
        b_ref = None
        g_ref = next(it)
        be_ref = next(it)
    o_ref = next(it)

    taps = KH * KW
    ctaps = Cin * taps
    n_tiles = Ho // TH
    inv_cnt = 1.0 / float(Ho * Wo)

    def tile_body(t, carry):
        h0 = t * TH
        if n_tiles > 1 and TH % 8 == 0:
            h0 = pl.multiple_of(h0, 8)                      # aligned row-tile start

        accs0 = tuple(jnp.zeros((TH, Wo), jnp.float32) for _ in range(Cout))

        def ci_body(ci, accs):
            new = list(accs)
            base = ci * taps
            for kh in range(KH):
                rows = pl.ds(h0 + kh, TH)
                for kw in range(KW):
                    # loaded ONCE per tap, reused across every output channel
                    slab = x_ref[ci, rows, pl.ds(kw, Wo)]
                    tap = base + kh * KW + kw
                    for co in range(Cout):
                        new[co] = new[co] + w_ref[co * ctaps + tap] * slab
            return tuple(new)

        accs = lax.fori_loop(0, Cin, ci_body, accs0, unroll=ci_unroll)

        if mode == "plain":
            for co in range(Cout):
                o_ref[co, pl.ds(h0, TH), :] = accs[co] + b_ref[co]
            return carry

        s_tup, ss_tup = carry
        new_s, new_ss = [], []
        for co in range(Cout):
            acc = accs[co]
            o_ref[co, pl.ds(h0, TH), :] = acc               # raw conv; normalized in pass 2
            new_s.append(s_tup[co] + jnp.sum(acc))
            new_ss.append(ss_tup[co] + jnp.sum(acc * acc))
        return (tuple(new_s), tuple(new_ss))

    if mode == "plain":
        init = jnp.int32(0)
    else:
        zero = jnp.zeros((), jnp.float32)
        init = (tuple(zero for _ in range(Cout)), tuple(zero for _ in range(Cout)))

    if n_tiles == 1:
        totals = tile_body(0, init)                          # full static visibility, no loop
    else:
        totals = lax.fori_loop(0, n_tiles, tile_body, init)

    if mode == "plain":
        return

    # ---- pass 2: per-channel InstanceNorm (+ReLU / +residual), applied in place ----
    s_tup, ss_tup = totals
    for co in range(Cout):
        m = s_tup[co] * inv_cnt
        var = jnp.maximum(ss_tup[co] * inv_cnt - m * m, 0.0)   # biased var, torch IN semantics
        scale = g_ref[co] * lax.rsqrt(var + IN_EPS)
        shift = be_ref[co] - m * scale
        y = o_ref[co] * scale + shift
        if mode == "in_relu":
            y = jnp.maximum(y, 0.0)
        else:                                                   # "in_add"
            y = y + res_ref[co]
        o_ref[co] = y


def _matmul_in_relu_kernel(x_ref, w_ref, b_ref, g_ref, be_ref, o_ref):
    """Fused im2col-matmul conv + bias + InstanceNorm + ReLU (MXU path for the stem).

    x_ref: (P, K)  im2col patches (P = Ho*Wo spatial positions)
    w_ref: (K, Cout), b/g/be: (1, Cout), o_ref: (P, Cout)
    """
    acc = jnp.dot(x_ref[...], w_ref[...], preferred_element_type=jnp.float32) + b_ref[...]
    inv = 1.0 / float(acc.shape[0])
    m = jnp.sum(acc, axis=0, keepdims=True) * inv                        # (1, Cout)
    var = jnp.maximum(jnp.sum(acc * acc, axis=0, keepdims=True) * inv - m * m, 0.0)
    y = (acc - m) * lax.rsqrt(var + IN_EPS) * g_ref[...] + be_ref[...]
    o_ref[...] = jnp.maximum(y, 0.0)


# ============================ wrappers ============================

def conv_in_fused(x, w, b, gamma=None, beta=None, *, mode="in_relu", residual=None,
                  extra_padding=0):
    """Reflection pad + stride-1 Conv2d fused with InstanceNorm / ReLU / residual add.

    mode: "in_relu" (conv -> IN -> ReLU), "in_add" (conv -> IN -> + residual),
          "plain" (conv + bias only, used by the output layer).
    """
    assert mode in ("plain", "in_relu", "in_add")
    x = x.astype(jnp.float32)
    Cout, Cin, KH, KW = w.shape
    pad = KH // 2 + extra_padding
    # TODO(synk): reflection pad still materialized by XLA (extra HBM copy + odd Wp); an
    #             in-kernel reflect (lane-aligned W + pltpu.roll kw shifts) is the follow-up.
    xp = jnp.pad(x, ((0, 0), (0, 0), (pad, pad), (pad, pad)), mode="reflect")
    N, _, Hp, Wp = xp.shape
    Ho, Wo = Hp - KH + 1, Wp - KW + 1
    TH = _pick_tile_h(Ho, Wo, Cout)
    ci_unroll = _pick_ci_unroll(Cin, Cout, KH * KW)

    smem = pl.BlockSpec(memory_space=pltpu.MemorySpace.SMEM)
    in_specs = [pl.BlockSpec((pl.Squeezed(), Cin, Hp, Wp), lambda n: (n, 0, 0, 0))]
    args = [xp]
    if mode == "in_add":
        assert residual is not None
        in_specs.append(pl.BlockSpec((pl.Squeezed(), Cout, Ho, Wo), lambda n: (n, 0, 0, 0)))
        args.append(residual.astype(jnp.float32))
    in_specs.append(smem)
    args.append(w.reshape(-1).astype(jnp.float32))
    if mode == "plain":
        in_specs.append(smem)
        args.append(b.reshape(-1).astype(jnp.float32))
    else:
        # bias is mathematically cancelled by the following InstanceNorm -> not passed at all
        in_specs += [smem, smem]
        args += [gamma.reshape(-1).astype(jnp.float32), beta.reshape(-1).astype(jnp.float32)]

    kern = functools.partial(_conv_in_fused_kernel, KH=KH, KW=KW, Cin=Cin, Cout=Cout,
                             Ho=Ho, Wo=Wo, TH=TH, ci_unroll=ci_unroll, mode=mode)
    return pl.pallas_call(
        kern,
        out_shape=jax.ShapeDtypeStruct((N, Cout, Ho, Wo), jnp.float32),
        grid=(N,),
        in_specs=in_specs,
        out_specs=pl.BlockSpec((pl.Squeezed(), Cout, Ho, Wo), lambda n: (n, 0, 0, 0)),
        compiler_params=pltpu.CompilerParams(dimension_semantics=("parallel",)),
    )(*args)


def conv_strided_matmul_in_relu(x, w, b, gamma, beta, *, stride=2, extra_padding=0):
    """Stem path: reflection pad -> (space-to-depth if strided) -> im2col -> fused
    MXU matmul + bias + InstanceNorm + ReLU.  Exactly equals the strided conv."""
    # TODO(synk): the three stem layers could be collapsed into one pallas_call (all
    #             intermediates are a few KB); kept as three launches + XLA glue for now.
    x = x.astype(jnp.float32)
    Cout, Cin, KH, KW = w.shape
    pad = KH // 2 + extra_padding
    xp = jnp.pad(x, ((0, 0), (0, 0), (pad, pad), (pad, pad)), mode="reflect")
    N, _, Hp, Wp = xp.shape
    s = stride
    Ho = (Hp - KH) // s + 1
    Wo = (Wp - KW) // s + 1

    if s > 1:
        # space-to-depth: stride-s conv == stride-1 conv over s*s*Cin phase channels
        KHe, KWe = -(-KH // s), -(-KW // s)
        Hn, Wn = s * (Ho + KHe - 1), s * (Wo + KWe - 1)
        if Hn > Hp or Wn > Wp:
            xp = jnp.pad(xp, ((0, 0), (0, 0), (0, max(0, Hn - Hp)), (0, max(0, Wn - Wp))))
        xp = xp[:, :, :Hn, :Wn]
        x2 = xp.reshape(N, Cin, Hn // s, s, Wn // s, s)
        x2 = x2.transpose(0, 3, 5, 1, 2, 4).reshape(N, s * s * Cin, Hn // s, Wn // s)
        wp = jnp.pad(w, ((0, 0), (0, 0), (0, KHe * s - KH), (0, KWe * s - KW)))
        w2 = wp.reshape(Cout, Cin, KHe, s, KWe, s).transpose(0, 3, 5, 1, 2, 4)
        w2 = w2.reshape(Cout, s * s * Cin, KHe, KWe)
        Cin2 = s * s * Cin
    else:
        x2, w2, Cin2, KHe, KWe = xp, w, Cin, KH, KW

    # im2col (tiny for the stem: P = Ho*Wo <= 64)
    cols = [x2[:, :, dh:dh + Ho, dw:dw + Wo] for dh in range(KHe) for dw in range(KWe)]
    xcol = jnp.stack(cols, axis=1)                                  # (N, T, Cin2, Ho, Wo)
    K = KHe * KWe * Cin2
    P = Ho * Wo
    xcol = xcol.transpose(0, 3, 4, 1, 2).reshape(N, P, K).astype(jnp.float32)
    wmat = w2.transpose(2, 3, 1, 0).reshape(K, Cout).astype(jnp.float32)

    out = pl.pallas_call(
        _matmul_in_relu_kernel,
        out_shape=jax.ShapeDtypeStruct((N, P, Cout), jnp.float32),
        grid=(N,),
        in_specs=[
            pl.BlockSpec((pl.Squeezed(), P, K), lambda n: (n, 0, 0)),
            pl.BlockSpec((K, Cout), lambda n: (0, 0)),
            pl.BlockSpec((1, Cout), lambda n: (0, 0)),
            pl.BlockSpec((1, Cout), lambda n: (0, 0)),
            pl.BlockSpec((1, Cout), lambda n: (0, 0)),
        ],
        out_specs=pl.BlockSpec((pl.Squeezed(), P, Cout), lambda n: (n, 0, 0)),
        compiler_params=pltpu.CompilerParams(dimension_semantics=("parallel",)),
    )(xcol, wmat,
      b.reshape(1, Cout).astype(jnp.float32),
      gamma.reshape(1, Cout).astype(jnp.float32),
      beta.reshape(1, Cout).astype(jnp.float32))
    return out.reshape(N, Ho, Wo, Cout).transpose(0, 3, 1, 2)


def upsample_nearest(x, scale):
    # TODO(synk): nearest-upsample + the following channel concats stay as XLA data movement;
    #             fusing the interleaved repeat into the consuming conv kernel needs an in-VMEM
    #             lane/sublane repeat.
    return jnp.repeat(jnp.repeat(x, scale, axis=2), scale, axis=3)


def residual_block(x, rp):
    t = conv_in_fused(x, *rp["conv1"], *rp["in1"], mode="in_relu")
    return conv_in_fused(t, *rp["conv2"], *rp["in2"], mode="in_add", residual=x)


def net_forward(params, X):
    p = params
    y = conv_strided_matmul_in_relu(X, *p["conv1"], *p["in1"], stride=2,
                                    extra_padding=CFG["conv1_extra_padding"])     # 32 @ 8x8
    y = conv_strided_matmul_in_relu(y, *p["conv2"], *p["in2"], stride=2)          # 64 @ 4x4
    y_8 = conv_strided_matmul_in_relu(y, *p["conv3"], *p["in3"], stride=2)        # 5  @ 2x2
    y_64 = upsample_nearest(y_8, 8)
    y_cat = jnp.concatenate([y_64, X], axis=1)                                    # 8  @ 16x16
    y_64 = residual_block(y_cat, p["res1"])
    y_128 = conv_in_fused(upsample_nearest(y_64, 2), *p["deconv1"], *p["in4"],
                          mode="in_relu")                                         # 13 @ 32x32
    X_128 = upsample_nearest(X, 2)
    y_cat128 = jnp.concatenate([y_128, X_128], axis=1)                            # 16 @ 32x32
    y = residual_block(y_cat128, p["res2"])
    y = conv_in_fused(upsample_nearest(y, 2), *p["deconv2"], *p["in5"],
                      mode="in_relu")                                             # 16 @ 64x64
    y = residual_block(y, p["res3"])
    y = conv_in_fused(upsample_nearest(y, 2), *p["deconv3"], *p["in6"],
                      mode="in_relu")                                             # 8 @ 128x128
    y = residual_block(y, p["res4"])
    out = conv_in_fused(y, *p["deconv_out"], mode="plain")                        # 3 @ 128x128
    return out, None


# ============================ parameter init ============================

def init_params(key):
    keys = iter(jax.random.split(key, 128))

    def conv_p(cin, cout, k):
        w = jax.random.normal(next(keys), (cout, cin, k, k), jnp.float32) / math.sqrt(cin * k * k)
        b = jax.random.normal(next(keys), (cout,), jnp.float32) * 0.05
        return (w, b)

    def in_p(c):
        g = 1.0 + 0.1 * jax.random.normal(next(keys), (c, 1), jnp.float32)
        be = 0.05 * jax.random.normal(next(keys), (c, 1), jnp.float32)
        return (g, be)

    def res_p(c, k=3):
        return dict(conv1=conv_p(c, c, k), in1=in_p(c), conv2=conv_p(c, c, k), in2=in_p(c))

    p = {}
    p["conv1"] = conv_p(3, 32, CFG["conv1_kernel_size1"]); p["in1"] = in_p(32)
    p["conv2"] = conv_p(32, 64, CFG["conv2_kernel_size1"]); p["in2"] = in_p(64)
    c3 = CFG["conv3_outchannels"] - 3
    p["conv3"] = conv_p(64, c3, 3); p["in3"] = in_p(c3)
    p["res1"] = res_p(CFG["conv3_outchannels"])
    d1o = CFG["deconv1_outchannel_size"] - 3
    p["deconv1"] = conv_p(CFG["deconv1_inchannel_size"], d1o, 3); p["in4"] = in_p(d1o)
    p["res2"] = res_p(CFG["deconv1_outchannel_size"])
    p["deconv2"] = conv_p(CFG["deconv2_inchannel_size"], CFG["deconv2_outchannel_size"], 3)
    p["in5"] = in_p(CFG["deconv2_outchannel_size"])
    p["res3"] = res_p(CFG["deconv2_outchannel_size"])
    p["deconv3"] = conv_p(CFG["deconv3_inchannel_size"], CFG["deconv3_outchannel_size"],
                          CFG["deconv3_kernel_size"])
    p["in6"] = in_p(CFG["deconv3_outchannel_size"])
    p["res4"] = res_p(CFG["deconv3_outchannel_size"])
    p["deconv_out"] = conv_p(CFG["deconv3_outchannel_size"], 3, 9)
    return p


# ============================ reference checks (plain JAX) ============================

def _conv2d_ref(x, w, b, stride, extra_padding):
    pad = w.shape[2] // 2 + extra_padding
    xp = jnp.pad(x, ((0, 0), (0, 0), (pad, pad), (pad, pad)), mode="reflect")
    y = lax.conv_general_dilated(xp, w, (stride, stride), "VALID",
                                 dimension_numbers=("NCHW", "OIHW", "NCHW"))
    return y + b[None, :, None, None]


def _inorm_ref(x, g, b, relu):
    m = x.mean(axis=(2, 3), keepdims=True)
    v = ((x - m) ** 2).mean(axis=(2, 3), keepdims=True)
    y = (x - m) / jnp.sqrt(v + IN_EPS) * g.reshape(1, -1, 1, 1) + b.reshape(1, -1, 1, 1)
    return jnp.maximum(y, 0.0) if relu else y


# ============================ main ============================

if __name__ == "__main__":
    key = jax.random.PRNGKey(0)
    pkey, xkey, ck1, ck2, ck3, ck4 = jax.random.split(key, 6)

    # ---- sanity checks of the two fused kernel families against plain-JAX references ----
    xt = jax.random.normal(ck1, (2, 5, 12, 12), jnp.float32)
    wt = jax.random.normal(ck2, (4, 5, 3, 3), jnp.float32) * 0.1
    bt = jax.random.normal(ck3, (4,), jnp.float32) * 0.1
    gt = 1.0 + 0.1 * jax.random.normal(ck4, (4, 1), jnp.float32)
    bet = 0.05 * jax.random.normal(ck1, (4, 1), jnp.float32)
    rt = jax.random.normal(ck2, (2, 4, 12, 12), jnp.float32)

    got = conv_in_fused(xt, wt, bt, gt, bet, mode="in_relu")
    ref = _inorm_ref(_conv2d_ref(xt, wt, bt, 1, 0), gt, bet, True)
    assert jnp.allclose(got, ref, atol=2e-3, rtol=2e-3), "fused conv+IN+ReLU kernel mismatch"

    got_a = conv_in_fused(xt, wt, bt, gt, bet, mode="in_add", residual=rt)
    ref_a = _inorm_ref(_conv2d_ref(xt, wt, bt, 1, 0), gt, bet, False) + rt
    assert jnp.allclose(got_a, ref_a, atol=2e-3, rtol=2e-3), "fused conv+IN+add kernel mismatch"

    got_p = conv_in_fused(xt, wt, bt, mode="plain")
    ref_p = _conv2d_ref(xt, wt, bt, 1, 0)
    assert jnp.allclose(got_p, ref_p, atol=2e-3, rtol=2e-3), "plain conv kernel mismatch"

    got_s = conv_strided_matmul_in_relu(xt, wt, bt, gt, bet, stride=2)
    ref_s = _inorm_ref(_conv2d_ref(xt, wt, bt, 2, 0), gt, bet, True)
    assert jnp.allclose(got_s, ref_s, atol=2e-3, rtol=2e-3), "strided matmul stem kernel mismatch"

    # ---- full forward pass ----
    params = init_params(pkey)
    X = jax.random.normal(xkey, (2, 3, 16, 16), jnp.float32)   # NCHW, like PyTorch
    fwd = jax.jit(net_forward)
    out, aux = fwd(params, X)
    out = jax.block_until_ready(out)

    assert aux is None
    assert out.shape == (2, 3, 128, 128), out.shape            # 16 -> /8 -> x2 x2 x2 x2 = 128
    assert bool(jnp.all(jnp.isfinite(out)))
    print("KERNEL_OK")
</pallas_src>

<mosaic_0001>
module attributes {stable_mosaic.version = 11 : i64} {
  func.func @_conv_in_fused_kernel(%arg0: i32, %arg1: memref<1x5x14x14xf32, #tpu.memory_space<vmem>>, %arg2: memref<180xf32, #tpu.memory_space<smem>>, %arg3: memref<4xf32, #tpu.memory_space<smem>>, %arg4: memref<4xf32, #tpu.memory_space<smem>>, %arg5: memref<1x4x12x12xf32, #tpu.memory_space<vmem>>) attributes {dimension_semantics = [#tpu.dimension_semantics<parallel>], iteration_bounds = array<i64: 2>, scalar_prefetch = 0 : i64, scratch_operands = 0 : i64, tpu.core_type = #tpu.core_type<tc>, window_params = [{transform_indices = @transform_0, window_bounds = array<i64: 1, 5, 14, 14>}, {transform_indices = @transform_1, window_bounds = array<i64: 180>}, {transform_indices = @transform_2, window_bounds = array<i64: 4>}, {transform_indices = @transform_3, window_bounds = array<i64: 4>}, {transform_indices = @transform_4, window_bounds = array<i64: 1, 4, 12, 12>}]} {
    %cst = arith.constant 0.000000e+00 : f32
    %0 = vector.broadcast %cst : f32 to vector<12x12xf32>
    %cst_0 = arith.constant 0.000000e+00 : f32
    %1 = vector.broadcast %cst_0 : f32 to vector<12x12xf32>
    %cst_1 = arith.constant 0.000000e+00 : f32
    %2 = vector.broadcast %cst_1 : f32 to vector<12x12xf32>
    %cst_2 = arith.constant 0.000000e+00 : f32
    %3 = vector.broadcast %cst_2 : f32 to vector<12x12xf32>
    %c0_i32 = arith.constant 0 : i32
    %c9_i32 = arith.constant 9 : i32
    %4 = arith.muli %c0_i32, %c9_i32 : i32
    %c0 = arith.constant 0 : index
    %5 = arith.index_cast %c0_i32 : i32 to index
    %c0_3 = arith.constant 0 : index
    %c0_4 = arith.constant 0 : index
    %6 = vector.load %arg1[%c0, %5, %c0_3, %c0_4] : memref<1x5x14x14xf32, #tpu.memory_space<vmem>>, vector<1x1x12x12xf32>
    %7 = vector.shape_cast %6 : vector<1x1x12x12xf32> to vector<12x12xf32>
    %c0_i32_5 = arith.constant 0 : i32
    %8 = arith.addi %4, %c0_i32_5 : i32
    %c0_i32_6 = arith.constant 0 : i32
    %9 = arith.addi %8, %c0_i32_6 : i32
    %c0_i32_7 = arith.constant 0 : i32
    %10 = arith.addi %c0_i32_7, %9 : i32
    %11 = arith.index_cast %10 : i32 to index
    %12 = memref.load %arg2[%11] : memref<180xf32, #tpu.memory_space<smem>>
    %13 = vector.broadcast %12 : f32 to vector<12x12xf32>
    %14 = arith.mulf %13, %7 : vector<12x12xf32>
    %15 = arith.addf %0, %14 : vector<12x12xf32>
    %c45_i32 = arith.constant 45 : i32
    %16 = arith.addi %c45_i32, %9 : i32
    %17 = arith.index_cast %16 : i32 to index
    %18 = memref.load %arg2[%17] : memref<180xf32, #tpu.memory_space<smem>>
    %19 = vector.broadcast %18 : f32 to vector<12x12xf32>
    %20 = arith.mulf %19, %7 : vector<12x12xf32>
    %21 = arith.addf %1, %20 : vector<12x12xf32>
    %c90_i32 = arith.constant 90 : i32
    %22 = arith.addi %c90_i32, %9 : i32
    %23 = arith.index_cast %22 : i32 to index
    %24 = memref.load %arg2[%23] : memref<180xf32, #tpu.memory_space<smem>>
    %25 = vector.broadcast %24 : f32 to vector<12x12xf32>
    %26 = arith.mulf %25, %7 : vector<12x12xf32>
    %27 = arith.addf %2, %26 : vector<12x12xf32>
    %c135_i32 = arith.constant 135 : i32
    %28 = arith.addi %c135_i32, %9 : i32
    %29 = arith.index_cast %28 : i32 to index
    %30 = memref.load %arg2[%29] : memref<180xf32, #tpu.memory_space<smem>>
    %31 = vector.broadcast %30 : f32 to vector<12x12xf32>
    %32 = arith.mulf %31, %7 : vector<12x12xf32>
    %33 = arith.addf %3, %32 : vector<12x12xf32>
    %c0_8 = arith.constant 0 : index
    %34 = arith.index_cast %c0_i32 : i32 to index
    %c0_9 = arith.constant 0 : index
    %c1 = arith.constant 1 : index
    %35 = vector.load %arg1[%c0_8, %34, %c0_9, %c1] : memref<1x5x14x14xf32, #tpu.memory_space<vmem>>, vector<1x1x12x12xf32>
    %36 = vector.shape_cast %35 : vector<1x1x12x12xf32> to vector<12x12xf32>
    %c0_i32_10 = arith.constant 0 : i32
    %37 = arith.addi %4, %c0_i32_10 : i32
    %c1_i32 = arith.constant 1 : i32
    %38 = arith.addi %37, %c1_i32 : i32
    %c0_i32_11 = arith.constant 0 : i32
    %39 = arith.addi %c0_i32_11, %38 : i32
    %40 = arith.index_cast %39 : i32 to index
    %41 = memref.load %arg2[%40] : memref<180xf32, #tpu.memory_space<smem>>
    %42 = vector.broadcast %41 : f32 to vector<12x12xf32>
    %43 = arith.mulf %42, %36 : vector<12x12xf32>
    %44 = arith.addf %15, %43 : vector<12x12xf32>
    %c45_i32_12 = arith.constant 45 : i32
    %45 = arith.addi %c45_i32_12, %38 : i32
    %46 = arith.index_cast %45 : i32 to index
    %47 = memref.load %arg2[%46] : memref<180xf32, #tpu.memory_space<smem>>
    %48 = vector.broadcast %47 : f32 to vector<12x12xf32>
    %49 = arith.mulf %48, %36 : vector<12x12xf32>
    %50 = arith.addf %21, %49 : vector<12x12xf32>
    %c90_i32_13 = arith.constant 90 : i32
    %51 = arith.addi %c90_i32_13, %38 : i32
    %52 = arith.index_cast %51 : i32 to index
    %53 = memref.load %arg2[%52] : memref<180xf32, #tpu.memory_space<smem>>
    %54 = vector.broadcast %53 : f32 to vector<12x12xf32>
    %55 = arith.mulf %54, %36 : vector<12x12xf32>
    %56 = arith.addf %27, %55 : vector<12x12xf32>
    %c135_i32_14 = arith.constant 135 : i32
    %57 = arith.addi %c135_i32_14, %38 : i32
    %58 = arith.index_cast %57 : i32 to index
    %59 = memref.load %arg2[%58] : memref<180xf32, #tpu.memory_space<smem>>
    %60 = vector.broadcast %59 : f32 to vector<12x12xf32>
    %61 = arith.mulf %60, %36 : vector<12x12xf32>
    %62 = arith.addf %33, %61 : vector<12x12xf32>
    %c0_15 = arith.constant 0 : index
    %63 = arith.index_cast %c0_i32 : i32 to index
    %c0_16 = arith.constant 0 : index
    %c2 = arith.constant 2 : index
    %64 = vector.load %arg1[%c0_15, %63, %c0_16, %c2] : memref<1x5x14x14xf32, #tpu.memory_space<vmem>>, vector<1x1x12x12xf32>
    %65 = vector.shape_cast %64 : vector<1x1x12x12xf32> to vector<12x12xf32>
    %c0_i32_17 = arith.constant 0 : i32
    %66 = arith.addi %4, %c0_i32_17 : i32
    %c2_i32 = arith.constant 2 : i32
    %67 = arith.addi %66, %c2_i32 : i32
    %c0_i32_18 = arith.constant 0 : i32
    %68 = arith.addi %c0_i32_18, %67 : i32
    %69 = arith.index_cast %68 : i32 to index
    %70 = memref.load %arg2[%69] : memref<180xf32, #tpu.memory_space<smem>>
    %71 = vector.broadcast %70 : f32 to vector<12x12xf32>
    %72 = arith.mulf %71, %65 : vector<12x12xf32>
    %73 = arith.addf %44, %72 : vector<12x12xf32>
    %c45_i32_19 = arith.constant 45 : i32
    %74 = arith.addi %c45_i32_19, %67 : i32
    %75 = arith.index_cast %74 : i32 to index
    %76 = memref.load %arg2[%75] : memref<180xf32, #tpu.memory_space<smem>>
    %77 = vector.broadcast %76 : f32 to vector<12x12xf32>
    %78 = arith.mulf %77, %65 : vector<12x12xf32>
    %79 = arith.addf %50, %78 : vector<12x12xf32>
    %c90_i32_20 = arith.constant 90 : i32
    %80 = arith.addi %c90_i32_20, %67 : i32
    %81 = arith.index_cast %80 : i32 to index
    %82 = memref.load %arg2[%81] : memref<180xf32, #tpu.memory_space<smem>>
    %83 = vector.broadcast %82 : f32 to vector<12x12xf32>
    %84 = arith.mulf %83, %65 : vector<12x12xf32>
    %85 = arith.addf %56, %84 : vector<12x12xf32>
    %c135_i32_21 = arith.constant 135 : i32
    %86 = arith.addi %c135_i32_21, %67 : i32
    %87 = arith.index_cast %86 : i32 to index
    %88 = memref.load %arg2[%87] : memref<180xf32, #tpu.memory_space<smem>>
    %89 = vector.broadcast %88 : f32 to vector<12x12xf32>
    %90 = arith.mulf %89, %65 : vector<12x12xf32>
    %91 = arith.addf %62, %90 : vector<12x12xf32>
    %c0_22 = arith.constant 0 : index
    %92 = arith.index_cast %c0_i32 : i32 to index
    %c1_23 = arith.constant 1 : index
    %c0_24 = arith.constant 0 : index
    %93 = vector.load %arg1[%c0_22, %92, %c1_23, %c0_24] : memref<1x5x14x14xf32, #tpu.memory_space<vmem>>, vector<1x1x12x12xf32>
    %94 = vector.shape_cast %93 : vector<1x1x12x12xf32> to vector<12x12xf32>
    %c3_i32 = arith.constant 3 : i32
    %95 = arith.addi %4, %c3_i32 : i32
    %c0_i32_25 = arith.constant 0 : i32
    %96 = arith.addi %95, %c0_i32_25 : i32
    %c0_i32_26 = arith.constant 0 : i32
    %97 = arith.addi %c0_i32_26, %96 : i32
    %98 = arith.index_cast %97 : i32 to index
    %99 = memref.load %arg2[%98] : memref<180xf32, #tpu.memory_space<smem>>
    %100 = vector.broadcast %99 : f32 to vector<12x12xf32>
    %101 = arith.mulf %100, %94 : vector<12x12xf32>
    %102 = arith.addf %73, %101 : vector<12x12xf32>
    %c45_i32_27 = arith.constant 45 : i32
    %103 = arith.addi %c45_i32_27, %96 : i32
    %104 = arith.index_cast %103 : i32 to index
    %105 = memref.load %arg2[%104] : memref<180xf32, #tpu.memory_space<smem>>
    %106 = vector.broadcast %105 : f32 to vector<12x12xf32>
    %107 = arith.mulf %106, %94 : vector<12x12xf32>
    %108 = arith.addf %79, %107 : vector<12x12xf32>
    %c90_i32_28 = arith.constant 90 : i32
    %109 = arith.addi %c90_i32_28, %96 : i32
    %110 = arith.index_cast %109 : i32 to index
    %111 = memref.load %arg2[%110] : memref<180xf32, #tpu.memory_space<smem>>
    %112 = vector.broadcast %111 : f32 to vector<12x12xf32>
    %113 = arith.mulf %112, %94 : vector<12x12xf32>
    %114 = arith.addf %85, %113 : vector<12x12xf32>
    %c135_i32_29 = arith.constant 135 : i32
    %115 = arith.addi %c135_i32_29, %96 : i32
    %116 = arith.index_cast %115 : i32 to index
    %117 = memref.load %arg2[%116] : memref<180xf32, #tpu.memory_space<smem>>
    %118 = vector.broadcast %117 : f32 to vector<12x12xf32>
    %119 = arith.mulf %118, %94 : vector<12x12xf32>
    %120 = arith.addf %91, %119 : vector<12x12xf32>
    %c0_30 = arith.constant 0 : index
    %121 = arith.index_cast %c0_i32 : i32 to index
    %c1_31 = arith.constant 1 : index
    %c1_32 = arith.constant 1 : index
    %122 = vector.load %arg1[%c0_30, %121, %c1_31, %c1_32] : memref<1x5x14x14xf32, #tpu.memory_space<vmem>>, vector<1x1x12x12xf32>
    %123 = vector.shape_cast %122 : vector<1x1x12x12xf32> to vector<12x12xf32>
    %c3_i32_33 = arith.constant 3 : i32
    %124 = arith.addi %4, %c3_i32_33 : i32
    %c1_i32_34 = arith.constant 1 : i32
    %125 = arith.addi %124, %c1_i32_34 : i32
    %c0_i32_35 = arith.constant 0 : i32
    %126 = arith.addi %c0_i32_35, %125 : i32
    %127 = arith.index_cast %126 : i32 to index
    %128 = memref.load %arg2[%127] : memref<180xf32, #tpu.memory_space<smem>>
    %129 = vector.broadcast %128 : f32 to vector<12x12xf32>
    %130 = arith.mulf %129, %123 : vector<12x12xf32>
    %131 = arith.addf %102, %130 : vector<12x12xf32>
    %c45_i32_36 = arith.constant 45 : i32
    %132 = arith.addi %c45_i32_36, %125 : i32
    %133 = arith.index_cast %132 : i32 to index
    %134 = memref.load %arg2[%133] : memref<180xf32, #tpu.memory_space<smem>>
    %135 = vector.broadcast %134 : f32 to vector<12x12xf32>
    %136 = arith.mulf %135, %123 : vector<12x12xf32>
    %137 = arith.addf %108, %136 : vector<12x12xf32>
    %c90_i32_37 = arith.constant 90 : i32
    %138 = arith.addi %c90_i32_37, %125 : i32
    %139 = arith.index_cast %138 : i32 to index
    %140 = memref.load %arg2[%139] : memref<180xf32, #tpu.memory_space<smem>>
    %141 = vector.broadcast %140 : f32 to vector<12x12xf32>
    %142 = arith.mulf %141, %123 : vector<12x12xf32>
    %143 = arith.addf %114, %142 : vector<12x12xf32>
    %c135_i32_38 = arith.constant 135 : i32
    %144 = arith.addi %c135_i32_38, %125 : i32
    %145 = arith.index_cast %144 : i32 to index
    %146 = memref.load %arg2[%145] : memref<180xf32, #tpu.memory_space<smem>>
    %147 = vector.broadcast %146 : f32 to vector<12x12xf32>
    %148 = arith.mulf %147, %123 : vector<12x12xf32>
    %149 = arith.addf %120, %148 : vector<12x12xf32>
    %c0_39 = arith.constant 0 : index
    %150 = arith.index_cast %c0_i32 : i32 to index
    %c1_40 = arith.constant 1 : index
    %c2_41 = arith.constant 2 : index
    %151 = vector.load %arg1[%c0_39, %150, %c1_40, %c2_41] : memref<1x5x14x14xf32, #tpu.memory_space<vmem>>, vector<1x1x12x12xf32>
    %152 = vector.shape_cast %151 : vector<1x1x12x12xf32> to vector<12x12xf32>
    %c3_i32_42 = arith.constant 3 : i32
    %153 = arith.addi %4, %c3_i32_42 : i32
    %c2_i32_43 = arith.constant 2 : i32
    %154 = arith.addi %153, %c2_i32_43 : i32
    %c0_i32_44 = arith.constant 0 : i32
    %155 = arith.addi %c0_i32_44, %154 : i32
    %156 = arith.index_cast %155 : i32 to index
    %157 = memref.load %arg2[%156] : memref<180xf32, #tpu.memory_space<smem>>
    %158 = vector.broadcast %157 : f32 to vector<12x12xf32>
    %159 = arith.mulf %158, %152 : vector<12x12xf32>
    %160 = arith.addf %131, %159 : vector<12x12xf32>
    %c45_i32_45 = arith.constant 45 : i32
    %161 = arith.addi %c45_i32_45, %154 : i32
    %162 = arith.index_cast %161 : i32 to index
    %163 = memref.load %arg2[%162] : memref<180xf32, #tpu.memory_space<smem>>
    %164 = vector.broadcast %163 : f32 to vector<12x12xf32>
    %165 = arith.mulf %164, %152 : vector<12x12xf32>
    %166 = arith.addf %137, %165 : vector<12x12xf32>
    %c90_i32_46 = arith.constant 90 : i32
    %167 = arith.addi %c90_i32_46, %154 : i32
    %168 = arith.index_cast %167 : i32 to index
    %169 = memref.load %arg2[%168] : memref<180xf32, #tpu.memory_space<smem>>
    %170 = vector.broadcast %169 : f32 to vector<12x12xf32>
    %171 = arith.mulf %170, %152 : vector<12x12xf32>
    %172 = arith.addf %143, %171 : vector<12x12xf32>
    %c135_i32_47 = arith.constant 135 : i32
    %173 = arith.addi %c135_i32_47, %154 : i32
    %174 = arith.index_cast %173 : i32 to index
    %175 = memref.load %arg2[%174] : memref<180xf32, #tpu.memory_space<smem>>
    %176 = vector.broadcast %175 : f32 to vector<12x12xf32>
    %177 = arith.mulf %176, %152 : vector<12x12xf32>
    %178 = arith.addf %149, %177 : vector<12x12xf32>
    %c0_48 = arith.constant 0 : index
    %179 = arith.index_cast %c0_i32 : i32 to index
    %c2_49 = arith.constant 2 : index
    %c0_50 = arith.constant 0 : index
    %180 = vector.load %arg1[%c0_48, %179, %c2_49, %c0_50] : memref<1x5x14x14xf32, #tpu.memory_space<vmem>>, vector<1x1x12x12xf32>
    %181 = vector.shape_cast %180 : vector<1x1x12x12xf32> to vector<12x12xf32>
    %c6_i32 = arith.constant 6 : i32
    %182 = arith.addi %4, %c6_i32 : i32
    %c0_i32_51 = arith.constant 0 : i32
    %183 = arith.addi %182, %c0_i32_51 : i32
    %c0_i32_52 = arith.constant 0 : i32
    %184 = arith.addi %c0_i32_52, %183 : i32
    %185 = arith.index_cast %184 : i32 to index
    %186 = memref.load %arg2[%185] : memref<180xf32, #tpu.memory_space<smem>>
    %187 = vector.broadcast %186 : f32 to vector<12x12xf32>
    %188 = arith.mulf %187, %181 : vector<12x12xf32>
    %189 = arith.addf %160, %188 : vector<12x12xf32>
    %c45_i32_53 = arith.constant 45 : i32
    %190 = arith.addi %c45_i32_53, %183 : i32
    %191 = arith.index_cast %190 : i32 to index
    %192 = memref.load %arg2[%191] : memref<180xf32, #tpu.memory_space<smem>>
    %193 = vector.broadcast %192 : f32 to vector<12x12xf32>
    %194 = arith.mulf %193, %181 : vector<12x12xf32>
    %195 = arith.addf %166, %194 : vector<12x12xf32>
    %c90_i32_54 = arith.constant 90 : i32
    %196 = arith.addi %c90_i32_54, %183 : i32
    %197 = arith.index_cast %196 : i32 to index
    %198 = memref.load %arg2[%197] : memref<180xf32, #tpu.memory_space<smem>>
    %199 = vector.broadcast %198 : f32 to vector<12x12xf32>
    %200 = arith.mulf %199, %181 : vector<12x12xf32>
    %201 = arith.addf %172, %200 : vector<12x12xf32>
    %c135_i32_55 = arith.constant 135 : i32
    %202 = arith.addi %c135_i32_55, %183 : i32
    %203 = arith.index_cast %202 : i32 to index
    %204 = memref.load %arg2[%203] : memref<180xf32, #tpu.memory_space<smem>>
    %205 = vector.broadcast %204 : f32 to vector<12x12xf32>
    %206 = arith.mulf %205, %181 : vector<12x12xf32>
    %207 = arith.addf %178, %206 : vector<12x12xf32>
    %c0_56 = arith.constant 0 : index
    %208 = arith.index_cast %c0_i32 : i32 to index
    %c2_57 = arith.constant 2 : index
    %c1_58 = arith.constant 1 : index
    %209 = vector.load %arg1[%c0_56, %208, %c2_57, %c1_58] : memref<1x5x14x14xf32, #tpu.memory_space<vmem>>, vector<1x1x12x12xf32>
    %210 = vector.shape_cast %209 : vector<1x1x12x12xf32> to vector<12x12xf32>
    %c6_i32_59 = arith.constant 6 : i32
    %211 = arith.addi %4, %c6_i32_59 : i32
    %c1_i32_60 = arith.constant 1 : i32
    %212 = arith.addi %211, %c1_i32_60 : i32
    %c0_i32_61 = arith.constant 0 : i32
    %213 = arith.addi %c0_i32_61, %212 : i32
    %214 = arith.index_cast %213 : i32 to index
    %215 = memref.load %arg2[%214] : memref<180xf32, #tpu.memory_space<smem>>
    %216 = vector.broadcast %215 : f32 to vector<12x12xf32>
    %217 = arith.mulf %216, %210 : vector<12x12xf32>
    %218 = arith.addf %189, %217 : vector<12x12xf32>
    %c45_i32_62 = arith.constant 45 : i32
    %219 = arith.addi %c45_i32_62, %212 : i32
    %220 = arith.index_cast %219 : i32 to index
    %221 = memref.load %arg2[%220] : memref<180xf32, #tpu.memory_space<smem>>
    %222 = vector.broadcast %221 : f32 to vector<12x12xf32>
    %223 = arith.mulf %222, %210 : vector<12x12xf32>
    %224 = arith.addf %195, %223 : vector<12x12xf32>
    %c90_i32_63 = arith.constant 90 : i32
    %225 = arith.addi %c90_i32_63, %212 : i32
    %226 = arith.index_cast %225 : i32 to index
    %227 = memref.load %arg2[%226] : memref<180xf32, #tpu.memory_space<smem>>
    %228 = vector.broadcast %227 : f32 to vector<12x12xf32>
    %229 = arith.mulf %228, %210 : vector<12x12xf32>
    %230 = arith.addf %201, %229 : vector<12x12xf32>
    %c135_i32_64 = arith.constant 135 : i32
    %231 = arith.addi %c135_i32_64, %212 : i32
    %232 = arith.index_cast %231 : i32 to index
    %233 = memref.load %arg2[%232] : memref<180xf32, #tpu.memory_space<smem>>
    %234 = vector.broadcast %233 : f32 to vector<12x12xf32>
    %235 = arith.mulf %234, %210 : vector<12x12xf32>
    %236 = arith.addf %207, %235 : vector<12x12xf32>
    %c0_65 = arith.constant 0 : index
    %237 = arith.index_cast %c0_i32 : i32 to index
    %c2_66 = arith.constant 2 : index
    %c2_67 = arith.constant 2 : index
    %238 = vector.load %arg1[%c0_65, %237, %c2_66, %c2_67] : memref<1x5x14x14xf32, #tpu.memory_space<vmem>>, vector<1x1x12x12xf32>
    %239 = vector.shape_cast %238 : vector<1x1x12x12xf32> to vector<12x12xf32>
    %c6_i32_68 = arith.constant 6 : i32
    %240 = arith.addi %4, %c6_i32_68 : i32
    %c2_i32_69 = arith.constant 2 : i32
    %241 = arith.addi %240, %c2_i32_69 : i32
    %c0_i32_70 = arith.constant 0 : i32
    %242 = arith.addi %c0_i32_70, %241 : i32
    %243 = arith.index_cast %242 : i32 to index
    %244 = memref.load %arg2[%243] : memref<180xf32, #tpu.memory_space<smem>>
    %245 = vector.broadcast %244 : f32 to vector<12x12xf32>
    %246 = arith.mulf %245, %239 : vector<12x12xf32>
    %247 = arith.addf %218, %246 : vector<12x12xf32>
    %c45_i32_71 = arith.constant 45 : i32
    %248 = arith.addi %c45_i32_71, %241 : i32
    %249 = arith.index_cast %248 : i32 to index
    %250 = memref.load %arg2[%249] : memref<180xf32, #tpu.memory_space<smem>>
    %251 = vector.broadcast %250 : f32 to vector<12x12xf32>
    %252 = arith.mulf %251, %239 : vector<12x12xf32>
    %253 = arith.addf %224, %252 : vector<12x12xf32>
    %c90_i32_72 = arith.constant 90 : i32
    %254 = arith.addi %c90_i32_72, %241 : i32
    %255 = arith.index_cast %254 : i32 to index
    %256 = memref.load %arg2[%255] : memref<180xf32, #tpu.memory_space<smem>>
    %257 = vector.broadcast %256 : f32 to vector<12x12xf32>
    %258 = arith.mulf %257, %239 : vector<12x12xf32>
    %259 = arith.addf %230, %258 : vector<12x12xf32>
    %c135_i32_73 = arith.constant 135 : i32
    %260 = arith.addi %c135_i32_73, %241 : i32
    %261 = arith.index_cast %260 : i32 to index
    %262 = memref.load %arg2[%261] : memref<180xf32, #tpu.memory_space<smem>>
    %263 = vector.broadcast %262 : f32 to vector<12x12xf32>
    %264 = arith.mulf %263, %239 : vector<12x12xf32>
    %265 = arith.addf %236, %264 : vector<12x12xf32>
    %c1_i32_74 = arith.constant 1 : i32
    %c9_i32_75 = arith.constant 9 : i32
    %266 = arith.muli %c1_i32_74, %c9_i32_75 : i32
    %c0_76 = arith.constant 0 : index
    %267 = arith.index_cast %c1_i32_74 : i32 to index
    %c0_77 = arith.constant 0 : index
    %c0_78 = arith.constant 0 : index
    %268 = vector.load %arg1[%c0_76, %267, %c0_77, %c0_78] : memref<1x5x14x14xf32, #tpu.memory_space<vmem>>, vector<1x1x12x12xf32>
    %269 = vector.shape_cast %268 : vector<1x1x12x12xf32> to vector<12x12xf32>
    %c0_i32_79 = arith.constant 0 : i32
    %270 = arith.addi %266, %c0_i32_79 : i32
    %c0_i32_80 = arith.constant 0 : i32
    %271 = arith.addi %270, %c0_i32_80 : i32
    %c0_i32_81 = arith.constant 0 : i32
    %272 = arith.addi %c0_i32_81, %271 : i32
    %273 = arith.index_cast %272 : i32 to index
    %274 = memref.load %arg2[%273] : memref<180xf32, #tpu.memory_space<smem>>
    %275 = vector.broadcast %274 : f32 to vector<12x12xf32>
    %276 = arith.mulf %275, %269 : vector<12x12xf32>
    %277 = arith.addf %247, %276 : vector<12x12xf32>
    %c45_i32_82 = arith.constant 45 : i32
    %278 = arith.addi %c45_i32_82, %271 : i32
    %279 = arith.index_cast %278 : i32 to index
    %280 = memref.load %arg2[%279] : memref<180xf32, #tpu.memory_space<smem>>
    %281 = vector.broadcast %280 : f32 to vector<12x12xf32>
    %282 = arith.mulf %281, %269 : vector<12x12xf32>
    %283 = arith.addf %253, %282 : vector<12x12xf32>
    %c90_i32_83 = arith.constant 90 : i32
    %284 = arith.addi %c90_i32_83, %271 : i32
    %285 = arith.index_cast %284 : i32 to index
    %286 = memref.load %arg2[%285] : memref<180xf32, #tpu.memory_space<smem>>
    %287 = vector.broadcast %286 : f32 to vector<12x12xf32>
    %288 = arith.mulf %287, %269 : vector<12x12xf32>
    %289 = arith.addf %259, %288 : vector<12x12xf32>
    %c135_i32_84 = arith.constant 135 : i32
    %290 = arith.addi %c135_i32_84, %271 : i32
    %291 = arith.index_cast %290 : i32 to index
    %292 = memref.load %arg2[%291] : memref<180xf32, #tpu.memory_space<smem>>
    %293 = vector.broadcast %292 : f32 to vector<12x12xf32>
    %294 = arith.mulf %293, %269 : vector<12x12xf32>
    %295 = arith.addf %265, %294 : vector<12x12xf32>
    %c0_85 = arith.constant 0 : index
    %296 = arith.index_cast %c1_i32_74 : i32 to index
    %c0_86 = arith.constant 0 : index
    %c1_87 = arith.constant 1 : index
    %297 = vector.load %arg1[%c0_85, %296, %c0_86, %c1_87] : memref<1x5x14x14xf32, #tpu.memory_space<vmem>>, vector<1x1x12x12xf32>
    %298 = vector.shape_cast %297 : vector<1x1x12x12xf32> to vector<12x12xf32>
    %c0_i32_88 = arith.constant 0 : i32
    %299 = arith.addi %266, %c0_i32_88 : i32
    %c1_i32_89 = arith.constant 1 : i32
    %300 = arith.addi %299, %c1_i32_89 : i32
    %c0_i32_90 = arith.constant 0 : i32
    %301 = arith.addi %c0_i32_90, %300 : i32
    %302 = arith.index_cast %301 : i32 to index
    %303 = memref.load %arg2[%302] : memref<180xf32, #tpu.memory_space<smem>>
    %304 = vector.broadcast %303 : f32 to vector<12x12xf32>
    %305 = arith.mulf %304, %298 : vector<12x12xf32>
    %306 = arith.addf %277, %305 : vector<12x12xf32>
    %c45_i32_91 = arith.constant 45 : i32
    %307 = arith.addi %c45_i32_91, %300 : i32
    %308 = arith.index_cast %307 : i32 to index
    %309 = memref.load %arg2[%308] : memref<180xf32, #tpu.memory_space<smem>>
    %310 = vector.broadcast %309 : f32 to vector<12x12xf32>
    %311 = arith.mulf %310, %298 : vector<12x12xf32>
    %312 = arith.addf %283, %311 : vector<12x12xf32>
    %c90_i32_92 = arith.constant 90 : i32
    %313 = arith.addi %c90_i32_92, %300 : i32
    %314 = arith.index_cast %313 : i32 to index
    %315 = memref.load %arg2[%314] : memref<180xf32, #tpu.memory_space<smem>>
    %316 = vector.broadcast %315 : f32 to vector<12x12xf32>
    %317 = arith.mulf %316, %298 : vector<12x12xf32>
    %318 = arith.addf %289, %317 : vector<12x12xf32>
    %c135_i32_93 = arith.constant 135 : i32
    %319 = arith.addi %c135_i32_93, %300 : i32
    %320 = arith.index_cast %319 : i32 to index
    %321 = memref.load %arg2[%320] : memref<180xf32, #tpu.memory_space<smem>>
    %322 = vector.broadcast %321 : f32 to vector<12x12xf32>
    %323 = arith.mulf %322, %298 : vector<12x12xf32>
    %324 = arith.addf %295, %323 : vector<12x12xf32>
    %c0_94 = arith.constant 0 : index
    %325 = arith.index_cast %c1_i32_74 : i32 to index
    %c0_95 = arith.constant 0 : index
    %c2_96 = arith.constant 2 : index
    %326 = vector.load %arg1[%c0_94, %325, %c0_95, %c2_96] : memref<1x5x14x14xf32, #tpu.memory_space<vmem>>, vector<1x1x12x12xf32>
    %327 = vector.shape_cast %326 : vector<1x1x12x12xf32> to vector<12x12xf32>
    %c0_i32_97 = arith.constant 0 : i32
    %328 = arith.addi %266, %c0_i32_97 : i32
    %c2_i32_98 = arith.constant 2 : i32
    %329 = arith.addi %328, %c2_i32_98 : i32
    %c0_i32_99 = arith.constant 0 : i32
    %330 = arith.addi %c0_i32_99, %329 : i32
    %331 = arith.index_cast %330 : i32 to index
    %332 = memref.load %arg2[%331] : memref<180xf32, #tpu.memory_space<smem>>
    %333 = vector.broadcast %332 : f32 to vector<12x12xf32>
    %334 = arith.mulf %333, %327 : vector<12x12xf32>
    %335 = arith.addf %306, %334 : vector<12x12xf32>
    %c45_i32_100 = arith.constant 45 : i32
    %336 = arith.addi %c45_i32_100, %329 : i32
    %337 = arith.index_cast %336 : i32 to index
    %338 = memref.load %arg2[%337] : memref<180xf32, #tpu.memory_space<smem>>
    %339 = vector.broadcast %338 : f32 to vector<12x12xf32>
    %340 = arith.mulf %339, %327 : vector<12x12xf32>
    %341 = arith.addf %312, %340 : vector<12x12xf32>
    %c90_i32_101 = arith.constant 90 : i32
    %342 = arith.addi %c90_i32_101, %329 : i32
    %343 = arith.index_cast %342 : i32 to index
    %344 = memref.load %arg2[%343] : memref<180xf32, #tpu.memory_space<smem>>
    %345 = vector.broadcast %344 : f32 to vector<12x12xf32>
    %346 = arith.mulf %345, %327 : vector<12x12xf32>
    %347 = arith.addf %318, %346 : vector<12x12xf32>
    %c135_i32_102 = arith.constant 135 : i32
    %348 = arith.addi %c135_i32_102, %329 : i32
    %349 = arith.index_cast %348 : i32 to index
    %350 = memref.load %arg2[%349] : memref<180xf32, #tpu.memory_space<smem>>
    %351 = vector.broadcast %350 : f32 to vector<12x12xf32>
    %352 = arith.mulf %351, %327 : vector<12x12xf32>
    %353 = arith.addf %324, %352 : vector<12x12xf32>
    %c0_103 = arith.constant 0 : index
    %354 = arith.index_cast %c1_i32_74 : i32 to index
    %c1_104 = arith.constant 1 : index
    %c0_105 = arith.constant 0 : index
    %355 = vector.load %arg1[%c0_103, %354, %c1_104, %c0_105] : memref<1x5x14x14xf32, #tpu.memory_space<vmem>>, vector<1x1x12x12xf32>
    %356 = vector.shape_cast %355 : vector<1x1x12x12xf32> to vector<12x12xf32>
    %c3_i32_106 = arith.constant 3 : i32
    %357 = arith.addi %266, %c3_i32_106 : i32
    %c0_i32_107 = arith.constant 0 : i32
    %358 = arith.addi %357, %c0_i32_107 : i32
    %c0_i32_108 = arith.constant 0 : i32
    %359 = arith.addi %c0_i32_108, %358 : i32
    %360 = arith.index_cast %359 : i32 to index
    %361 = memref.load %arg2[%360] : memref<180xf32, #tpu.memory_space<smem>>
    %362 = vector.broadcast %361 : f32 to vector<12x12xf32>
    %363 = arith.mulf %362, %356 : vector<12x12xf32>
    %364 = arith.addf %335, %363 : vector<12x12xf32>
    %c45_i32_109 = arith.constant 45 : i32
    %365 = arith.addi %c45_i32_109, %358 : i32
    %366 = arith.index_cast %365 : i32 to index
    %367 = memref.load %arg2[%366] : memref<180xf32, #tpu.memory_space<smem>>
    %368 = vector.broadcast %367 : f32 to vector<12x12xf32>
    %369 = arith.mulf %368, %356 : vector<12x12xf32>
    %370 = arith.addf %341, %369 : vector<12x12xf32>
    %c90_i32_110 = arith.constant 90 : i32
    %371 = arith.addi %c90_i32_110, %358 : i32
    %372 = arith.index_cast %371 : i32 to index
    %373 = memref.load %arg2[%372] : memref<180xf32, #tpu.memory_space<smem>>
    %374 = vector.broadcast %373 : f32 to vector<12x12xf32>
    %375 = arith.mulf %374, %356 : vector<12x12xf32>
    %376 = arith.addf %347, %375 : vector<12x12xf32>
    %c135_i32_111 = arith.constant 135 : i32
    %377 = arith.addi %c135_i32_111, %358 : i32
    %378 = arith.index_cast %377 : i32 to index
    %379 = memref.load %arg2[%378] : memref<180xf32, #tpu.memory_space<smem>>
    %380 = vector.broadcast %379 : f32 to vector<12x12xf32>
    %381 = arith.mulf %380, %356 : vector<12x12xf32>
    %382 = arith.addf %353, %381 : vector<12x12xf32>
    %c0_112 = arith.constant 0 : index
    %383 = arith.index_cast %c1_i32_74 : i32 to index
    %c1_113 = arith.constant 1 : index
    %c1_114 = arith.constant 1 : index
    %384 = vector.load %arg1[%c0_112, %383, %c1_113, %c1_114] : memref<1x5x14x14xf32, #tpu.memory_space<vmem>>, vector<1x1x12x12xf32>
    %385 = vector.shape_cast %384 : vector<1x1x12x12xf32> to vector<12x12xf32>
    %c3_i32_115 = arith.constant 3 : i32
    %386 = arith.addi %266, %c3_i32_115 : i32
    %c1_i32_116 = arith.constant 1 : i32
    %387 = arith.addi %386, %c1_i32_116 : i32
    %c0_i32_117 = arith.constant 0 : i32
    %388 = arith.addi %c0_i32_117, %387 : i32
    %389 = arith.index_cast %388 : i32 to index
    %390 = memref.load %arg2[%389] : memref<180xf32, #tpu.memory_space<smem>>
    %391 = vector.broadcast %390 : f32 to vector<12x12xf32>
    %392 = arith.mulf %391, %385 : vector<12x12xf32>
    %393 = arith.addf %364, %392 : vector<12x12xf32>
    %c45_i32_118 = arith.constant 45 : i32
    %394 = arith.addi %c45_i32_118, %387 : i32
    %395 = arith.index_cast %394 : i32 to index
    %396 = memref.load %arg2[%395] : memref<180xf32, #tpu.memory_space<smem>>
    %397 = vector.broadcast %396 : f32 to vector<12x12xf32>
    %398 = arith.mulf %397, %385 : vector<12x12xf32>
    %399 = arith.addf %370, %398 : vector<12x12xf32>
    %c90_i32_119 = arith.constant 90 : i32
    %400 = arith.addi %c90_i32_119, %387 : i32
    %401 = arith.index_cast %400 : i32 to index
    %402 = memref.load %arg2[%401] : memref<180xf32, #tpu.memory_space<smem>>
    %403 = vector.broadcast %402 : f32 to vector<12x12xf32>
    %404 = arith.mulf %403, %385 : vector<12x12xf32>
    %405 = arith.addf %376, %404 : vector<12x12xf32>
    %c135_i32_120 = arith.constant 135 : i32
    %406 = arith.addi %c135_i32_120, %387 : i32
    %407 = arith.index_cast %406 : i32 to index
    %408 = memref.load %arg2[%407] : memref<180xf32, #tpu.memory_space<smem>>
    %409 = vector.broadcast %408 : f32 to vector<12x12xf32>
    %410 = arith.mulf %409, %385 : vector<12x12xf32>
    %411 = arith.addf %382, %410 : vector<12x12xf32>
    %c0_121 = arith.constant 0 : index
    %412 = arith.index_cast %c1_i32_74 : i32 to index
    %c1_122 = arith.constant 1 : index
    %c2_123 = arith.constant 2 : index
    %413 = vector.load %arg1[%c0_121, %412, %c1_122, %c2_123] : memref<1x5x14x14xf32, #tpu.memory_space<vmem>>, vector<1x1x12x12xf32>
    %414 = vector.shape_cast %413 : vector<1x1x12x12xf32> to vector<12x12xf32>
    %c3_i32_124 = arith.constant 3 : i32
    %415 = arith.addi %266, %c3_i32_124 : i32
    %c2_i32_125 = arith.constant 2 : i32
    %416 = arith.addi %415, %c2_i32_125 : i32
    %c0_i32_126 = arith.constant 0 : i32
    %417 = arith.addi %c0_i32_126, %416 : i32
    %418 = arith.index_cast %417 : i32 to index
    %419 = memref.load %arg2[%418] : memref<180xf32, #tpu.memory_space<smem>>
    %420 = vector.broadcast %419 : f32 to vector<12x12xf32>
    %421 = arith.mulf %420, %414 : vector<12x12xf32>
    %422 = arith.addf %393, %421 : vector<12x12xf32>
    %c45_i32_127 = arith.constant 45 : i32
    %423 = arith.addi %c45_i32_127, %416 : i32
    %424 = arith.index_cast %423 : i32 to index
    %425 = memref.load %arg2[%424] : memref<180xf32, #tpu.memory_space<smem>>
    %426 = vector.broadcast %425 : f32 to vector<12x12xf32>
    %427 = arith.mulf %426, %414 : vector<12x12xf32>
    %428 = arith.addf %399, %427 : vector<12x12xf32>
    %c90_i32_128 = arith.constant 90 : i32
    %429 = arith.addi %c90_i32_128, %416 : i32
    %430 = arith.index_cast %429 : i32 to index
    %431 = memref.load %arg2[%430] : memref<180xf32, #tpu.memory_space<smem>>
    %432 = vector.broadcast %431 : f32 to vector<12x12xf32>
    %433 = arith.mulf %432, %414 : vector<12x12xf32>
    %434 = arith.addf %405, %433 : vector<12x12xf32>
    %c135_i32_129 = arith.constant 135 : i32
    %435 = arith.addi %c135_i32_129, %416 : i32
    %436 = arith.index_cast %435 : i32 to index
    %437 = memref.load %arg2[%436] : memref<180xf32, #tpu.memory_space<smem>>
    %438 = vector.broadcast %437 : f32 to vector<12x12xf32>
    %439 = arith.mulf %438, %414 : vector<12x12xf32>
    %440 = arith.addf %411, %439 : vector<12x12xf32>
    %c0_130 = arith.constant 0 : index
    %441 = arith.index_cast %c1_i32_74 : i32 to index
    %c2_131 = arith.constant 2 : index
    %c0_132 = arith.constant 0 : index
    %442 = vector.load %arg1[%c0_130, %441, %c2_131, %c0_132] : memref<1x5x14x14xf32, #tpu.memory_space<vmem>>, vector<1x1x12x12xf32>
    %443 = vector.shape_cast %442 : vector<1x1x12x12xf32> to vector<12x12xf32>
    %c6_i32_133 = arith.constant 6 : i32
    %444 = arith.addi %266, %c6_i32_133 : i32
    %c0_i32_134 = arith.constant 0 : i32
    %445 = arith.addi %444, %c0_i32_134 : i32
    %c0_i32_135 = arith.constant 0 : i32
    %446 = arith.addi %c0_i32_135, %445 : i32
    %447 = arith.index_cast %446 : i32 to index
    %448 = memref.load %arg2[%447] : memref<180xf32, #tpu.memory_space<smem>>
    %449 = vector.broadcast %448 : f32 to vector<12x12xf32>
    %450 = arith.mulf %449, %443 : vector<12x12xf32>
    %451 = arith.addf %422, %450 : vector<12x12xf32>
    %c45_i32_136 = arith.constant 45 : i32
    %452 = arith.addi %c45_i32_136, %445 : i32
    %453 = arith.index_cast %452 : i32 to index
    %454 = memref.load %arg2[%453] : memref<180xf32, #tpu.memory_space<smem>>
    %455 = vector.broadcast %454 : f32 to vector<12x12xf32>
    %456 = arith.mulf %455, %443 : vector<12x12xf32>
    %457 = arith.addf %428, %456 : vector<12x12xf32>
    %c90_i32_137 = arith.constant 90 : i32
    %458 = arith.addi %c90_i32_137, %445 : i32
    %459 = arith.index_cast %458 : i32 to index
    %460 = memref.load %arg2[%459] : memref<180xf32, #tpu.memory_space<smem>>
    %461 = vector.broadcast %460 : f32 to vector<12x12xf32>
    %462 = arith.mulf %461, %443 : vector<12x12xf32>
    %463 = arith.addf %434, %462 : vector<12x12xf32>
    %c135_i32_138 = arith.constant 135 : i32
    %464 = arith.addi %c135_i32_138, %445 : i32
    %465 = arith.index_cast %464 : i32 to index
    %466 = memref.load %arg2[%465] : memref<180xf32, #tpu.memory_space<smem>>
    %467 = vector.broadcast %466 : f32 to vector<12x12xf32>
    %468 = arith.mulf %467, %443 : vector<12x12xf32>
    %469 = arith.addf %440, %468 : vector<12x12xf32>
    %c0_139 = arith.constant 0 : index
    %470 = arith.index_cast %c1_i32_74 : i32 to index
    %c2_140 = arith.constant 2 : index
    %c1_141 = arith.constant 1 : index
    %471 = vector.load %arg1[%c0_139, %470, %c2_140, %c1_141] : memref<1x5x14x14xf32, #tpu.memory_space<vmem>>, vector<1x1x12x12xf32>
    %472 = vector.shape_cast %471 : vector<1x1x12x12xf32> to vector<12x12xf32>
    %c6_i32_142 = arith.constant 6 : i32
    %473 = arith.addi %266, %c6_i32_142 : i32
    %c1_i32_143 = arith.constant 1 : i32
    %474 = arith.addi %473, %c1_i32_143 : i32
    %c0_i32_144 = arith.constant 0 : i32
    %475 = arith.addi %c0_i32_144, %474 : i32
    %476 = arith.index_cast %475 : i32 to index
    %477 = memref.load %arg2[%476] : memref<180xf32, #tpu.memory_space<smem>>
    %478 = vector.broadcast %477 : f32 to vector<12x12xf32>
    %479 = arith.mulf %478, %472 : vector<12x12xf32>
    %480 = arith.addf %451, %479 : vector<12x12xf32>
    %c45_i32_145 = arith.constant 45 : i32
    %481 = arith.addi %c45_i32_145, %474 : i32
    %482 = arith.index_cast %481 : i32 to index
    %483 = memref.load %arg2[%482] : memref<180xf32, #tpu.memory_space<smem>>
    %484 = vector.broadcast %483 : f32 to vector<12x12xf32>
    %485 = arith.mulf %484, %472 : vector<12x12xf32>
    %486 = arith.addf %457, %485 : vector<12x12xf32>
    %c90_i32_146 = arith.constant 90 : i32
    %487 = arith.addi %c90_i32_146, %474 : i32
    %488 = arith.index_cast %487 : i32 to index
    %489 = memref.load %arg2[%488] : memref<180xf32, #tpu.memory_space<smem>>
    %490 = vector.broadcast %489 : f32 to vector<12x12xf32>
    %491 = arith.mulf %490, %472 : vector<12x12xf32>
    %492 = arith.addf %463, %491 : vector<12x12xf32>
    %c135_i32_147 = arith.constant 135 : i32
    %493 = arith.addi %c135_i32_147, %474 : i32
    %494 = arith.index_cast %493 : i32 to index
    %495 = memref.load %arg2[%494] : memref<180xf32, #tpu.memory_space<smem>>
    %496 = vector.broadcast %495 : f32 to vector<12x12xf32>
    %497 = arith.mulf %496, %472 : vector<12x12xf32>
    %498 = arith.addf %469, %497 : vector<12x12xf32>
    %c0_148 = arith.constant 0 : index
    %499 = arith.index_cast %c1_i32_74 : i32 to index
    %c2_149 = arith.constant 2 : index
    %c2_150 = arith.constant 2 : index
    %500 = vector.load %arg1[%c0_148, %499, %c2_149, %c2_150] : memref<1x5x14x14xf32, #tpu.memory_space<vmem>>, vector<1x1x12x12xf32>
    %501 = vector.shape_cast %500 : vector<1x1x12x12xf32> to vector<12x12xf32>
    %c6_i32_151 = arith.constant 6 : i32
    %502 = arith.addi %266, %c6_i32_151 : i32
    %c2_i32_152 = arith.constant 2 : i32
    %503 = arith.addi %502, %c2_i32_152 : i32
    %c0_i32_153 = arith.constant 0 : i32
    %504 = arith.addi %c0_i32_153, %503 : i32
    %505 = arith.index_cast %504 : i32 to index
    %506 = memref.load %arg2[%505] : memref<180xf32, #tpu.memory_space<smem>>
    %507 = vector.broadcast %506 : f32 to vector<12x12xf32>
    %508 = arith.mulf %507, %501 : vector<12x12xf32>
    %509 = arith.addf %480, %508 : vector<12x12xf32>
    %c45_i32_154 = arith.constant 45 : i32
    %510 = arith.addi %c45_i32_154, %503 : i32
    %511 = arith.index_cast %510 : i32 to index
    %512 = memref.load %arg2[%511] : memref<180xf32, #tpu.memory_space<smem>>
    %513 = vector.broadcast %512 : f32 to vector<12x12xf32>
    %514 = arith.mulf %513, %501 : vector<12x12xf32>
    %515 = arith.addf %486, %514 : vector<12x12xf32>
    %c90_i32_155 = arith.constant 90 : i32
    %516 = arith.addi %c90_i32_155, %503 : i32
    %517 = arith.index_cast %516 : i32 to index
    %518 = memref.load %arg2[%517] : memref<180xf32, #tpu.memory_space<smem>>
    %519 = vector.broadcast %518 : f32 to vector<12x12xf32>
    %520 = arith.mulf %519, %501 : vector<12x12xf32>
    %521 = arith.addf %492, %520 : vector<12x12xf32>
    %c135_i32_156 = arith.constant 135 : i32
    %522 = arith.addi %c135_i32_156, %503 : i32
    %523 = arith.index_cast %522 : i32 to index
    %524 = memref.load %arg2[%523] : memref<180xf32, #tpu.memory_space<smem>>
    %525 = vector.broadcast %524 : f32 to vector<12x12xf32>
    %526 = arith.mulf %525, %501 : vector<12x12xf32>
    %527 = arith.addf %498, %526 : vector<12x12xf32>
    %c2_i32_157 = arith.constant 2 : i32
    %c9_i32_158 = arith.constant 9 : i32
    %528 = arith.muli %c2_i32_157, %c9_i32_158 : i32
    %c0_159 = arith.constant 0 : index
    %529 = arith.index_cast %c2_i32_157 : i32 to index
    %c0_160 = arith.constant 0 : index
    %c0_161 = arith.constant 0 : index
    %530 = vector.load %arg1[%c0_159, %529, %c0_160, %c0_161] : memref<1x5x14x14xf32, #tpu.memory_space<vmem>>, vector<1x1x12x12xf32>
    %531 = vector.shape_cast %530 : vector<1x1x12x12xf32> to vector<12x12xf32>
    %c0_i32_162 = arith.constant 0 : i32
    %532 = arith.addi %528, %c0_i32_162 : i32
    %c0_i32_163 = arith.constant 0 : i32
    %533 = arith.addi %532, %c0_i32_163 : i32
    %c0_i32_164 = arith.constant 0 : i32
    %534 = arith.addi %c0_i32_164, %533 : i32
    %535 = arith.index_cast %534 : i32 to index
    %536 = memref.load %arg2[%535] : memref<180xf32, #tpu.memory_space<smem>>
    %537 = vector.broadcast %536 : f32 to vector<12x12xf32>
    %538 = arith.mulf %537, %531 : vector<12x12xf32>
    %539 = arith.addf %509, %538 : vector<12x12xf32>
    %c45_i32_165 = arith.constant 45 : i32
    %540 = arith.addi %c45_i32_165, %533 : i32
    %541 = arith.index_cast %540 : i32 to index
    %542 = memref.load %arg2[%541] : memref<180xf32, #tpu.memory_space<smem>>
    %543 = vector.broadcast %542 : f32 to vector<12x12xf32>
    %544 = arith.mulf %543, %531 : vector<12x12xf32>
    %545 = arith.addf %515, %544 : vector<12x12xf32>
    %c90_i32_166 = arith.constant 90 : i32
    %546 = arith.addi %c90_i32_166, %533 : i32
    %547 = arith.index_cast %546 : i32 to index
    %548 = memref.load %arg2[%547] : memref<180xf32, #tpu.memory_space<smem>>
    %549 = vector.broadcast %548 : f32 to vector<12x12xf32>
    %550 = arith.mulf %549, %531 : vector<12x12xf32>
    %551 = arith.addf %521, %550 : vector<12x12xf32>
    %c135_i32_167 = arith.constant 135 : i32
    %552 = arith.addi %c135_i32_167, %533 : i32
    %553 = arith.index_cast %552 : i32 to index
    %554 = memref.load %arg2[%553] : memref<180xf32, #tpu.memory_space<smem>>
    %555 = vector.broadcast %554 : f32 to vector<12x12xf32>
    %556 = arith.mulf %555, %531 : vector<12x12xf32>
    %557 = arith.addf %527, %556 : vector<12x12xf32>
    %c0_168 = arith.constant 0 : index
    %558 = arith.index_cast %c2_i32_157 : i32 to index
    %c0_169 = arith.constant 0 : index
    %c1_170 = arith.constant 1 : index
    %559 = vector.load %arg1[%c0_168, %558, %c0_169, %c1_170] : memref<1x5x14x14xf32, #tpu.memory_space<vmem>>, vector<1x1x12x12xf32>
    %560 = vector.shape_cast %559 : vector<1x1x12x12xf32> to vector<12x12xf32>
    %c0_i32_171 = arith.constant 0 : i32
    %561 = arith.addi %528, %c0_i32_171 : i32
    %c1_i32_172 = arith.constant 1 : i32
    %562 = arith.addi %561, %c1_i32_172 : i32
    %c0_i32_173 = arith.constant 0 : i32
    %563 = arith.addi %c0_i32_173, %562 : i32
    %564 = arith.index_cast %563 : i32 to index
    %565 = memref.load %arg2[%564] : memref<180xf32, #tpu.memory_space<smem>>
    %566 = vector.broadcast %565 : f32 to vector<12x12xf32>
    %567 = arith.mulf %566, %560 : vector<12x12xf32>
    %568 = arith.addf %539, %567 : vector<12x12xf32>
    %c45_i32_174 = arith.constant 45 : i32
    %569 = arith.addi %c45_i32_174, %562 : i32
    %570 = arith.index_cast %569 : i32 to index
    %571 = memref.load %arg2[%570] : memref<180xf32, #tpu.memory_space<smem>>
    %572 = vector.broadcast %571 : f32 to vector<12x12xf32>
    %573 = arith.mulf %572, %560 : vector<12x12xf32>
    %574 = arith.addf %545, %573 : vector<12x12xf32>
    %c90_i32_175 = arith.constant 90 : i32
    %575 = arith.addi %c90_i32_175, %562 : i32
    %576 = arith.index_cast %575 : i32 to index
    %577 = memref.load %arg2[%576] : memref<180xf32, #tpu.memory_space<smem>>
    %578 = vector.broadcast %577 : f32 to vector<12x12xf32>
    %579 = arith.mulf %578, %560 : vector<12x12xf32>
    %580 = arith.addf %551, %579 : vector<12x12xf32>
    %c135_i32_176 = arith.constant 135 : i32
    %581 = arith.addi %c135_i32_176, %562 : i32
    %582 = arith.index_cast %581 : i32 to index
    %583 = memref.load %arg2[%582] : memref<180xf32, #tpu.memory_space<smem>>
    %584 = vector.broadcast %583 : f32 to vector<12x12xf32>
    %585 = arith.mulf %584, %560 : vector<12x12xf32>
    %586 = arith.addf %557, %585 : vector<12x12xf32>
    %c0_177 = arith.constant 0 : index
    %587 = arith.index_cast %c2_i32_157 : i32 to index
    %c0_178 = arith.constant 0 : index
    %c2_179 = arith.constant 2 : index
    %588 = vector.load %arg1[%c0_177, %587, %c0_178, %c2_179] : memref<1x5x14x14xf32, #tpu.memory_space<vmem>>, vector<1x1x12x12xf32>
    %589 = vector.shape_cast %588 : vector<1x1x12x12xf32> to vector<12x12xf32>
    %c0_i32_180 = arith.constant 0 : i32
    %590 = arith.addi %528, %c0_i32_180 : i32
    %c2_i32_181 = arith.constant 2 : i32
    %591 = arith.addi %590, %c2_i32_181 : i32
    %c0_i32_182 = arith.constant 0 : i32
    %592 = arith.addi %c0_i32_182, %591 : i32
    %593 = arith.index_cast %592 : i32 to index
    %594 = memref.load %arg2[%593] : memref<180xf32, #tpu.memory_space<smem>>
    %595 = vector.broadcast %594 : f32 to vector<12x12xf32>
    %596 = arith.mulf %595, %589 : vector<12x12xf32>
    %597 = arith.addf %568, %596 : vector<12x12xf32>
    %c45_i32_183 = arith.constant 45 : i32
    %598 = arith.addi %c45_i32_183, %591 : i32
    %599 = arith.index_cast %598 : i32 to index
    %600 = memref.load %arg2[%599] : memref<180xf32, #tpu.memory_space<smem>>
    %601 = vector.broadcast %600 : f32 to vector<12x12xf32>
    %602 = arith.mulf %601, %589 : vector<12x12xf32>
    %603 = arith.addf %574, %602 : vector<12x12xf32>
    %c90_i32_184 = arith.constant 90 : i32
    %604 = arith.addi %c90_i32_184, %591 : i32
    %605 = arith.index_cast %604 : i32 to index
    %606 = memref.load %arg2[%605] : memref<180xf32, #tpu.memory_space<smem>>
    %607 = vector.broadcast %606 : f32 to vector<12x12xf32>
    %608 = arith.mulf %607, %589 : vector<12x12xf32>
    %609 = arith.addf %580, %608 : vector<12x12xf32>
    %c135_i32_185 = arith.constant 135 : i32
    %610 = arith.addi %c135_i32_185, %591 : i32
    %611 = arith.index_cast %610 : i32 to index
    %612 = memref.load %arg2[%611] : memref<180xf32, #tpu.memory_space<smem>>
    %613 = vector.broadcast %612 : f32 to vector<12x12xf32>
    %614 = arith.mulf %613, %589 : vector<12x12xf32>
    %615 = arith.addf %586, %614 : vector<12x12xf32>
    %c0_186 = arith.constant 0 : index
    %616 = arith.index_cast %c2_i32_157 : i32 to index
    %c1_187 = arith.constant 1 : index
    %c0_188 = arith.constant 0 : index
    %617 = vector.load %arg1[%c0_186, %616, %c1_187, %c0_188] : memref<1x5x14x14xf32, #tpu.memory_space<vmem>>, vector<1x1x12x12xf32>
    %618 = vector.shape_cast %617 : vector<1x1x12x12xf32> to vector<12x12xf32>
    %c3_i32_189 = arith.constant 3 : i32
    %619 = arith.addi %528, %c3_i32_189 : i32
    %c0_i32_190 = arith.constant 0 : i32
    %620 = arith.addi %619, %c0_i32_190 : i32
    %c0_i32_191 = arith.constant 0 : i32
    %621 = arith.addi %c0_i32_191, %620 : i32
    %622 = arith.index_cast %621 : i32 to index
    %623 = memref.load %arg2[%622] : memref<180xf32, #tpu.memory_space<smem>>
    %624 = vector.broadcast %623 : f32 to vector<12x12xf32>
    %625 = arith.mulf %624, %618 : vector<12x12xf32>
    %626 = arith.addf %597, %625 : vector<12x12xf32>
    %c45_i32_192 = arith.constant 45 : i32
    %627 = arith.addi %c45_i32_192, %620 : i32
    %628 = arith.index_cast %627 : i32 to index
    %629 = memref.load %arg2[%628] : memref<180xf32, #tpu.memory_space<smem>>
    %630 = vector.broadcast %629 : f32 to vector<12x12xf32>
    %631 = arith.mulf %630, %618 : vector<12x12xf32>
    %632 = arith.addf %603, %631 : vector<12x12xf32>
    %c90_i32_193 = arith.constant 90 : i32
    %633 = arith.addi %c90_i32_193, %620 : i32
    %634 = arith.index_cast %633 : i32 to index
    %635 = memref.load %arg2[%634] : memref<180xf32, #tpu.memory_space<smem>>
    %636 = vector.broadcast %635 : f32 to vector<12x12xf32>
    %637 = arith.mulf %636, %618 : vector<12x12xf32>
    %638 = arith.addf %609, %637 : vector<12x12xf32>
    %c135_i32_194 = arith.constant 135 : i32
    %639 = arith.addi %c135_i32_194, %620 : i32
    %640 = arith.index_cast %639 : i32 to index
    %641 = memref.load %arg2[%640] : memref<180xf32, #tpu.memory_space<smem>>
    %642 = vector.broadcast %641 : f32 to vector<12x12xf32>
    %643 = arith.mulf %642, %618 : vector<12x12xf32>
    %644 = arith.addf %615, %643 : vector<12x12xf32>
    %c0_195 = arith.constant 0 : index
    %645 = arith.index_cast %c2_i32_157 : i32 to index
    %c1_196 = arith.constant 1 : index
    %c1_197 = arith.constant 1 : index
    %646 = vector.load %arg1[%c0_195, %645, %c1_196, %c1_197] : memref<1x5x14x14xf32, #tpu.memory_space<vmem>>, vector<1x1x12x12xf32>
    %647 = vector.shape_cast %646 : vector<1x1x12x12xf32> to vector<12x12xf32>
    %c3_i32_198 = arith.constant 3 : i32
    %648 = arith.addi %528, %c3_i32_198 : i32
    %c1_i32_199 = arith.constant 1 : i32
    %649 = arith.addi %648, %c1_i32_199 : i32
    %c0_i32_200 = arith.constant 0 : i32
    %650 = arith.addi %c0_i32_200, %649 : i32
    %651 = arith.index_cast %650 : i32 to index
    %652 = memref.load %arg2[%651] : memref<180xf32, #tpu.memory_space<smem>>
    %653 = vector.broadcast %652 : f32 to vector<12x12xf32>
    %654 = arith.mulf %653, %647 : vector<12x12xf32>
    %655 = arith.addf %626, %654 : vector<12x12xf32>
    %c45_i32_201 = arith.constant 45 : i32
    %656 = arith.addi %c45_i32_201, %649 : i32
    %657 = arith.index_cast %656 : i32 to index
    %658 = memref.load %arg2[%657] : memref<180xf32, #tpu.memory_space<smem>>
    %659 = vector.broadcast %658 : f32 to vector<12x12xf32>
    %660 = arith.mulf %659, %647 : vector<12x12xf32>
    %661 = arith.addf %632, %660 : vector<12x12xf32>
    %c90_i32_202 = arith.constant 90 : i32
    %662 = arith.addi %c90_i32_202, %649 : i32
    %663 = arith.index_cast %662 : i32 to index
    %664 = memref.load %arg2[%663] : memref<180xf32, #tpu.memory_space<smem>>
    %665 = vector.broadcast %664 : f32 to vector<12x12xf32>
    %666 = arith.mulf %665, %647 : vector<12x12xf32>
    %667 = arith.addf %638, %666 : vector<12x12xf32>
    %c135_i32_203 = arith.constant 135 : i32
    %668 = arith.addi %c135_i32_203, %649 : i32
    %669 = arith.index_cast %668 : i32 to index
    %670 = memref.load %arg2[%669] : memref<180xf32, #tpu.memory_space<smem>>
    %671 = vector.broadcast %670 : f32 to vector<12x12xf32>
    %672 = arith.mulf %671, %647 : vector<12x12xf32>
    %673 = arith.addf %644, %672 : vector<12x12xf32>
    %c0_204 = arith.constant 0 : index
    %674 = arith.index_cast %c2_i32_157 : i32 to index
    %c1_205 = arith.constant 1 : index
    %c2_206 = arith.constant 2 : index
    %675 = vector.load %arg1[%c0_204, %674, %c1_205, %c2_206] : memref<1x5x14x14xf32, #tpu.memory_space<vmem>>, vector<1x1x12x12xf32>
    %676 = vector.shape_cast %675 : vector<1x1x12x12xf32> to vector<12x12xf32>
    %c3_i32_207 = arith.constant 3 : i32
    %677 = arith.addi %528, %c3_i32_207 : i32
    %c2_i32_208 = arith.constant 2 : i32
    %678 = arith.addi %677, %c2_i32_208 : i32
    %c0_i32_209 = arith.constant 0 : i32
    %679 = arith.addi %c0_i32_209, %678 : i32
    %680 = arith.index_cast %679 : i32 to index
    %681 = memref.load %arg2[%680] : memref<180xf32, #tpu.memory_space<smem>>
    %682 = vector.broadcast %681 : f32 to vector<12x12xf32>
    %683 = arith.mulf %682, %676 : vector<12x12xf32>
    %684 = arith.addf %655, %683 : vector<12x12xf32>
    %c45_i32_210 = arith.constant 45 : i32
    %685 = arith.addi %c45_i32_210, %678 : i32
    %686 = arith.index_cast %685 : i32 to index
    %687 = memref.load %arg2[%686] : memref<180xf32, #tpu.memory_space<smem>>
    %688 = vector.broadcast %687 : f32 to vector<12x12xf32>
    %689 = arith.mulf %688, %676 : vector<12x12xf32>
    %690 = arith.addf %661, %689 : vector<12x12xf32>
    %c90_i32_211 = arith.constant 90 : i32
    %691 = arith.addi %c90_i32_211, %678 : i32
    %692 = arith.index_cast %691 : i32 to index
    %693 = memref.load %arg2[%692] : memref<180xf32, #tpu.memory_space<smem>>
    %694 = vector.broadcast %693 : f32 to vector<12x12xf32>
    %695 = arith.mulf %694, %676 : vector<12x12xf32>
    %696 = arith.addf %667, %695 : vector<12x12xf32>
    %c135_i32_212 = arith.constant 135 : i32
    %697 = arith.addi %c135_i32_212, %678 : i32
    %698 = arith.index_cast %697 : i32 to index
    %699 = memref.load %arg2[%698] : memref<180xf32, #tpu.memory_space<smem>>
    %700 = vector.broadcast %699 : f32 to vector<12x12xf32>
    %701 = arith.mulf %700, %676 : vector<12x12xf32>
    %702 = arith.addf %673, %701 : vector<12x12xf32>
    %c0_213 = arith.constant 0 : index
    %703 = arith.index_cast %c2_i32_157 : i32 to index
    %c2_214 = arith.constant 2 : index
    %c0_215 = arith.constant 0 : index
    %704 = vector.load %arg1[%c0_213, %703, %c2_214, %c0_215] : memref<1x5x14x14xf32, #tpu.memory_space<vmem>>, vector<1x1x12x12xf32>
    %705 = vector.shape_cast %704 : vector<1x1x12x12xf32> to vector<12x12xf32>
    %c6_i32_216 = arith.constant 6 : i32
    %706 = arith.addi %528, %c6_i32_216 : i32
    %c0_i32_217 = arith.constant 0 : i32
    %707 = arith.addi %706, %c0_i32_217 : i32
    %c0_i32_218 = arith.constant 0 : i32
    %708 = arith.addi %c0_i32_218, %707 : i32
    %709 = arith.index_cast %708 : i32 to index
    %710 = memref.load %arg2[%709] : memref<180xf32, #tpu.memory_space<smem>>
    %711 = vector.broadcast %710 : f32 to vector<12x12xf32>
    %712 = arith.mulf %711, %705 : vector<12x12xf32>
    %713 = arith.addf %684, %712 : vector<12x12xf32>
    %c45_i32_219 = arith.constant 45 : i32
    %714 = arith.addi %c45_i32_219, %707 : i32
    %715 = arith.index_cast %714 : i32 to index
    %716 = memref.load %arg2[%715] : memref<180xf32, #tpu.memory_space<smem>>
    %717 = vector.broadcast %716 : f32 to vector<12x12xf32>
    %718 = arith.mulf %717, %705 : vector<12x12xf32>
    %719 = arith.addf %690, %718 : vector<12x12xf32>
    %c90_i32_220 = arith.constant 90 : i32
    %720 = arith.addi %c90_i32_220, %707 : i32
    %721 = arith.index_cast %720 : i32 to index
    %722 = memref.load %arg2[%721] : memref<180xf32, #tpu.memory_space<smem>>
    %723 = vector.broadcast %722 : f32 to vector<12x12xf32>
    %724 = arith.mulf %723, %705 : vector<12x12xf32>
    %725 = arith.addf %696, %724 : vector<12x12xf32>
    %c135_i32_221 = arith.constant 135 : i32
    %726 = arith.addi %c135_i32_221, %707 : i32
    %727 = arith.index_cast %726 : i32 to index
    %728 = memref.load %arg2[%727] : memref<180xf32, #tpu.memory_space<smem>>
    %729 = vector.broadcast %728 : f32 to vector<12x12xf32>
    %730 = arith.mulf %729, %705 : vector<12x12xf32>
    %731 = arith.addf %702, %730 : vector<12x12xf32>
    %c0_222 = arith.constant 0 : index
    %732 = arith.index_cast %c2_i32_157 : i32 to index
    %c2_223 = arith.constant 2 : index
    %c1_224 = arith.constant 1 : index
    %733 = vector.load %arg1[%c0_222, %732, %c2_223, %c1_224] : memref<1x5x14x14xf32, #tpu.memory_space<vmem>>, vector<1x1x12x12xf32>
    %734 = vector.shape_cast %733 : vector<1x1x12x12xf32> to vector<12x12xf32>
    %c6_i32_225 = arith.constant 6 : i32
    %735 = arith.addi %528, %c6_i32_225 : i32
    %c1_i32_226 = arith.constant 1 : i32
    %736 = arith.addi %735, %c1_i32_226 : i32
    %c0_i32_227 = arith.constant 0 : i32
    %737 = arith.addi %c0_i32_227, %736 : i32
    %738 = arith.index_cast %737 : i32 to index
    %739 = memref.load %arg2[%738] : memref<180xf32, #tpu.memory_space<smem>>
    %740 = vector.broadcast %739 : f32 to vector<12x12xf32>
    %741 = arith.mulf %740, %734 : vector<12x12xf32>
    %742 = arith.addf %713, %741 : vector<12x12xf32>
    %c45_i32_228 = arith.constant 45 : i32
    %743 = arith.addi %c45_i32_228, %736 : i32
    %744 = arith.index_cast %743 : i32 to index
    %745 = memref.load %arg2[%744] : memref<180xf32, #tpu.memory_space<smem>>
    %746 = vector.broadcast %745 : f32 to vector<12x12xf32>
    %747 = arith.mulf %746, %734 : vector<12x12xf32>
    %748 = arith.addf %719, %747 : vector<12x12xf32>
    %c90_i32_229 = arith.constant 90 : i32
    %749 = arith.addi %c90_i32_229, %736 : i32
    %750 = arith.index_cast %749 : i32 to index
    %751 = memref.load %arg2[%750] : memref<180xf32, #tpu.memory_space<smem>>
    %752 = vector.broadcast %751 : f32 to vector<12x12xf32>
    %753 = arith.mulf %752, %734 : vector<12x12xf32>
    %754 = arith.addf %725, %753 : vector<12x12xf32>
    %c135_i32_230 = arith.constant 135 : i32
    %755 = arith.addi %c135_i32_230, %736 : i32
    %756 = arith.index_cast %755 : i32 to index
    %757 = memref.load %arg2[%756] : memref<180xf32, #tpu.memory_space<smem>>
    %758 = vector.broadcast %757 : f32 to vector<12x12xf32>
    %759 = arith.mulf %758, %734 : vector<12x12xf32>
    %760 = arith.addf %731, %759 : vector<12x12xf32>
    %c0_231 = arith.constant 0 : index
    %761 = arith.index_cast %c2_i32_157 : i32 to index
    %c2_232 = arith.constant 2 : index
    %c2_233 = arith.constant 2 : index
    %762 = vector.load %arg1[%c0_231, %761, %c2_232, %c2_233] : memref<1x5x14x14xf32, #tpu.memory_space<vmem>>, vector<1x1x12x12xf32>
    %763 = vector.shape_cast %762 : vector<1x1x12x12xf32> to vector<12x12xf32>
    %c6_i32_234 = arith.constant 6 : i32
    %764 = arith.addi %528, %c6_i32_234 : i32
    %c2_i32_235 = arith.constant 2 : i32
    %765 = arith.addi %764, %c2_i32_235 : i32
    %c0_i32_236 = arith.constant 0 : i32
    %766 = arith.addi %c0_i32_236, %765 : i32
    %767 = arith.index_cast %766 : i32 to index
    %768 = memref.load %arg2[%767] : memref<180xf32, #tpu.memory_space<smem>>
    %769 = vector.broadcast %768 : f32 to vector<12x12xf32>
    %770 = arith.mulf %769, %763 : vector<12x12xf32>
    %771 = arith.addf %742, %770 : vector<12x12xf32>
    %c45_i32_237 = arith.constant 45 : i32
    %772 = arith.addi %c45_i32_237, %765 : i32
    %773 = arith.index_cast %772 : i32 to index
    %774 = memref.load %arg2[%773] : memref<180xf32, #tpu.memory_space<smem>>
    %775 = vector.broadcast %774 : f32 to vector<12x12xf32>
    %776 = arith.mulf %775, %763 : vector<12x12xf32>
    %777 = arith.addf %748, %776 : vector<12x12xf32>
    %c90_i32_238 = arith.constant 90 : i32
    %778 = arith.addi %c90_i32_238, %765 : i32
    %779 = arith.index_cast %778 : i32 to index
    %780 = memref.load %arg2[%779] : memref<180xf32, #tpu.memory_space<smem>>
    %781 = vector.broadcast %780 : f32 to vector<12x12xf32>
    %782 = arith.mulf %781, %763 : vector<12x12xf32>
    %783 = arith.addf %754, %782 : vector<12x12xf32>
    %c135_i32_239 = arith.constant 135 : i32
    %784 = arith.addi %c135_i32_239, %765 : i32
    %785 = arith.index_cast %784 : i32 to index
    %786 = memref.load %arg2[%785] : memref<180xf32, #tpu.memory_space<smem>>
    %787 = vector.broadcast %786 : f32 to vector<12x12xf32>
    %788 = arith.mulf %787, %763 : vector<12x12xf32>
    %789 = arith.addf %760, %788 : vector<12x12xf32>
    %c3_i32_240 = arith.constant 3 : i32
    %c9_i32_241 = arith.constant 9 : i32
    %790 = arith.muli %c3_i32_240, %c9_i32_241 : i32
    %c0_242 = arith.constant 0 : index
    %791 = arith.index_cast %c3_i32_240 : i32 to index
    %c0_243 = arith.constant 0 : index
    %c0_244 = arith.constant 0 : index
    %792 = vector.load %arg1[%c0_242, %791, %c0_243, %c0_244] : memref<1x5x14x14xf32, #tpu.memory_space<vmem>>, vector<1x1x12x12xf32>
    %793 = vector.shape_cast %792 : vector<1x1x12x12xf32> to vector<12x12xf32>
    %c0_i32_245 = arith.constant 0 : i32
    %794 = arith.addi %790, %c0_i32_245 : i32
    %c0_i32_246 = arith.constant 0 : i32
    %795 = arith.addi %794, %c0_i32_246 : i32
    %c0_i32_247 = arith.constant 0 : i32
    %796 = arith.addi %c0_i32_247, %795 : i32
    %797 = arith.index_cast %796 : i32 to index
    %798 = memref.load %arg2[%797] : memref<180xf32, #tpu.memory_space<smem>>
    %799 = vector.broadcast %798 : f32 to vector<12x12xf32>
    %800 = arith.mulf %799, %793 : vector<12x12xf32>
    %801 = arith.addf %771, %800 : vector<12x12xf32>
    %c45_i32_248 = arith.constant 45 : i32
    %802 = arith.addi %c45_i32_248, %795 : i32
    %803 = arith.index_cast %802 : i32 to index
    %804 = memref.load %arg2[%803] : memref<180xf32, #tpu.memory_space<smem>>
    %805 = vector.broadcast %804 : f32 to vector<12x12xf32>
    %806 = arith.mulf %805, %793 : vector<12x12xf32>
    %807 = arith.addf %777, %806 : vector<12x12xf32>
    %c90_i32_249 = arith.constant 90 : i32
    %808 = arith.addi %c90_i32_249, %795 : i32
    %809 = arith.index_cast %808 : i32 to index
    %810 = memref.load %arg2[%809] : memref<180xf32, #tpu.memory_space<smem>>
    %811 = vector.broadcast %810 : f32 to vector<12x12xf32>
    %812 = arith.mulf %811, %793 : vector<12x12xf32>
    %813 = arith.addf %783, %812 : vector<12x12xf32>
    %c135_i32_250 = arith.constant 135 : i32
    %814 = arith.addi %c135_i32_250, %795 : i32
    %815 = arith.index_cast %814 : i32 to index
    %816 = memref.load %arg2[%815] : memref<180xf32, #tpu.memory_space<smem>>
    %817 = vector.broadcast %816 : f32 to vector<12x12xf32>
    %818 = arith.mulf %817, %793 : vector<12x12xf32>
    %819 = arith.addf %789, %818 : vector<12x12xf32>
    %c0_251 = arith.constant 0 : index
    %820 = arith.index_cast %c3_i32_240 : i32 to index
    %c0_252 = arith.constant 0 : index
    %c1_253 = arith.constant 1 : index
    %821 = vector.load %arg1[%c0_251, %820, %c0_252, %c1_253] : memref<1x5x14x14xf32, #tpu.memory_space<vmem>>, vector<1x1x12x12xf32>
    %822 = vector.shape_cast %821 : vector<1x1x12x12xf32> to vector<12x12xf32>
    %c0_i32_254 = arith.constant 0 : i32
    %823 = arith.addi %790, %c0_i32_254 : i32
    %c1_i32_255 = arith.constant 1 : i32
    %824 = arith.addi %823, %c1_i32_255 : i32
    %c0_i32_256 = arith.constant 0 : i32
    %825 = arith.addi %c0_i32_256, %824 : i32
    %826 = arith.index_cast %825 : i32 to index
    %827 = memref.load %arg2[%826] : memref<180xf32, #tpu.memory_space<smem>>
    %828 = vector.broadcast %827 : f32 to vector<12x12xf32>
    %829 = arith.mulf %828, %822 : vector<12x12xf32>
    %830 = arith.addf %801, %829 : vector<12x12xf32>
    %c45_i32_257 = arith.constant 45 : i32
    %831 = arith.addi %c45_i32_257, %824 : i32
    %832 = arith.index_cast %831 : i32 to index
    %833 = memref.load %arg2[%832] : memref<180xf32, #tpu.memory_space<smem>>
    %834 = vector.broadcast %833 : f32 to vector<12x12xf32>
    %835 = arith.mulf %834, %822 : vector<12x12xf32>
    %836 = arith.addf %807, %835 : vector<12x12xf32>
    %c90_i32_258 = arith.constant 90 : i32
    %837 = arith.addi %c90_i32_258, %824 : i32
    %838 = arith.index_cast %837 : i32 to index
    %839 = memref.load %arg2[%838] : memref<180xf32, #tpu.memory_space<smem>>
    %840 = vector.broadcast %839 : f32 to vector<12x12xf32>
    %841 = arith.mulf %840, %822 : vector<12x12xf32>
    %842 = arith.addf %813, %841 : vector<12x12xf32>
    %c135_i32_259 = arith.constant 135 : i32
    %843 = arith.addi %c135_i32_259, %824 : i32
    %844 = arith.index_cast %843 : i32 to index
    %845 = memref.load %arg2[%844] : memref<180xf32, #tpu.memory_space<smem>>
    %846 = vector.broadcast %845 : f32 to vector<12x12xf32>
    %847 = arith.mulf %846, %822 : vector<12x12xf32>
    %848 = arith.addf %819, %847 : vector<12x12xf32>
    %c0_260 = arith.constant 0 : index
    %849 = arith.index_cast %c3_i32_240 : i32 to index
    %c0_261 = arith.constant 0 : index
    %c2_262 = arith.constant 2 : index
    %850 = vector.load %arg1[%c0_260, %849, %c0_261, %c2_262] : memref<1x5x14x14xf32, #tpu.memory_space<vmem>>, vector<1x1x12x12xf32>
    %851 = vector.shape_cast %850 : vector<1x1x12x12xf32> to vector<12x12xf32>
    %c0_i32_263 = arith.constant 0 : i32
    %852 = arith.addi %790, %c0_i32_263 : i32
    %c2_i32_264 = arith.constant 2 : i32
    %853 = arith.addi %852, %c2_i32_264 : i32
    %c0_i32_265 = arith.constant 0 : i32
    %854 = arith.addi %c0_i32_265, %853 : i32
    %855 = arith.index_cast %854 : i32 to index
    %856 = memref.load %arg2[%855] : memref<180xf32, #tpu.memory_space<smem>>
    %857 = vector.broadcast %856 : f32 to vector<12x12xf32>
    %858 = arith.mulf %857, %851 : vector<12x12xf32>
    %859 = arith.addf %830, %858 : vector<12x12xf32>
    %c45_i32_266 = arith.constant 45 : i32
    %860 = arith.addi %c45_i32_266, %853 : i32
    %861 = arith.index_cast %860 : i32 to index
    %862 = memref.load %arg2[%861] : memref<180xf32, #tpu.memory_space<smem>>
    %863 = vector.broadcast %862 : f32 to vector<12x12xf32>
    %864 = arith.mulf %863, %851 : vector<12x12xf32>
    %865 = arith.addf %836, %864 : vector<12x12xf32>
    %c90_i32_267 = arith.constant 90 : i32
    %866 = arith.addi %c90_i32_267, %853 : i32
    %867 = arith.index_cast %866 : i32 to index
    %868 = memref.load %arg2[%867] : memref<180xf32, #tpu.memory_space<smem>>
    %869 = vector.broadcast %868 : f32 to vector<12x12xf32>
    %870 = arith.mulf %869, %851 : vector<12x12xf32>
    %871 = arith.addf %842, %870 : vector<12x12xf32>
    %c135_i32_268 = arith.constant 135 : i32
    %872 = arith.addi %c135_i32_268, %853 : i32
    %873 = arith.index_cast %872 : i32 to index
    %874 = memref.load %arg2[%873] : memref<180xf32, #tpu.memory_space<smem>>
    %875 = vector.broadcast %874 : f32 to vector<12x12xf32>
    %876 = arith.mulf %875, %851 : vector<12x12xf32>
    %877 = arith.addf %848, %876 : vector<12x12xf32>
    %c0_269 = arith.constant 0 : index
    %878 = arith.index_cast %c3_i32_240 : i32 to index
    %c1_270 = arith.constant 1 : index
    %c0_271 = arith.constant 0 : index
    %879 = vector.load %arg1[%c0_269, %878, %c1_270, %c0_271] : memref<1x5x14x14xf32, #tpu.memory_space<vmem>>, vector<1x1x12x12xf32>
    %880 = vector.shape_cast %879 : vector<1x1x12x12xf32> to vector<12x12xf32>
    %c3_i32_272 = arith.constant 3 : i32
    %881 = arith.addi %790, %c3_i32_272 : i32
    %c0_i32_273 = arith.constant 0 : i32
    %882 = arith.addi %881, %c0_i32_273 : i32
    %c0_i32_274 = arith.constant 0 : i32
    %883 = arith.addi %c0_i32_274, %882 : i32
    %884 = arith.index_cast %883 : i32 to index
    %885 = memref.load %arg2[%884] : memref<180xf32, #tpu.memory_space<smem>>
    %886 = vector.broadcast %885 : f32 to vector<12x12xf32>
    %887 = arith.mulf %886, %880 : vector<12x12xf32>
    %888 = arith.addf %859, %887 : vector<12x12xf32>
    %c45_i32_275 = arith.constant 45 : i32
    %889 = arith.addi %c45_i32_275, %882 : i32
    %890 = arith.index_cast %889 : i32 to index
    %891 = memref.load %arg2[%890] : memref<180xf32, #tpu.memory_space<smem>>
    %892 = vector.broadcast %891 : f32 to vector<12x12xf32>
    %893 = arith.mulf %892, %880 : vector<12x12xf32>
    %894 = arith.addf %865, %893 : vector<12x12xf32>
    %c90_i32_276 = arith.constant 90 : i32
    %895 = arith.addi %c90_i32_276, %882 : i32
    %896 = arith.index_cast %895 : i32 to index
    %897 = memref.load %arg2[%896] : memref<180xf32, #tpu.memory_space<smem>>
    %898 = vector.broadcast %897 : f32 to vector<12x12xf32>
    %899 = arith.mulf %898, %880 : vector<12x12xf32>
    %900 = arith.addf %871, %899 : vector<12x12xf32>
    %c135_i32_277 = arith.constant 135 : i32
    %901 = arith.addi %c135_i32_277, %882 : i32
    %902 = arith.index_cast %901 : i32 to index
    %903 = memref.load %arg2[%902] : memref<180xf32, #tpu.memory_space<smem>>
    %904 = vector.broadcast %903 : f32 to vector<12x12xf32>
    %905 = arith.mulf %904, %880 : vector<12x12xf32>
    %906 = arith.addf %877, %905 : vector<12x12xf32>
    %c0_278 = arith.constant 0 : index
    %907 = arith.index_cast %c3_i32_240 : i32 to index
    %c1_279 = arith.constant 1 : index
    %c1_280 = arith.constant 1 : index
    %908 = vector.load %arg1[%c0_278, %907, %c1_279, %c1_280] : memref<1x5x14x14xf32, #tpu.memory_space<vmem>>, vector<1x1x12x12xf32>
    %909 = vector.shape_cast %908 : vector<1x1x12x12xf32> to vector<12x12xf32>
    %c3_i32_281 = arith.constant 3 : i32
    %910 = arith.addi %790, %c3_i32_281 : i32
    %c1_i32_282 = arith.constant 1 : i32
    %911 = arith.addi %910, %c1_i32_282 : i32
    %c0_i32_283 = arith.constant 0 : i32
    %912 = arith.addi %c0_i32_283, %911 : i32
    %913 = arith.index_cast %912 : i32 to index
    %914 = memref.load %arg2[%913] : memref<180xf32, #tpu.memory_space<smem>>
    %915 = vector.broadcast %914 : f32 to vector<12x12xf32>
    %916 = arith.mulf %915, %909 : vector<12x12xf32>
    %917 = arith.addf %888, %916 : vector<12x12xf32>
    %c45_i32_284 = arith.constant 45 : i32
    %918 = arith.addi %c45_i32_284, %911 : i32
    %919 = arith.index_cast %918 : i32 to index
    %920 = memref.load %arg2[%919] : memref<180xf32, #tpu.memory_space<smem>>
    %921 = vector.broadcast %920 : f32 to vector<12x12xf32>
    %922 = arith.mulf %921, %909 : vector<12x12xf32>
    %923 = arith.addf %894, %922 : vector<12x12xf32>
    %c90_i32_285 = arith.constant 90 : i32
    %924 = arith.addi %c90_i32_285, %911 : i32
    %925 = arith.index_cast %924 : i32 to index
    %926 = memref.load %arg2[%925] : memref<180xf32, #tpu.memory_space<smem>>
    %927 = vector.broadcast %926 : f32 to vector<12x12xf32>
    %928 = arith.mulf %927, %909 : vector<12x12xf32>
    %929 = arith.addf %900, %928 : vector<12x12xf32>
    %c135_i32_286 = arith.constant 135 : i32
    %930 = arith.addi %c135_i32_286, %911 : i32
    %931 = arith.index_cast %930 : i32 to index
    %932 = memref.load %arg2[%931] : memref<180xf32, #tpu.memory_space<smem>>
    %933 = vector.broadcast %932 : f32 to vector<12x12xf32>
    %934 = arith.mulf %933, %909 : vector<12x12xf32>
    %935 = arith.addf %906, %934 : vector<12x12xf32>
    %c0_287 = arith.constant 0 : index
    %936 = arith.index_cast %c3_i32_240 : i32 to index
    %c1_288 = arith.constant 1 : index
    %c2_289 = arith.constant 2 : index
    %937 = vector.load %arg1[%c0_287, %936, %c1_288, %c2_289] : memref<1x5x14x14xf32, #tpu.memory_space<vmem>>, vector<1x1x12x12xf32>
    %938 = vector.shape_cast %937 : vector<1x1x12x12xf32> to vector<12x12xf32>
    %c3_i32_290 = arith.constant 3 : i32
    %939 = arith.addi %790, %c3_i32_290 : i32
    %c2_i32_291 = arith.constant 2 : i32
    %940 = arith.addi %939, %c2_i32_291 : i32
    %c0_i32_292 = arith.constant 0 : i32
    %941 = arith.addi %c0_i32_292, %940 : i32
    %942 = arith.index_cast %941 : i32 to index
    %943 = memref.load %arg2[%942] : memref<180xf32, #tpu.memory_space<smem>>
    %944 = vector.broadcast %943 : f32 to vector<12x12xf32>
    %945 = arith.mulf %944, %938 : vector<12x12xf32>
    %946 = arith.addf %917, %945 : vector<12x12xf32>
    %c45_i32_293 = arith.constant 45 : i32
    %947 = arith.addi %c45_i32_293, %940 : i32
    %948 = arith.index_cast %947 : i32 to index
    %949 = memref.load %arg2[%948] : memref<180xf32, #tpu.memory_space<smem>>
    %950 = vector.broadcast %949 : f32 to vector<12x12xf32>
    %951 = arith.mulf %950, %938 : vector<12x12xf32>
    %952 = arith.addf %923, %951 : vector<12x12xf32>
    %c90_i32_294 = arith.constant 90 : i32
    %953 = arith.addi %c90_i32_294, %940 : i32
    %954 = arith.index_cast %953 : i32 to index
    %955 = memref.load %arg2[%954] : memref<180xf32, #tpu.memory_space<smem>>
    %956 = vector.broadcast %955 : f32 to vector<12x12xf32>
    %957 = arith.mulf %956, %938 : vector<12x12xf32>
    %958 = arith.addf %929, %957 : vector<12x12xf32>
    %c135_i32_295 = arith.constant 135 : i32
    %959 = arith.addi %c135_i32_295, %940 : i32
    %960 = arith.index_cast %959 : i32 to index
    %961 = memref.load %arg2[%960] : memref<180xf32, #tpu.memory_space<smem>>
    %962 = vector.broadcast %961 : f32 to vector<12x12xf32>
    %963 = arith.mulf %962, %938 : vector<12x12xf32>
    %964 = arith.addf %935, %963 : vector<12x12xf32>
    %c0_296 = arith.constant 0 : index
    %965 = arith.index_cast %c3_i32_240 : i32 to index
    %c2_297 = arith.constant 2 : index
    %c0_298 = arith.constant 0 : index
    %966 = vector.load %arg1[%c0_296, %965, %c2_297, %c0_298] : memref<1x5x14x14xf32, #tpu.memory_space<vmem>>, vector<1x1x12x12xf32>
    %967 = vector.shape_cast %966 : vector<1x1x12x12xf32> to vector<12x12xf32>
    %c6_i32_299 = arith.constant 6 : i32
    %968 = arith.addi %790, %c6_i32_299 : i32
    %c0_i32_300 = arith.constant 0 : i32
    %969 = arith.addi %968, %c0_i32_300 : i32
    %c0_i32_301 = arith.constant 0 : i32
    %970 = arith.addi %c0_i32_301, %969 : i32
    %971 = arith.index_cast %970 : i32 to index
    %972 = memref.load %arg2[%971] : memref<180xf32, #tpu.memory_space<smem>>
    %973 = vector.broadcast %972 : f32 to vector<12x12xf32>
    %974 = arith.mulf %973, %967 : vector<12x12xf32>
    %975 = arith.addf %946, %974 : vector<12x12xf32>
    %c45_i32_302 = arith.constant 45 : i32
    %976 = arith.addi %c45_i32_302, %969 : i32
    %977 = arith.index_cast %976 : i32 to index
    %978 = memref.load %arg2[%977] : memref<180xf32, #tpu.memory_space<smem>>
    %979 = vector.broadcast %978 : f32 to vector<12x12xf32>
    %980 = arith.mulf %979, %967 : vector<12x12xf32>
    %981 = arith.addf %952, %980 : vector<12x12xf32>
    %c90_i32_303 = arith.constant 90 : i32
    %982 = arith.addi %c90_i32_303, %969 : i32
    %983 = arith.index_cast %982 : i32 to index
    %984 = memref.load %arg2[%983] : memref<180xf32, #tpu.memory_space<smem>>
    %985 = vector.broadcast %984 : f32 to vector<12x12xf32>
    %986 = arith.mulf %985, %967 : vector<12x12xf32>
    %987 = arith.addf %958, %986 : vector<12x12xf32>
    %c135_i32_304 = arith.constant 135 : i32
    %988 = arith.addi %c135_i32_304, %969 : i32
    %989 = arith.index_cast %988 : i32 to index
    %990 = memref.load %arg2[%989] : memref<180xf32, #tpu.memory_space<smem>>
    %991 = vector.broadcast %990 : f32 to vector<12x12xf32>
    %992 = arith.mulf %991, %967 : vector<12x12xf32>
    %993 = arith.addf %964, %992 : vector<12x12xf32>
    %c0_305 = arith.constant 0 : index
    %994 = arith.index_cast %c3_i32_240 : i32 to index
    %c2_306 = arith.constant 2 : index
    %c1_307 = arith.constant 1 : index
    %995 = vector.load %arg1[%c0_305, %994, %c2_306, %c1_307] : memref<1x5x14x14xf32, #tpu.memory_space<vmem>>, vector<1x1x12x12xf32>
    %996 = vector.shape_cast %995 : vector<1x1x12x12xf32> to vector<12x12xf32>
    %c6_i32_308 = arith.constant 6 : i32
    %997 = arith.addi %790, %c6_i32_308 : i32
    %c1_i32_309 = arith.constant 1 : i32
    %998 = arith.addi %997, %c1_i32_309 : i32
    %c0_i32_310 = arith.constant 0 : i32
    %999 = arith.addi %c0_i32_310, %998 : i32
    %1000 = arith.index_cast %999 : i32 to index
    %1001 = memref.load %arg2[%1000] : memref<180xf32, #tpu.memory_space<smem>>
    %1002 = vector.broadcast %1001 : f32 to vector<12x12xf32>
    %1003 = arith.mulf %1002, %996 : vector<12x12xf32>
    %1004 = arith.addf %975, %1003 : vector<12x12xf32>
    %c45_i32_311 = arith.constant 45 : i32
    %1005 = arith.addi %c45_i32_311, %998 : i32
    %1006 = arith.index_cast %1005 : i32 to index
    %1007 = memref.load %arg2[%1006] : memref<180xf32, #tpu.memory_space<smem>>
    %1008 = vector.broadcast %1007 : f32 to vector<12x12xf32>
    %1009 = arith.mulf %1008, %996 : vector<12x12xf32>
    %1010 = arith.addf %981, %1009 : vector<12x12xf32>
    %c90_i32_312 = arith.constant 90 : i32
    %1011 = arith.addi %c90_i32_312, %998 : i32
    %1012 = arith.index_cast %1011 : i32 to index
    %1013 = memref.load %arg2[%1012] : memref<180xf32, #tpu.memory_space<smem>>
    %1014 = vector.broadcast %1013 : f32 to vector<12x12xf32>
    %1015 = arith.mulf %1014, %996 : vector<12x12xf32>
    %1016 = arith.addf %987, %1015 : vector<12x12xf32>
    %c135_i32_313 = arith.constant 135 : i32
    %1017 = arith.addi %c135_i32_313, %998 : i32
    %1018 = arith.index_cast %1017 : i32 to index
    %1019 = memref.load %arg2[%1018] : memref<180xf32, #tpu.memory_space<smem>>
    %1020 = vector.broadcast %1019 : f32 to vector<12x12xf32>
    %1021 = arith.mulf %1020, %996 : vector<12x12xf32>
    %1022 = arith.addf %993, %1021 : vector<12x12xf32>
    %c0_314 = arith.constant 0 : index
    %1023 = arith.index_cast %c3_i32_240 : i32 to index
    %c2_315 = arith.constant 2 : index
    %c2_316 = arith.constant 2 : index
    %1024 = vector.load %arg1[%c0_314, %1023, %c2_315, %c2_316] : memref<1x5x14x14xf32, #tpu.memory_space<vmem>>, vector<1x1x12x12xf32>
    %1025 = vector.shape_cast %1024 : vector<1x1x12x12xf32> to vector<12x12xf32>
    %c6_i32_317 = arith.constant 6 : i32
    %1026 = arith.addi %790, %c6_i32_317 : i32
    %c2_i32_318 = arith.constant 2 : i32
    %1027 = arith.addi %1026, %c2_i32_318 : i32
    %c0_i32_319 = arith.constant 0 : i32
    %1028 = arith.addi %c0_i32_319, %1027 : i32
    %1029 = arith.index_cast %1028 : i32 to index
    %1030 = memref.load %arg2[%1029] : memref<180xf32, #tpu.memory_space<smem>>
    %1031 = vector.broadcast %1030 : f32 to vector<12x12xf32>
    %1032 = arith.mulf %1031, %1025 : vector<12x12xf32>
    %1033 = arith.addf %1004, %1032 : vector<12x12xf32>
    %c45_i32_320 = arith.constant 45 : i32
    %1034 = arith.addi %c45_i32_320, %1027 : i32
    %1035 = arith.index_cast %1034 : i32 to index
    %1036 = memref.load %arg2[%1035] : memref<180xf32, #tpu.memory_space<smem>>
    %1037 = vector.broadcast %1036 : f32 to vector<12x12xf32>
    %1038 = arith.mulf %1037, %1025 : vector<12x12xf32>
    %1039 = arith.addf %1010, %1038 : vector<12x12xf32>
    %c90_i32_321 = arith.constant 90 : i32
    %1040 = arith.addi %c90_i32_321, %1027 : i32
    %1041 = arith.index_cast %1040 : i32 to index
    %1042 = memref.load %arg2[%1041] : memref<180xf32, #tpu.memory_space<smem>>
    %1043 = vector.broadcast %1042 : f32 to vector<12x12xf32>
    %1044 = arith.mulf %1043, %1025 : vector<12x12xf32>
    %1045 = arith.addf %1016, %1044 : vector<12x12xf32>
    %c135_i32_322 = arith.constant 135 : i32
    %1046 = arith.addi %c135_i32_322, %1027 : i32
    %1047 = arith.index_cast %1046 : i32 to index
    %1048 = memref.load %arg2[%1047] : memref<180xf32, #tpu.memory_space<smem>>
    %1049 = vector.broadcast %1048 : f32 to vector<12x12xf32>
    %1050 = arith.mulf %1049, %1025 : vector<12x12xf32>
    %1051 = arith.addf %1022, %1050 : vector<12x12xf32>
    %c4_i32 = arith.constant 4 : i32
    %c9_i32_323 = arith.constant 9 : i32
    %1052 = arith.muli %c4_i32, %c9_i32_323 : i32
    %c0_324 = arith.constant 0 : index
    %1053 = arith.index_cast %c4_i32 : i32 to index
    %c0_325 = arith.constant 0 : index
    %c0_326 = arith.constant 0 : index
    %1054 = vector.load %arg1[%c0_324, %1053, %c0_325, %c0_326] : memref<1x5x14x14xf32, #tpu.memory_space<vmem>>, vector<1x1x12x12xf32>
    %1055 = vector.shape_cast %1054 : vector<1x1x12x12xf32> to vector<12x12xf32>
    %c0_i32_327 = arith.constant 0 : i32
    %1056 = arith.addi %1052, %c0_i32_327 : i32
    %c0_i32_328 = arith.constant 0 : i32
    %1057 = arith.addi %1056, %c0_i32_328 : i32
    %c0_i32_329 = arith.constant 0 : i32
    %1058 = arith.addi %c0_i32_329, %1057 : i32
    %1059 = arith.index_cast %1058 : i32 to index
    %1060 = memref.load %arg2[%1059] : memref<180xf32, #tpu.memory_space<smem>>
    %1061 = vector.broadcast %1060 : f32 to vector<12x12xf32>
    %1062 = arith.mulf %1061, %1055 : vector<12x12xf32>
    %1063 = arith.addf %1033, %1062 : vector<12x12xf32>
    %c45_i32_330 = arith.constant 45 : i32
    %1064 = arith.addi %c45_i32_330, %1057 : i32
    %1065 = arith.index_cast %1064 : i32 to index
    %1066 = memref.load %arg2[%1065] : memref<180xf32, #tpu.memory_space<smem>>
    %1067 = vector.broadcast %1066 : f32 to vector<12x12xf32>
    %1068 = arith.mulf %1067, %1055 : vector<12x12xf32>
    %1069 = arith.addf %1039, %1068 : vector<12x12xf32>
    %c90_i32_331 = arith.constant 90 : i32
    %1070 = arith.addi %c90_i32_331, %1057 : i32
    %1071 = arith.index_cast %1070 : i32 to index
    %1072 = memref.load %arg2[%1071] : memref<180xf32, #tpu.memory_space<smem>>
    %1073 = vector.broadcast %1072 : f32 to vector<12x12xf32>
    %1074 = arith.mulf %1073, %1055 : vector<12x12xf32>
    %1075 = arith.addf %1045, %1074 : vector<12x12xf32>
    %c135_i32_332 = arith.constant 135 : i32
    %1076 = arith.addi %c135_i32_332, %1057 : i32
    %1077 = arith.index_cast %1076 : i32 to index
    %1078 = memref.load %arg2[%1077] : memref<180xf32, #tpu.memory_space<smem>>
    %1079 = vector.broadcast %1078 : f32 to vector<12x12xf32>
    %1080 = arith.mulf %1079, %1055 : vector<12x12xf32>
    %1081 = arith.addf %1051, %1080 : vector<12x12xf32>
    %c0_333 = arith.constant 0 : index
    %1082 = arith.index_cast %c4_i32 : i32 to index
    %c0_334 = arith.constant 0 : index
    %c1_335 = arith.constant 1 : index
    %1083 = vector.load %arg1[%c0_333, %1082, %c0_334, %c1_335] : memref<1x5x14x14xf32, #tpu.memory_space<vmem>>, vector<1x1x12x12xf32>
    %1084 = vector.shape_cast %1083 : vector<1x1x12x12xf32> to vector<12x12xf32>
    %c0_i32_336 = arith.constant 0 : i32
    %1085 = arith.addi %1052, %c0_i32_336 : i32
    %c1_i32_337 = arith.constant 1 : i32
    %1086 = arith.addi %1085, %c1_i32_337 : i32
    %c0_i32_338 = arith.constant 0 : i32
    %1087 = arith.addi %c0_i32_338, %1086 : i32
    %1088 = arith.index_cast %1087 : i32 to index
    %1089 = memref.load %arg2[%1088] : memref<180xf32, #tpu.memory_space<smem>>
    %1090 = vector.broadcast %1089 : f32 to vector<12x12xf32>
    %1091 = arith.mulf %1090, %1084 : vector<12x12xf32>
    %1092 = arith.addf %1063, %1091 : vector<12x12xf32>
    %c45_i32_339 = arith.constant 45 : i32
    %1093 = arith.addi %c45_i32_339, %1086 : i32
    %1094 = arith.index_cast %1093 : i32 to index
    %1095 = memref.load %arg2[%1094] : memref<180xf32, #tpu.memory_space<smem>>
    %1096 = vector.broadcast %1095 : f32 to vector<12x12xf32>
    %1097 = arith.mulf %1096, %1084 : vector<12x12xf32>
    %1098 = arith.addf %1069, %1097 : vector<12x12xf32>
    %c90_i32_340 = arith.constant 90 : i32
    %1099 = arith.addi %c90_i32_340, %1086 : i32
    %1100 = arith.index_cast %1099 : i32 to index
    %1101 = memref.load %arg2[%1100] : memref<180xf32, #tpu.memory_space<smem>>
    %1102 = vector.broadcast %1101 : f32 to vector<12x12xf32>
    %1103 = arith.mulf %1102, %1084 : vector<12x12xf32>
    %1104 = arith.addf %1075, %1103 : vector<12x12xf32>
    %c135_i32_341 = arith.constant 135 : i32
    %1105 = arith.addi %c135_i32_341, %1086 : i32
    %1106 = arith.index_cast %1105 : i32 to index
    %1107 = memref.load %arg2[%1106] : memref<180xf32, #tpu.memory_space<smem>>
    %1108 = vector.broadcast %1107 : f32 to vector<12x12xf32>
    %1109 = arith.mulf %1108, %1084 : vector<12x12xf32>
    %1110 = arith.addf %1081, %1109 : vector<12x12xf32>
    %c0_342 = arith.constant 0 : index
    %1111 = arith.index_cast %c4_i32 : i32 to index
    %c0_343 = arith.constant 0 : index
    %c2_344 = arith.constant 2 : index
    %1112 = vector.load %arg1[%c0_342, %1111, %c0_343, %c2_344] : memref<1x5x14x14xf32, #tpu.memory_space<vmem>>, vector<1x1x12x12xf32>
    %1113 = vector.shape_cast %1112 : vector<1x1x12x12xf32> to vector<12x12xf32>
    %c0_i32_345 = arith.constant 0 : i32
    %1114 = arith.addi %1052, %c0_i32_345 : i32
    %c2_i32_346 = arith.constant 2 : i32
    %1115 = arith.addi %1114, %c2_i32_346 : i32
    %c0_i32_347 = arith.constant 0 : i32
    %1116 = arith.addi %c0_i32_347, %1115 : i32
    %1117 = arith.index_cast %1116 : i32 to index
    %1118 = memref.load %arg2[%1117] : memref<180xf32, #tpu.memory_space<smem>>
    %1119 = vector.broadcast %1118 : f32 to vector<12x12xf32>
    %1120 = arith.mulf %1119, %1113 : vector<12x12xf32>
    %1121 = arith.addf %1092, %1120 : vector<12x12xf32>
    %c45_i32_348 = arith.constant 45 : i32
    %1122 = arith.addi %c45_i32_348, %1115 : i32
    %1123 = arith.index_cast %1122 : i32 to index
    %1124 = memref.load %arg2[%1123] : memref<180xf32, #tpu.memory_space<smem>>
    %1125 = vector.broadcast %1124 : f32 to vector<12x12xf32>
    %1126 = arith.mulf %1125, %1113 : vector<12x12xf32>
    %1127 = arith.addf %1098, %1126 : vector<12x12xf32>
    %c90_i32_349 = arith.constant 90 : i32
    %1128 = arith.addi %c90_i32_349, %1115 : i32
    %1129 = arith.index_cast %1128 : i32 to index
    %1130 = memref.load %arg2[%1129] : memref<180xf32, #tpu.memory_space<smem>>
    %1131 = vector.broadcast %1130 : f32 to vector<12x12xf32>
    %1132 = arith.mulf %1131, %1113 : vector<12x12xf32>
    %1133 = arith.addf %1104, %1132 : vector<12x12xf32>
    %c135_i32_350 = arith.constant 135 : i32
    %1134 = arith.addi %c135_i32_350, %1115 : i32
    %1135 = arith.index_cast %1134 : i32 to index
    %1136 = memref.load %arg2[%1135] : memref<180xf32, #tpu.memory_space<smem>>
    %1137 = vector.broadcast %1136 : f32 to vector<12x12xf32>
    %1138 = arith.mulf %1137, %1113 : vector<12x12xf32>
    %1139 = arith.addf %1110, %1138 : vector<12x12xf32>
    %c0_351 = arith.constant 0 : index
    %1140 = arith.index_cast %c4_i32 : i32 to index
    %c1_352 = arith.constant 1 : index
    %c0_353 = arith.constant 0 : index
    %1141 = vector.load %arg1[%c0_351, %1140, %c1_352, %c0_353] : memref<1x5x14x14xf32, #tpu.memory_space<vmem>>, vector<1x1x12x12xf32>
    %1142 = vector.shape_cast %1141 : vector<1x1x12x12xf32> to vector<12x12xf32>
    %c3_i32_354 = arith.constant 3 : i32
    %1143 = arith.addi %1052, %c3_i32_354 : i32
    %c0_i32_355 = arith.constant 0 : i32
    %1144 = arith.addi %1143, %c0_i32_355 : i32
    %c0_i32_356 = arith.constant 0 : i32
    %1145 = arith.addi %c0_i32_356, %1144 : i32
    %1146 = arith.index_cast %1145 : i32 to index
    %1147 = memref.load %arg2[%1146] : memref<180xf32, #tpu.memory_space<smem>>
    %1148 = vector.broadcast %1147 : f32 to vector<12x12xf32>
    %1149 = arith.mulf %1148, %1142 : vector<12x12xf32>
    %1150 = arith.addf %1121, %1149 : vector<12x12xf32>
    %c45_i32_357 = arith.constant 45 : i32
    %1151 = arith.addi %c45_i32_357, %1144 : i32
    %1152 = arith.index_cast %1151 : i32 to index
    %1153 = memref.load %arg2[%1152] : memref<180xf32, #tpu.memory_space<smem>>
    %1154 = vector.broadcast %1153 : f32 to vector<12x12xf32>
    %1155 = arith.mulf %1154, %1142 : vector<12x12xf32>
    %1156 = arith.addf %1127, %1155 : vector<12x12xf32>
    %c90_i32_358 = arith.constant 90 : i32
    %1157 = arith.addi %c90_i32_358, %1144 : i32
    %1158 = arith.index_cast %1157 : i32 to index
    %1159 = memref.load %arg2[%1158] : memref<180xf32, #tpu.memory_space<smem>>
    %1160 = vector.broadcast %1159 : f32 to vector<12x12xf32>
    %1161 = arith.mulf %1160, %1142 : vector<12x12xf32>
    %1162 = arith.addf %1133, %1161 : vector<12x12xf32>
    %c135_i32_359 = arith.constant 135 : i32
    %1163 = arith.addi %c135_i32_359, %1144 : i32
    %1164 = arith.index_cast %1163 : i32 to index
    %1165 = memref.load %arg2[%1164] : memref<180xf32, #tpu.memory_space<smem>>
    %1166 = vector.broadcast %1165 : f32 to vector<12x12xf32>
    %1167 = arith.mulf %1166, %1142 : vector<12x12xf32>
    %1168 = arith.addf %1139, %1167 : vector<12x12xf32>
    %c0_360 = arith.constant 0 : index
    %1169 = arith.index_cast %c4_i32 : i32 to index
    %c1_361 = arith.constant 1 : index
    %c1_362 = arith.constant 1 : index
    %1170 = vector.load %arg1[%c0_360, %1169, %c1_361, %c1_362] : memref<1x5x14x14xf32, #tpu.memory_space<vmem>>, vector<1x1x12x12xf32>
    %1171 = vector.shape_cast %1170 : vector<1x1x12x12xf32> to vector<12x12xf32>
    %c3_i32_363 = arith.constant 3 : i32
    %1172 = arith.addi %1052, %c3_i32_363 : i32
    %c1_i32_364 = arith.constant 1 : i32
    %1173 = arith.addi %1172, %c1_i32_364 : i32
    %c0_i32_365 = arith.constant 0 : i32
    %1174 = arith.addi %c0_i32_365, %1173 : i32
    %1175 = arith.index_cast %1174 : i32 to index
    %1176 = memref.load %arg2[%1175] : memref<180xf32, #tpu.memory_space<smem>>
    %1177 = vector.broadcast %1176 : f32 to vector<12x12xf32>
    %1178 = arith.mulf %1177, %1171 : vector<12x12xf32>
    %1179 = arith.addf %1150, %1178 : vector<12x12xf32>
    %c45_i32_366 = arith.constant 45 : i32
    %1180 = arith.addi %c45_i32_366, %1173 : i32
    %1181 = arith.index_cast %1180 : i32 to index
    %1182 = memref.load %arg2[%1181] : memref<180xf32, #tpu.memory_space<smem>>
    %1183 = vector.broadcast %1182 : f32 to vector<12x12xf32>
    %1184 = arith.mulf %1183, %1171 : vector<12x12xf32>
    %1185 = arith.addf %1156, %1184 : vector<12x12xf32>
    %c90_i32_367 = arith.constant 90 : i32
    %1186 = arith.addi %c90_i32_367, %1173 : i32
    %1187 = arith.index_cast %1186 : i32 to index
    %1188 = memref.load %arg2[%1187] : memref<180xf32, #tpu.memory_space<smem>>
    %1189 = vector.broadcast %1188 : f32 to vector<12x12xf32>
    %1190 = arith.mulf %1189, %1171 : vector<12x12xf32>
    %1191 = arith.addf %1162, %1190 : vector<12x12xf32>
    %c135_i32_368 = arith.constant 135 : i32
    %1192 = arith.addi %c135_i32_368, %1173 : i32
    %1193 = arith.index_cast %1192 : i32 to index
    %1194 = memref.load %arg2[%1193] : memref<180xf32, #tpu.memory_space<smem>>
    %1195 = vector.broadcast %1194 : f32 to vector<12x12xf32>
    %1196 = arith.mulf %1195, %1171 : vector<12x12xf32>
    %1197 = arith.addf %1168, %1196 : vector<12x12xf32>
    %c0_369 = arith.constant 0 : index
    %1198 = arith.index_cast %c4_i32 : i32 to index
    %c1_370 = arith.constant 1 : index
    %c2_371 = arith.constant 2 : index
    %1199 = vector.load %arg1[%c0_369, %1198, %c1_370, %c2_371] : memref<1x5x14x14xf32, #tpu.memory_space<vmem>>, vector<1x1x12x12xf32>
    %1200 = vector.shape_cast %1199 : vector<1x1x12x12xf32> to vector<12x12xf32>
    %c3_i32_372 = arith.constant 3 : i32
    %1201 = arith.addi %1052, %c3_i32_372 : i32
    %c2_i32_373 = arith.constant 2 : i32
    %1202 = arith.addi %1201, %c2_i32_373 : i32
    %c0_i32_374 = arith.constant 0 : i32
    %1203 = arith.addi %c0_i32_374, %1202 : i32
    %1204 = arith.index_cast %1203 : i32 to index
    %1205 = memref.load %arg2[%1204] : memref<180xf32, #tpu.memory_space<smem>>
    %1206 = vector.broadcast %1205 : f32 to vector<12x12xf32>
    %1207 = arith.mulf %1206, %1200 : vector<12x12xf32>
    %1208 = arith.addf %1179, %1207 : vector<12x12xf32>
    %c45_i32_375 = arith.constant 45 : i32
    %1209 = arith.addi %c45_i32_375, %1202 : i32
    %1210 = arith.index_cast %1209 : i32 to index
    %1211 = memref.load %arg2[%1210] : memref<180xf32, #tpu.memory_space<smem>>
    %1212 = vector.broadcast %1211 : f32 to vector<12x12xf32>
    %1213 = arith.mulf %1212, %1200 : vector<12x12xf32>
    %1214 = arith.addf %1185, %1213 : vector<12x12xf32>
    %c90_i32_376 = arith.constant 90 : i32
    %1215 = arith.addi %c90_i32_376, %1202 : i32
    %1216 = arith.index_cast %1215 : i32 to index
    %1217 = memref.load %arg2[%1216] : memref<180xf32, #tpu.memory_space<smem>>
    %1218 = vector.broadcast %1217 : f32 to vector<12x12xf32>
    %1219 = arith.mulf %1218, %1200 : vector<12x12xf32>
    %1220 = arith.addf %1191, %1219 : vector<12x12xf32>
    %c135_i32_377 = arith.constant 135 : i32
    %1221 = arith.addi %c135_i32_377, %1202 : i32
    %1222 = arith.index_cast %1221 : i32 to index
    %1223 = memref.load %arg2[%1222] : memref<180xf32, #tpu.memory_space<smem>>
    %1224 = vector.broadcast %1223 : f32 to vector<12x12xf32>
    %1225 = arith.mulf %1224, %1200 : vector<12x12xf32>
    %1226 = arith.addf %1197, %1225 : vector<12x12xf32>
    %c0_378 = arith.constant 0 : index
    %1227 = arith.index_cast %c4_i32 : i32 to index
    %c2_379 = arith.constant 2 : index
    %c0_380 = arith.constant 0 : index
    %1228 = vector.load %arg1[%c0_378, %1227, %c2_379, %c0_380] : memref<1x5x14x14xf32, #tpu.memory_space<vmem>>, vector<1x1x12x12xf32>
    %1229 = vector.shape_cast %1228 : vector<1x1x12x12xf32> to vector<12x12xf32>
    %c6_i32_381 = arith.constant 6 : i32
    %1230 = arith.addi %1052, %c6_i32_381 : i32
    %c0_i32_382 = arith.constant 0 : i32
    %1231 = arith.addi %1230, %c0_i32_382 : i32
    %c0_i32_383 = arith.constant 0 : i32
    %1232 = arith.addi %c0_i32_383, %1231 : i32
    %1233 = arith.index_cast %1232 : i32 to index
    %1234 = memref.load %arg2[%1233] : memref<180xf32, #tpu.memory_space<smem>>
    %1235 = vector.broadcast %1234 : f32 to vector<12x12xf32>
    %1236 = arith.mulf %1235, %1229 : vector<12x12xf32>
    %1237 = arith.addf %1208, %1236 : vector<12x12xf32>
    %c45_i32_384 = arith.constant 45 : i32
    %1238 = arith.addi %c45_i32_384, %1231 : i32
    %1239 = arith.index_cast %1238 : i32 to index
    %1240 = memref.load %arg2[%1239] : memref<180xf32, #tpu.memory_space<smem>>
    %1241 = vector.broadcast %1240 : f32 to vector<12x12xf32>
    %1242 = arith.mulf %1241, %1229 : vector<12x12xf32>
    %1243 = arith.addf %1214, %1242 : vector<12x12xf32>
    %c90_i32_385 = arith.constant 90 : i32
    %1244 = arith.addi %c90_i32_385, %1231 : i32
    %1245 = arith.index_cast %1244 : i32 to index
    %1246 = memref.load %arg2[%1245] : memref<180xf32, #tpu.memory_space<smem>>
    %1247 = vector.broadcast %1246 : f32 to vector<12x12xf32>
    %1248 = arith.mulf %1247, %1229 : vector<12x12xf32>
    %1249 = arith.addf %1220, %1248 : vector<12x12xf32>
    %c135_i32_386 = arith.constant 135 : i32
    %1250 = arith.addi %c135_i32_386, %1231 : i32
    %1251 = arith.index_cast %1250 : i32 to index
    %1252 = memref.load %arg2[%1251] : memref<180xf32, #tpu.memory_space<smem>>
    %1253 = vector.broadcast %1252 : f32 to vector<12x12xf32>
    %1254 = arith.mulf %1253, %1229 : vector<12x12xf32>
    %1255 = arith.addf %1226, %1254 : vector<12x12xf32>
    %c0_387 = arith.constant 0 : index
    %1256 = arith.index_cast %c4_i32 : i32 to index
    %c2_388 = arith.constant 2 : index
    %c1_389 = arith.constant 1 : index
    %1257 = vector.load %arg1[%c0_387, %1256, %c2_388, %c1_389] : memref<1x5x14x14xf32, #tpu.memory_space<vmem>>, vector<1x1x12x12xf32>
    %1258 = vector.shape_cast %1257 : vector<1x1x12x12xf32> to vector<12x12xf32>
    %c6_i32_390 = arith.constant 6 : i32
    %1259 = arith.addi %1052, %c6_i32_390 : i32
    %c1_i32_391 = arith.constant 1 : i32
    %1260 = arith.addi %1259, %c1_i32_391 : i32
    %c0_i32_392 = arith.constant 0 : i32
    %1261 = arith.addi %c0_i32_392, %1260 : i32
    %1262 = arith.index_cast %1261 : i32 to index
    %1263 = memref.load %arg2[%1262] : memref<180xf32, #tpu.memory_space<smem>>
    %1264 = vector.broadcast %1263 : f32 to vector<12x12xf32>
    %1265 = arith.mulf %1264, %1258 : vector<12x12xf32>
    %1266 = arith.addf %1237, %1265 : vector<12x12xf32>
    %c45_i32_393 = arith.constant 45 : i32
    %1267 = arith.addi %c45_i32_393, %1260 : i32
    %1268 = arith.index_cast %1267 : i32 to index
    %1269 = memref.load %arg2[%1268] : memref<180xf32, #tpu.memory_space<smem>>
    %1270 = vector.broadcast %1269 : f32 to vector<12x12xf32>
    %1271 = arith.mulf %1270, %1258 : vector<12x12xf32>
    %1272 = arith.addf %1243, %1271 : vector<12x12xf32>
    %c90_i32_394 = arith.constant 90 : i32
    %1273 = arith.addi %c90_i32_394, %1260 : i32
    %1274 = arith.index_cast %1273 : i32 to index
    %1275 = memref.load %arg2[%1274] : memref<180xf32, #tpu.memory_space<smem>>
    %1276 = vector.broadcast %1275 : f32 to vector<12x12xf32>
    %1277 = arith.mulf %1276, %1258 : vector<12x12xf32>
    %1278 = arith.addf %1249, %1277 : vector<12x12xf32>
    %c135_i32_395 = arith.constant 135 : i32
    %1279 = arith.addi %c135_i32_395, %1260 : i32
    %1280 = arith.index_cast %1279 : i32 to index
    %1281 = memref.load %arg2[%1280] : memref<180xf32, #tpu.memory_space<smem>>
    %1282 = vector.broadcast %1281 : f32 to vector<12x12xf32>
    %1283 = arith.mulf %1282, %1258 : vector<12x12xf32>
    %1284 = arith.addf %1255, %1283 : vector<12x12xf32>
    %c0_396 = arith.constant 0 : index
    %1285 = arith.index_cast %c4_i32 : i32 to index
    %c2_397 = arith.constant 2 : index
    %c2_398 = arith.constant 2 : index
    %1286 = vector.load %arg1[%c0_396, %1285, %c2_397, %c2_398] : memref<1x5x14x14xf32, #tpu.memory_space<vmem>>, vector<1x1x12x12xf32>
    %1287 = vector.shape_cast %1286 : vector<1x1x12x12xf32> to vector<12x12xf32>
    %c6_i32_399 = arith.constant 6 : i32
    %1288 = arith.addi %1052, %c6_i32_399 : i32
    %c2_i32_400 = arith.constant 2 : i32
    %1289 = arith.addi %1288, %c2_i32_400 : i32
    %c0_i32_401 = arith.constant 0 : i32
    %1290 = arith.addi %c0_i32_401, %1289 : i32
    %1291 = arith.index_cast %1290 : i32 to index
    %1292 = memref.load %arg2[%1291] : memref<180xf32, #tpu.memory_space<smem>>
    %1293 = vector.broadcast %1292 : f32 to vector<12x12xf32>
    %1294 = arith.mulf %1293, %1287 : vector<12x12xf32>
    %1295 = arith.addf %1266, %1294 : vector<12x12xf32>
    %c45_i32_402 = arith.constant 45 : i32
    %1296 = arith.addi %c45_i32_402, %1289 : i32
    %1297 = arith.index_cast %1296 : i32 to index
    %1298 = memref.load %arg2[%1297] : memref<180xf32, #tpu.memory_space<smem>>
    %1299 = vector.broadcast %1298 : f32 to vector<12x12xf32>
    %1300 = arith.mulf %1299, %1287 : vector<12x12xf32>
    %1301 = arith.addf %1272, %1300 : vector<12x12xf32>
    %c90_i32_403 = arith.constant 90 : i32
    %1302 = arith.addi %c90_i32_403, %1289 : i32
    %1303 = arith.index_cast %1302 : i32 to index
    %1304 = memref.load %arg2[%1303] : memref<180xf32, #tpu.memory_space<smem>>
    %1305 = vector.broadcast %1304 : f32 to vector<12x12xf32>
    %1306 = arith.mulf %1305, %1287 : vector<12x12xf32>
    %1307 = arith.addf %1278, %1306 : vector<12x12xf32>
    %c135_i32_404 = arith.constant 135 : i32
    %1308 = arith.addi %c135_i32_404, %1289 : i32
    %1309 = arith.index_cast %1308 : i32 to index
    %1310 = memref.load %arg2[%1309] : memref<180xf32, #tpu.memory_space<smem>>
    %1311 = vector.broadcast %1310 : f32 to vector<12x12xf32>
    %1312 = arith.mulf %1311, %1287 : vector<12x12xf32>
    %1313 = arith.addf %1284, %1312 : vector<12x12xf32>
    %c5_i32 = arith.constant 5 : i32
    %c0_405 = arith.constant 0 : index
    %c0_406 = arith.constant 0 : index
    %c0_407 = arith.constant 0 : index
    %c0_408 = arith.constant 0 : index
    %1314 = vector.load %arg5[%c0_405, %c0_406, %c0_407, %c0_408] : memref<1x4x12x12xf32, #tpu.memory_space<vmem>>, vector<1x1x12x12xf32>
    %1315 = vector.shape_cast %1314 : vector<1x1x12x12xf32> to vector<12x12xf32>
    %1316 = vector.shape_cast %1295 : vector<12x12xf32> to vector<1x1x12x12xf32>
    tpu.vector_store %arg5[%c0_405, %c0_406, %c0_407, %c0_408], %1316 {strides = array<i32>} : memref<1x4x12x12xf32, #tpu.memory_space<vmem>>, vector<1x1x12x12xf32>,
    %1317 = vector.shape_cast %1295 : vector<12x12xf32> to vector<1x12x12xf32>
    %cst_409 = arith.constant dense<0.000000e+00> : vector<1xf32>
    %1318 = vector.multi_reduction <add>, %1317, %cst_409 [1, 2] : vector<1x12x12xf32> to vector<1xf32>
    %1319 = vector.shape_cast %1318 : vector<1xf32> to vector<1x1x1xf32>
    %1320 = vector.extract %1319[0, 0, 0] : f32 from vector<1x1x1xf32>
    %cst_410 = arith.constant 0.000000e+00 : f32
    %1321 = arith.addf %cst_410, %1320 : f32
    %1322 = arith.mulf %1295, %1295 : vector<12x12xf32>
    %1323 = vector.shape_cast %1322 : vector<12x12xf32> to vector<1x12x12xf32>
    %cst_411 = arith.constant dense<0.000000e+00> : vector<1xf32>
    %1324 = vector.multi_reduction <add>, %1323, %cst_411 [1, 2] : vector<1x12x12xf32> to vector<1xf32>
    %1325 = vector.shape_cast %1324 : vector<1xf32> to vector<1x1x1xf32>
    %1326 = vector.extract %1325[0, 0, 0] : f32 from vector<1x1x1xf32>
    %cst_412 = arith.constant 0.000000e+00 : f32
    %1327 = arith.addf %cst_412, %1326 : f32
    %c0_413 = arith.constant 0 : index
    %c1_414 = arith.constant 1 : index
    %c0_415 = arith.constant 0 : index
    %c0_416 = arith.constant 0 : index
    %1328 = vector.load %arg5[%c0_413, %c1_414, %c0_415, %c0_416] : memref<1x4x12x12xf32, #tpu.memory_space<vmem>>, vector<1x1x12x12xf32>
    %1329 = vector.shape_cast %1328 : vector<1x1x12x12xf32> to vector<12x12xf32>
    %1330 = vector.shape_cast %1301 : vector<12x12xf32> to vector<1x1x12x12xf32>
    tpu.vector_store %arg5[%c0_413, %c1_414, %c0_415, %c0_416], %1330 {strides = array<i32>} : memref<1x4x12x12xf32, #tpu.memory_space<vmem>>, vector<1x1x12x12xf32>,
    %1331 = vector.shape_cast %1301 : vector<12x12xf32> to vector<1x12x12xf32>
    %cst_417 = arith.constant dense<0.000000e+00> : vector<1xf32>
    %1332 = vector.multi_reduction <add>, %1331, %cst_417 [1, 2] : vector<1x12x12xf32> to vector<1xf32>
    %1333 = vector.shape_cast %1332 : vector<1xf32> to vector<1x1x1xf32>
    %1334 = vector.extract %1333[0, 0, 0] : f32 from vector<1x1x1xf32>
    %cst_418 = arith.constant 0.000000e+00 : f32
    %1335 = arith.addf %cst_418, %1334 : f32
    %1336 = arith.mulf %1301, %1301 : vector<12x12xf32>
    %1337 = vector.shape_cast %1336 : vector<12x12xf32> to vector<1x12x12xf32>
    %cst_419 = arith.constant dense<0.000000e+00> : vector<1xf32>
    %1338 = vector.multi_reduction <add>, %1337, %cst_419 [1, 2] : vector<1x12x12xf32> to vector<1xf32>
    %1339 = vector.shape_cast %1338 : vector<1xf32> to vector<1x1x1xf32>
    %1340 = vector.extract %1339[0, 0, 0] : f32 from vector<1x1x1xf32>
    %cst_420 = arith.constant 0.000000e+00 : f32
    %1341 = arith.addf %cst_420, %1340 : f32
    %c0_421 = arith.constant 0 : index
    %c2_422 = arith.constant 2 : index
    %c0_423 = arith.constant 0 : index
    %c0_424 = arith.constant 0 : index
    %1342 = vector.load %arg5[%c0_421, %c2_422, %c0_423, %c0_424] : memref<1x4x12x12xf32, #tpu.memory_space<vmem>>, vector<1x1x12x12xf32>
    %1343 = vector.shape_cast %1342 : vector<1x1x12x12xf32> to vector<12x12xf32>
    %1344 = vector.shape_cast %1307 : vector<12x12xf32> to vector<1x1x12x12xf32>
    tpu.vector_store %arg5[%c0_421, %c2_422, %c0_423, %c0_424], %1344 {strides = array<i32>} : memref<1x4x12x12xf32, #tpu.memory_space<vmem>>, vector<1x1x12x12xf32>,
    %1345 = vector.shape_cast %1307 : vector<12x12xf32> to vector<1x12x12xf32>
    %cst_425 = arith.constant dense<0.000000e+00> : vector<1xf32>
    %1346 = vector.multi_reduction <add>, %1345, %cst_425 [1, 2] : vector<1x12x12xf32> to vector<1xf32>
    %1347 = vector.shape_cast %1346 : vector<1xf32> to vector<1x1x1xf32>
    %1348 = vector.extract %1347[0, 0, 0] : f32 from vector<1x1x1xf32>
    %cst_426 = arith.constant 0.000000e+00 : f32
    %1349 = arith.addf %cst_426, %1348 : f32
    %1350 = arith.mulf %1307, %1307 : vector<12x12xf32>
    %1351 = vector.shape_cast %1350 : vector<12x12xf32> to vector<1x12x12xf32>
    %cst_427 = arith.constant dense<0.000000e+00> : vector<1xf32>
    %1352 = vector.multi_reduction <add>, %1351, %cst_427 [1, 2] : vector<1x12x12xf32> to vector<1xf32>
    %1353 = vector.shape_cast %1352 : vector<1xf32> to vector<1x1x1xf32>
    %1354 = vector.extract %1353[0, 0, 0] : f32 from vector<1x1x1xf32>
    %cst_428 = arith.constant 0.000000e+00 : f32
    %1355 = arith.addf %cst_428, %1354 : f32
    %c0_429 = arith.constant 0 : index
    %c3 = arith.constant 3 : index
    %c0_430 = arith.constant 0 : index
    %c0_431 = arith.constant 0 : index
    %1356 = vector.load %arg5[%c0_429, %c3, %c0_430, %c0_431] : memref<1x4x12x12xf32, #tpu.memory_space<vmem>>, vector<1x1x12x12xf32>
    %1357 = vector.shape_cast %1356 : vector<1x1x12x12xf32> to vector<12x12xf32>
    %1358 = vector.shape_cast %1313 : vector<12x12xf32> to vector<1x1x12x12xf32>
    tpu.vector_store %arg5[%c0_429, %c3, %c0_430, %c0_431], %1358 {strides = array<i32>} : memref<1x4x12x12xf32, #tpu.memory_space<vmem>>, vector<1x1x12x12xf32>,
    %1359 = vector.shape_cast %1313 : vector<12x12xf32> to vector<1x12x12xf32>
    %cst_432 = arith.constant dense<0.000000e+00> : vector<1xf32>
    %1360 = vector.multi_reduction <add>, %1359, %cst_432 [1, 2] : vector<1x12x12xf32> to vector<1xf32>
    %1361 = vector.shape_cast %1360 : vector<1xf32> to vector<1x1x1xf32>
    %1362 = vector.extract %1361[0, 0, 0] : f32 from vector<1x1x1xf32>
    %cst_433 = arith.constant 0.000000e+00 : f32
    %1363 = arith.addf %cst_433, %1362 : f32
    %1364 = arith.mulf %1313, %1313 : vector<12x12xf32>
    %1365 = vector.shape_cast %1364 : vector<12x12xf32> to vector<1x12x12xf32>
    %cst_434 = arith.constant dense<0.000000e+00> : vector<1xf32>
    %1366 = vector.multi_reduction <add>, %1365, %cst_434 [1, 2] : vector<1x12x12xf32> to vector<1xf32>
    %1367 = vector.shape_cast %1366 : vector<1xf32> to vector<1x1x1xf32>
    %1368 = vector.extract %1367[0, 0, 0] : f32 from vector<1x1x1xf32>
    %cst_435 = arith.constant 0.000000e+00 : f32
    %1369 = arith.addf %cst_435, %1368 : f32
    %cst_436 = arith.constant 0.0069444445 : f32
    %1370 = arith.mulf %1321, %cst_436 : f32
    %cst_437 = arith.constant 0.0069444445 : f32
    %1371 = arith.mulf %1327, %cst_437 : f32
    %1372 = arith.mulf %1370, %1370 : f32
    %1373 = arith.subf %1371, %1372 : f32
    %cst_438 = arith.constant 0.000000e+00 : f32
    %1374 = arith.maximumf %1373, %cst_438 : f32
    %c0_439 = arith.constant 0 : index
    %1375 = memref.load %arg3[%c0_439] : memref<4xf32, #tpu.memory_space<smem>>
    %cst_440 = arith.constant 9.99999974E-6 : f32
    %1376 = arith.addf %1374, %cst_440 : f32
    %1377 = math.rsqrt %1376 : f32
    %1378 = arith.mulf %1375, %1377 : f32
    %c0_441 = arith.constant 0 : index
    %1379 = memref.load %arg4[%c0_441] : memref<4xf32, #tpu.memory_space<smem>>
    %1380 = arith.mulf %1370, %1378 : f32
    %1381 = arith.subf %1379, %1380 : f32
    %c0_442 = arith.constant 0 : index
    %c0_443 = arith.constant 0 : index
    %c0_444 = arith.constant 0 : index
    %c0_445 = arith.constant 0 : index
    %1382 = vector.load %arg5[%c0_442, %c0_443, %c0_444, %c0_445] : memref<1x4x12x12xf32, #tpu.memory_space<vmem>>, vector<1x1x12x12xf32>
    %1383 = vector.shape_cast %1382 : vector<1x1x12x12xf32> to vector<12x12xf32>
    %1384 = vector.broadcast %1378 : f32 to vector<12x12xf32>
    %1385 = arith.mulf %1383, %1384 : vector<12x12xf32>
    %1386 = vector.broadcast %1381 : f32 to vector<12x12xf32>
    %1387 = arith.addf %1385, %1386 : vector<12x12xf32>
    %cst_446 = arith.constant 0.000000e+00 : f32
    %1388 = vector.broadcast %cst_446 : f32 to vector<12x12xf32>
    %1389 = arith.maximumf %1387, %1388 : vector<12x12xf32>
    %c0_447 = arith.constant 0 : index
    %c0_448 = arith.constant 0 : index
    %c0_449 = arith.constant 0 : index
    %c0_450 = arith.constant 0 : index
    %1390 = vector.load %arg5[%c0_447, %c0_448, %c0_449, %c0_450] : memref<1x4x12x12xf32, #tpu.memory_space<vmem>>, vector<1x1x12x12xf32>
    %1391 = vector.shape_cast %1390 : vector<1x1x12x12xf32> to vector<12x12xf32>
    %1392 = vector.shape_cast %1389 : vector<12x12xf32> to vector<1x1x12x12xf32>
    tpu.vector_store %arg5[%c0_447, %c0_448, %c0_449, %c0_450], %1392 {strides = array<i32>} : memref<1x4x12x12xf32, #tpu.memory_space<vmem>>, vector<1x1x12x12xf32>,
    %cst_451 = arith.constant 0.0069444445 : f32
    %1393 = arith.mulf %1335, %cst_451 : f32
    %cst_452 = arith.constant 0.0069444445 : f32
    %1394 = arith.mulf %1341, %cst_452 : f32
    %1395 = arith.mulf %1393, %1393 : f32
    %1396 = arith.subf %1394, %1395 : f32
    %cst_453 = arith.constant 0.000000e+00 : f32
    %1397 = arith.maximumf %1396, %cst_453 : f32
    %c1_454 = arith.constant 1 : index
    %1398 = memref.load %arg3[%c1_454] : memref<4xf32, #tpu.memory_space<smem>>
    %cst_455 = arith.constant 9.99999974E-6 : f32
    %1399 = arith.addf %1397, %cst_455 : f32
    %1400 = math.rsqrt %1399 : f32
    %1401 = arith.mulf %1398, %1400 : f32
    %c1_456 = arith.constant 1 : index
    %1402 = memref.load %arg4[%c1_456] : memref<4xf32, #tpu.memory_space<smem>>
    %1403 = arith.mulf %1393, %1401 : f32
    %1404 = arith.subf %1402, %1403 : f32
    %c0_457 = arith.constant 0 : index
    %c1_458 = arith.constant 1 : index
    %c0_459 = arith.constant 0 : index
    %c0_460 = arith.constant 0 : index
    %1405 = vector.load %arg5[%c0_457, %c1_458, %c0_459, %c0_460] : memref<1x4x12x12xf32, #tpu.memory_space<vmem>>, vector<1x1x12x12xf32>
    %1406 = vector.shape_cast %1405 : vector<1x1x12x12xf32> to vector<12x12xf32>
    %1407 = vector.broadcast %1401 : f32 to vector<12x12xf32>
    %1408 = arith.mulf %1406, %1407 : vector<12x12xf32>
    %1409 = vector.broadcast %1404 : f32 to vector<12x12xf32>
    %1410 = arith.addf %1408, %1409 : vector<12x12xf32>
    %cst_461 = arith.constant 0.000000e+00 : f32
    %1411 = vector.broadcast %cst_461 : f32 to vector<12x12xf32>
    %1412 = arith.maximumf %1410, %1411 : vector<12x12xf32>
    %c0_462 = arith.constant 0 : index
    %c1_463 = arith.constant 1 : index
    %c0_464 = arith.constant 0 : index
    %c0_465 = arith.constant 0 : index
    %1413 = vector.load %arg5[%c0_462, %c1_463, %c0_464, %c0_465] : memref<1x4x12x12xf32, #tpu.memory_space<vmem>>, vector<1x1x12x12xf32>
    %1414 = vector.shape_cast %1413 : vector<1x1x12x12xf32> to vector<12x12xf32>
    %1415 = vector.shape_cast %1412 : vector<12x12xf32> to vector<1x1x12x12xf32>
    tpu.vector_store %arg5[%c0_462, %c1_463, %c0_464, %c0_465], %1415 {strides = array<i32>} : memref<1x4x12x12xf32, #tpu.memory_space<vmem>>, vector<1x1x12x12xf32>,
    %cst_466 = arith.constant 0.0069444445 : f32
    %1416 = arith.mulf %1349, %cst_466 : f32
    %cst_467 = arith.constant 0.0069444445 : f32
    %1417 = arith.mulf %1355, %cst_467 : f32
    %1418 = arith.mulf %1416, %1416 : f32
    %1419 = arith.subf %1417, %1418 : f32
    %cst_468 = arith.constant 0.000000e+00 : f32
    %1420 = arith.maximumf %1419, %cst_468 : f32
    %c2_469 = arith.constant 2 : index
    %1421 = memref.load %arg3[%c2_469] : memref<4xf32, #tpu.memory_space<smem>>
    %cst_470 = arith.constant 9.99999974E-6 : f32
    %1422 = arith.addf %1420, %cst_470 : f32
    %1423 = math.rsqrt %1422 : f32
    %1424 = arith.mulf %1421, %1423 : f32
    %c2_471 = arith.constant 2 : index
    %1425 = memref.load %arg4[%c2_471] : memref<4xf32, #tpu.memory_space<smem>>
    %1426 = arith.mulf %1416, %1424 : f32
    %1427 = arith.subf %1425, %1426 : f32
    %c0_472 = arith.constant 0 : index
    %c2_473 = arith.constant 2 : index
    %c0_474 = arith.constant 0 : index
    %c0_475 = arith.constant 0 : index
    %1428 = vector.load %arg5[%c0_472, %c2_473, %c0_474, %c0_475] : memref<1x4x12x12xf32, #tpu.memory_space<vmem>>, vector<1x1x12x12xf32>
    %1429 = vector.shape_cast %1428 : vector<1x1x12x12xf32> to vector<12x12xf32>
    %1430 = vector.broadcast %1424 : f32 to vector<12x12xf32>
    %1431 = arith.mulf %1429, %1430 : vector<12x12xf32>
    %1432 = vector.broadcast %1427 : f32 to vector<12x12xf32>
    %1433 = arith.addf %1431, %1432 : vector<12x12xf32>
    %cst_476 = arith.constant 0.000000e+00 : f32
    %1434 = vector.broadcast %cst_476 : f32 to vector<12x12xf32>
    %1435 = arith.maximumf %1433, %1434 : vector<12x12xf32>
    %c0_477 = arith.constant 0 : index
    %c2_478 = arith.constant 2 : index
    %c0_479 = arith.constant 0 : index
    %c0_480 = arith.constant 0 : index
    %1436 = vector.load %arg5[%c0_477, %c2_478, %c0_479, %c0_480] : memref<1x4x12x12xf32, #tpu.memory_space<vmem>>, vector<1x1x12x12xf32>
    %1437 = vector.shape_cast %1436 : vector<1x1x12x12xf32> to vector<12x12xf32>
    %1438 = vector.shape_cast %1435 : vector<12x12xf32> to vector<1x1x12x12xf32>
    tpu.vector_store %arg5[%c0_477, %c2_478, %c0_479, %c0_480], %1438 {strides = array<i32>} : memref<1x4x12x12xf32, #tpu.memory_space<vmem>>, vector<1x1x12x12xf32>,
    %cst_481 = arith.constant 0.0069444445 : f32
    %1439 = arith.mulf %1363, %cst_481 : f32
    %cst_482 = arith.constant 0.0069444445 : f32
    %1440 = arith.mulf %1369, %cst_482 : f32
    %1441 = arith.mulf %1439, %1439 : f32
    %1442 = arith.subf %1440, %1441 : f32
    %cst_483 = arith.constant 0.000000e+00 : f32
    %1443 = arith.maximumf %1442, %cst_483 : f32
    %c3_484 = arith.constant 3 : index
    %1444 = memref.load %arg3[%c3_484] : memref<4xf32, #tpu.memory_space<smem>>
    %cst_485 = arith.constant 9.99999974E-6 : f32
    %1445 = arith.addf %1443, %cst_485 : f32
    %1446 = math.rsqrt %1445 : f32
    %1447 = arith.mulf %1444, %1446 : f32
    %c3_486 = arith.constant 3 : index
    %1448 = memref.load %arg4[%c3_486] : memref<4xf32, #tpu.memory_space<smem>>
    %1449 = arith.mulf %1439, %1447 : f32
    %1450 = arith.subf %1448, %1449 : f32
    %c0_487 = arith.constant 0 : index
    %c3_488 = arith.constant 3 : index
    %c0_489 = arith.constant 0 : index
    %c0_490 = arith.constant 0 : index
    %1451 = vector.load %arg5[%c0_487, %c3_488, %c0_489, %c0_490] : memref<1x4x12x12xf32, #tpu.memory_space<vmem>>, vector<1x1x12x12xf32>
    %1452 = vector.shape_cast %1451 : vector<1x1x12x12xf32> to vector<12x12xf32>
    %1453 = vector.broadcast %1447 : f32 to vector<12x12xf32>
    %1454 = arith.mulf %1452, %1453 : vector<12x12xf32>
    %1455 = vector.broadcast %1450 : f32 to vector<12x12xf32>
    %1456 = arith.addf %1454, %1455 : vector<12x12xf32>
    %cst_491 = arith.constant 0.000000e+00 : f32
    %1457 = vector.broadcast %cst_491 : f32 to vector<12x12xf32>
    %1458 = arith.maximumf %1456, %1457 : vector<12x12xf32>
    %c0_492 = arith.constant 0 : index
    %c3_493 = arith.constant 3 : index
    %c0_494 = arith.constant 0 : index
    %c0_495 = arith.constant 0 : index
    %1459 = vector.load %arg5[%c0_492, %c3_493, %c0_494, %c0_495] : memref<1x4x12x12xf32, #tpu.memory_space<vmem>>, vector<1x1x12x12xf32>
    %1460 = vector.shape_cast %1459 : vector<1x1x12x12xf32> to vector<12x12xf32>
    %1461 = vector.shape_cast %1458 : vector<12x12xf32> to vector<1x1x12x12xf32>
    tpu.vector_store %arg5[%c0_492, %c3_493, %c0_494, %c0_495], %1461 {strides = array<i32>} : memref<1x4x12x12xf32, #tpu.memory_space<vmem>>, vector<1x1x12x12xf32>,
    return
  }
  func.func @transform_0(%arg0: i32) -> (i32, i32, i32, i32) {
    %c0_i32 = arith.constant 0 : i32
    %c0_i32_0 = arith.constant 0 : i32
    %c0_i32_1 = arith.constant 0 : i32
    %c0_i32_2 = arith.constant 0 : i32
    return %arg0, %c0_i32, %c0_i32_0, %c0_i32_1 : i32, i32, i32, i32
  }
  func.func @transform_1(%arg0: i32) -> i32 {
    %c0_i32 = arith.constant 0 : i32
    %c0_i32_0 = arith.constant 0 : i32
    return %c0_i32 : i32
  }
  func.func @transform_2(%arg0: i32) -> i32 {
    %c0_i32 = arith.constant 0 : i32
    %c0_i32_0 = arith.constant 0 : i32
    return %c0_i32 : i32
  }
  func.func @transform_3(%arg0: i32) -> i32 {
    %c0_i32 = arith.constant 0 : i32
    %c0_i32_0 = arith.constant 0 : i32
    return %c0_i32 : i32
  }
  func.func @transform_4(%arg0: i32) -> (i32, i32, i32, i32) {
    %c0_i32 = arith.constant 0 : i32
    %c0_i32_0 = arith.constant 0 : i32
    %c0_i32_1 = arith.constant 0 : i32
    %c0_i32_2 = arith.constant 0 : i32
    return %arg0, %c0_i32, %c0_i32_0, %c0_i32_1 : i32, i32, i32, i32
  }
}

</mosaic_0001>

<llo_original>
// kernel: tpu_custom_call.1
$region0: #{tpu_custom_call.1}
  #allocation0 [shape = 'u32[]', space=smem, size = 0x4, offset = 0x4, fixed_abs, tag = 'smem constant byte address 0x4 - core index']
  #allocation1 [shape = 'u32[72,128]{1,0:T(1,128)}', space=vmem, size = 0x9000, scoped, tag = 'internal scratch']
  %s0 = inlined_call_operand.vmem [shape: f32[2,5,14,14], index: 0, kind: input, shape index: {}]
  %s1 = inlined_call_operand.vmem [shape: f32[180], index: 1, kind: input, shape index: {}]
  %s2 = inlined_call_operand.vmem [shape: f32[4], index: 2, kind: input, shape index: {}]
  %s3 = inlined_call_operand.vmem [shape: f32[4], index: 3, kind: input, shape index: {}]
  %s4 = inlined_call_operand.vmem [shape: f32[2,4,12,12], index: 4, kind: output, shape index: {}]
  %s5 = sld [smem:[#allocation0]]
  $region61: #{tpu_custom_call.1} parent=0
    _
  %s7 = ssub.s32 1, %s5
  %s8 = scalar_select 0, %s7, %s5
  $region1: #{tpu_custom_call.1} parent=0
    #allocation2 [shape = 'u8[1024]{0}', space=smem, size = 0x400, scoped, tag = 'input window, operand 1, single buffered']
    #allocation3 [shape = 's32[2]{0}', space=sflag, size = 0x8, scoped, tag = 'scoped memory for tpu_custom_call.1']
    #allocation4 [shape = 'u8[512]{0}', space=smem, size = 0x200, scoped, tag = 'input window, operand 2, single buffered']
    #allocation5 [shape = 's32[1]{0}', space=sflag, size = 0x4, scoped, tag = 'scoped memory for tpu_custom_call.1']
    #allocation6 [shape = 'u8[512]{0}', space=smem, size = 0x200, scoped, tag = 'input window, operand 3, single buffered']
    %9 = vsyncpa [#allocation3], 0
    %10 = vsyncpa [#allocation5], 0
    loop: start=0, step=1, limit=4
    $region2: #{tpu_custom_call.1} parent=1 // loop_pre_header
      _
    $region3: #{tpu_custom_call.1} parent=1 // loop_header
      %s12 = sphi 0, %s16
      %p13 = scmp.ge.s32.totalorder %s12, 4
      %s22 = sphi 0, %s24
      %s25 = sphi 0, %s22
      %s26 = sphi 0, %s25
      %s42 = sphi 0, %s26
      %s46 = sphi 0, %s46
      %s48 = sphi 0, %s46
      %s49 = sphi 0, %s48
      %s63 = sphi 0, %s49
      %s67 = sphi 0, %s67
      %s69 = sphi 0, %s67
      %s70 = sphi 0, %s69
      %s84 = sphi 0, %s70
      %s88 = sphi 0, %s88
      %s90 = sphi 0, %s88
      %s91 = sphi 0, %s90
      %s105 = sphi 0, %s91
      %s111 = sphi 0, %s113
      %s114 = sphi 0, %s111
      %s115 = sphi 0, %s114
      %s131 = sphi 0, %s115
    $region4: #{tpu_custom_call.1} parent=1 // loop_header_branch
      %15 = sbr.rel (%p13) target = $region8
    $region5: #{tpu_custom_call.1} parent=1 // loop_body
      %s17 = ssub.s32 %s12, 1
      %s18 = ssub.s32 %s12, 2
      %s19 = sadd.s32 %s12, 1
      %s20 = ssub.s32 %s12, %s19
      %p21 = scmp.eq.s32.totalorder %s20, 0
      %s23 = sadd.s32 %s22, 1
      %s24 = scalar_select %p21, %s22, %s23
      %p27 = pneg %p21
      %p28 = scmp.eq.s32.totalorder %s12, 1
      %p29 = por %p27, %p28
      %p30 = scmp.ne.s32.totalorder %s22, %s25
      %p31 = scmp.eq.s32.totalorder %s12, 0
      %p32 = por %p30, %p31
      %p33 = scmp.ne.s32.totalorder %s22, %s25
      %p34 = scmp.eq.s32.totalorder %s17, 1
      %p35 = por %p33, %p34
      %p36 = scmp.ne.s32.totalorder %s25, %s26
      %p37 = scmp.eq.s32.totalorder %s17, 0
      %p38 = por %p36, %p37
      %p39 = scmp.ne.s32.totalorder %s25, %s26
      %p40 = scmp.eq.s32.totalorder %s18, 1
      %p41 = por %p39, %p40
      %p43 = scmp.ne.s32.totalorder %s26, %s42
      %p44 = scmp.eq.s32.totalorder %s18, 0
      %p45 = por %p43, %p44
      %s47 = sadd.s32 %s46, 1
      %p50 = scmp.eq.s32.totalorder %s12, 1
      %p51 = scmp.ne.s32.totalorder %s46, %s48
      %p52 = scmp.eq.s32.totalorder %s12, 0
      %p53 = por %p51, %p52
      %p54 = scmp.ne.s32.totalorder %s46, %s48
      %p55 = scmp.eq.s32.totalorder %s17, 1
      %p56 = por %p54, %p55
      %p57 = scmp.ne.s32.totalorder %s48, %s49
      %p58 = scmp.eq.s32.totalorder %s17, 0
      %p59 = por %p57, %p58
      %p60 = scmp.ne.s32.totalorder %s48, %s49
      %p61 = scmp.eq.s32.totalorder %s18, 1
      %p62 = por %p60, %p61
      %p64 = scmp.ne.s32.totalorder %s49, %s63
      %p65 = scmp.eq.s32.totalorder %s18, 0
      %p66 = por %p64, %p65
      %s68 = sadd.s32 %s67, 1
      %p71 = scmp.eq.s32.totalorder %s12, 1
      %p72 = scmp.ne.s32.totalorder %s67, %s69
      %p73 = scmp.eq.s32.totalorder %s12, 0
      %p74 = por %p72, %p73
      %p75 = scmp.ne.s32.totalorder %s67, %s69
      %p76 = scmp.eq.s32.totalorder %s17, 1
      %p77 = por %p75, %p76
      %p78 = scmp.ne.s32.totalorder %s69, %s70
      %p79 = scmp.eq.s32.totalorder %s17, 0
      %p80 = por %p78, %p79
      %p81 = scmp.ne.s32.totalorder %s69, %s70
      %p82 = scmp.eq.s32.totalorder %s18, 1
      %p83 = por %p81, %p82
      %p85 = scmp.ne.s32.totalorder %s70, %s84
      %p86 = scmp.eq.s32.totalorder %s18, 0
      %p87 = por %p85, %p86
      %s89 = sadd.s32 %s88, 1
      %p92 = scmp.eq.s32.totalorder %s12, 1
      %p93 = scmp.ne.s32.totalorder %s88, %s90
      %p94 = scmp.eq.s32.totalorder %s12, 0
      %p95 = por %p93, %p94
      %p96 = scmp.ne.s32.totalorder %s88, %s90
      %p97 = scmp.eq.s32.totalorder %s17, 1
      %p98 = por %p96, %p97
      %p99 = scmp.ne.s32.totalorder %s90, %s91
      %p100 = scmp.eq.s32.totalorder %s17, 0
      %p101 = por %p99, %p100
      %p102 = scmp.ne.s32.totalorder %s90, %s91
      %p103 = scmp.eq.s32.totalorder %s18, 1
      %p104 = por %p102, %p103
      %p106 = scmp.ne.s32.totalorder %s91, %s105
      %p107 = scmp.eq.s32.totalorder %s18, 0
      %p108 = por %p106, %p107
      %s109 = ssub.s32 %s12, %s19
      %p110 = scmp.eq.s32.totalorder %s109, 0
      %s112 = sadd.s32 %s111, 1
      %s113 = scalar_select %p110, %s111, %s112
      %p116 = pneg %p110
      %p117 = scmp.eq.s32.totalorder %s12, 1
      %p118 = por %p116, %p117
      %p119 = scmp.ne.s32.totalorder %s111, %s114
      %p120 = scmp.eq.s32.totalorder %s12, 0
      %p121 = por %p119, %p120
      %p122 = scmp.ne.s32.totalorder %s111, %s114
      %p123 = scmp.eq.s32.totalorder %s17, 1
      %p124 = por %p122, %p123
      %p125 = scmp.ne.s32.totalorder %s114, %s115
      %p126 = scmp.eq.s32.totalorder %s17, 0
      %p127 = por %p125, %p126
      %p128 = scmp.ne.s32.totalorder %s114, %s115
      %p129 = scmp.eq.s32.totalorder %s18, 1
      %p130 = por %p128, %p129
      %p132 = scmp.ne.s32.totalorder %s115, %s131
      %p133 = scmp.eq.s32.totalorder %s18, 0
      %p134 = por %p132, %p133
      %p135 = scmp.le.s32.totalorder 1, %s12
      %p136 = scmp.lt.s32.totalorder %s12, 3
      %p137 = pnand %p135, %p136
      %p138 = pneg %p137
      // Predicated region
      $region9: #{tpu_custom_call.1} parent=5 // pred_check
        _
      $region10: #{tpu_custom_call.1} parent=5 // pred_check_branch
        %140 = sbr.rel (%p137) target = $region12
      $region11: #{tpu_custom_call.1} parent=5 // pred_region
        %s141 = ssub.s32 %s12, 1
        // Predicated region
        $region13: #{tpu_custom_call.1} parent=11 // pred_check
          %p142 = pneg %p59
        $region14: #{tpu_custom_call.1} parent=11 // pred_check_branch
          %144 = sbr.rel (%p142) target = $region16
        $region15: #{tpu_custom_call.1} parent=11 // pred_region
          %146 = vsyncadd [#allocation3], 0
          %s148 = sshll.u32 %s1, 4
          %s149 = int_to_ptr.vmem [resolvable:$true] %s148
          %151 = dma.vmem_to_smem %s149, 32, [#allocation2], [#allocation3]
        $region16: #{tpu_custom_call.1} parent=11 // pred_fallthru
          _
        // Predicated region
        $region17: #{tpu_custom_call.1} parent=11 // pred_check
          %p152 = pneg %p80
        $region18: #{tpu_custom_call.1} parent=11 // pred_check_branch
          %154 = sbr.rel (%p152) target = $region20
        $region19: #{tpu_custom_call.1} parent=11 // pred_region
          %156 = vsyncadd [#allocation5], 0
          %s158 = sshll.u32 %s2, 4
          %s159 = int_to_ptr.vmem [resolvable:$true] %s158
          %161 = dma.vmem_to_smem %s159, 16, [#allocation4], [#allocation5]
        $region20: #{tpu_custom_call.1} parent=11 // pred_fallthru
          _
        // Predicated region
        $region21: #{tpu_custom_call.1} parent=11 // pred_check
          %p162 = pneg %p101
        $region22: #{tpu_custom_call.1} parent=11 // pred_check_branch
          %164 = sbr.rel (%p162) target = $region24
        $region23: #{tpu_custom_call.1} parent=11 // pred_region
          %166 = vsyncadd [#allocation5], 0
          %s168 = sshll.u32 %s3, 4
          %s169 = int_to_ptr.vmem [resolvable:$true] %s168
          %171 = dma.vmem_to_smem %s169, 16, [#allocation6], [#allocation5]
        $region24: #{tpu_custom_call.1} parent=11 // pred_fallthru
          _
      $region12: #{tpu_custom_call.1} parent=5 // pred_fallthru
        _
      %p172 = scmp.lt.s32.totalorder %s12, 2
      // Predicated region
      $region25: #{tpu_custom_call.1} parent=5 // pred_check
        %p173 = pneg %p172
      $region26: #{tpu_custom_call.1} parent=5 // pred_check_branch
        %175 = sbr.rel (%p173) target = $region28
      $region27: #{tpu_custom_call.1} parent=5 // pred_region
        // Predicated region
        $region29: #{tpu_custom_call.1} parent=27 // pred_check
          %p176 = pneg %p32
        $region30: #{tpu_custom_call.1} parent=27 // pred_check_branch
          %178 = sbr.rel (%p176) target = $region32
        $region31: #{tpu_custom_call.1} parent=27 // pred_region
          %p179 = scmp.lt.s32.totalorder %s12, 1
          %s180 = scalar_select %p179, %s12, 1
          %s181 = smul.addr %s180, 10
          %s182 = smul.addr %s181, 8
          %s183 = scalar_lea.vmem %s0, %s182
        $region32: #{tpu_custom_call.1} parent=27 // pred_fallthru
          _
      $region28: #{tpu_custom_call.1} parent=5 // pred_fallthru
        _
      %p184 = scmp.le.s32.totalorder 1, %s12
      %p185 = scmp.lt.s32.totalorder %s12, 3
      %p186 = pnand %p184, %p185
      %p187 = pneg %p186
      // Predicated region
      $region33: #{tpu_custom_call.1} parent=5 // pred_check
        _
      $region34: #{tpu_custom_call.1} parent=5 // pred_check_branch
        %189 = sbr.rel (%p186) target = $region36
      $region35: #{tpu_custom_call.1} parent=5 // pred_region
        %s190 = ssub.s32 %s12, 1
        // Predicated region
        $region37: #{tpu_custom_call.1} parent=35 // pred_check
          %p191 = pneg %p59
        $region38: #{tpu_custom_call.1} parent=35 // pred_check_branch
          %193 = sbr.rel (%p191) target = $region40
        $region39: #{tpu_custom_call.1} parent=35 // pred_region
          %195 = dma.done [#allocation3], 32
        $region40: #{tpu_custom_call.1} parent=35 // pred_fallthru
          _
        // Predicated region
        $region41: #{tpu_custom_call.1} parent=35 // pred_check
          %p196 = pneg %p80
        $region42: #{tpu_custom_call.1} parent=35 // pred_check_branch
          %198 = sbr.rel (%p196) target = $region44
        $region43: #{tpu_custom_call.1} parent=35 // pred_region
          %200 = dma.done [#allocation5], 16
        $region44: #{tpu_custom_call.1} parent=35 // pred_fallthru
          _
        // Predicated region
        $region45: #{tpu_custom_call.1} parent=35 // pred_check
          %p201 = pneg %p101
        $region46: #{tpu_custom_call.1} parent=35 // pred_check_branch
          %203 = sbr.rel (%p201) target = $region48
        $region47: #{tpu_custom_call.1} parent=35 // pred_region
          %205 = dma.done [#allocation5], 16
        $region48: #{tpu_custom_call.1} parent=35 // pred_fallthru
          _
        %206 = sfence
        %p207 = scmp.lt.s32.totalorder %s17, 1
        %s208 = scalar_select %p207, %s17, 1
        %s209 = smul.addr %s208, 10
        %s210 = smul.addr %s209, 8
        %s211 = scalar_lea.vmem %s0, %s210
        %p212 = pneg %p38
        %p213 = pneg %p35
        %p214 = pneg %p59
        %p215 = pneg %p56
        %p216 = pneg %p80
        %p217 = pneg %p77
        %p218 = pneg %p101
        %p219 = pneg %p98
        %p220 = pneg %p127
        %p221 = pneg %p124
        %p222 = scmp.lt.s32.totalorder %s17, 1
        %s223 = scalar_select %p222, %s17, 1
        %s224 = smul.addr %s223, 8
        %s225 = smul.addr %s224, 8
        %s226 = scalar_lea.vmem %s4, %s225
        %p227 = scmp.lt.s32.totalorder %s17, 1
        %s228 = scalar_select %p227, %s17, 1
        %s229 = smul.addr %s228, 10
        %s230 = smul.addr %s229, 8
        %s231 = scalar_lea.vmem %s0, %s230
        %p232 = scmp.lt.s32.totalorder %s17, 1
        %s233 = scalar_select %p232, %s17, 1
        %s234 = smul.addr %s233, 8
        %s235 = smul.addr %s234, 8
        %s236 = scalar_lea.vmem %s4, %s235
        %v237 = vld [vmem:[%s231] sm:$0xff]
        %v238 = vld [vmem:[%s231 + $0x8] sm:$0xf]
        %s239 = sld [smem:[#allocation2]]
        %v240 = vstv %s239
        %v241 = vmul.f32 %v240, %v237
        %v242 = vmul.f32 %v240, %v238
        %v243 = vadd.f32 %v241, 0.0
        %v244 = vadd.f32 %v242, 0.0
        %s245 = sld [smem:[#allocation2 + $0x2d]]
        %v246 = vstv %s245
        %v247 = vmul.f32 %v246, %v237
        %v248 = vmul.f32 %v246, %v238
        %v249 = vadd.f32 %v247, 0.0
        %v250 = vadd.f32 %v248, 0.0
        %s251 = sld [smem:[#allocation2 + $0x5a]]
        %v252 = vstv %s251
        %v253 = vmul.f32 %v252, %v237
        %v254 = vmul.f32 %v252, %v238
        %v255 = vadd.f32 %v253, 0.0
        %v256 = vadd.f32 %v254, 0.0
        %s257 = sld [smem:[#allocation2 + $0x87]]
        %v258 = vstv %s257
        %v259 = vmul.f32 %v258, %v237
        %v260 = vmul.f32 %v258, %v238
        %v261 = vadd.f32 %v259, 0.0
        %v262 = vadd.f32 %v260, 0.0
        %s263 = sld [smem:[#allocation2 + $0x1]]
        %v264 = vstv %s263
        %v265 = vmul.f32 %v264, %v237
        %v266 = vmul.f32 %v264, %v238
        %269 = vrot.lane.b32.xlu0 %v265, 127
        %v270 = vpop.permute.xlu0 %269
        %271 = vrot.lane.b32.xlu0 %v266, 127
        %v272 = vpop.permute.xlu0 %271
        %v275 = vadd.f32 %v243, %v270
        %v276 = vadd.f32 %v244, %v272
        %s277 = sld [smem:[#allocation2 + $0x2e]]
        %v278 = vstv %s277
        %v279 = vmul.f32 %v278, %v237
        %v280 = vmul.f32 %v278, %v238
        %283 = vrot.lane.b32.xlu0 %v279, 127
        %v284 = vpop.permute.xlu0 %283
        %285 = vrot.lane.b32.xlu0 %v280, 127
        %v286 = vpop.permute.xlu0 %285
        %v289 = vadd.f32 %v249, %v284
        %v290 = vadd.f32 %v250, %v286
        %s291 = sld [smem:[#allocation2 + $0x5b]]
        %v292 = vstv %s291
        %v293 = vmul.f32 %v292, %v237
        %v294 = vmul.f32 %v292, %v238
        %297 = vrot.lane.b32.xlu0 %v293, 127
        %v298 = vpop.permute.xlu0 %297
        %299 = vrot.lane.b32.xlu0 %v294, 127
        %v300 = vpop.permute.xlu0 %299
        %v303 = vadd.f32 %v255, %v298
        %v304 = vadd.f32 %v256, %v300
        %s305 = sld [smem:[#allocation2 + $0x88]]
        %v306 = vstv %s305
        %v307 = vmul.f32 %v306, %v237
        %v308 = vmul.f32 %v306, %v238
        %311 = vrot.lane.b32.xlu0 %v307, 127
        %v312 = vpop.permute.xlu0 %311
        %313 = vrot.lane.b32.xlu0 %v308, 127
        %v314 = vpop.permute.xlu0 %313
        %v317 = vadd.f32 %v261, %v312
        %v318 = vadd.f32 %v262, %v314
        %s319 = sld [smem:[#allocation2 + $0x2]]
        %v320 = vstv %s319
        %v321 = vmul.f32 %v320, %v237
        %v322 = vmul.f32 %v320, %v238
        %325 = vrot.lane.b32.xlu0 %v321, 126
        %v326 = vpop.permute.xlu0 %325
        %327 = vrot.lane.b32.xlu0 %v322, 126
        %v328 = vpop.permute.xlu0 %327
        %v331 = vadd.f32 %v275, %v326
        %v332 = vadd.f32 %v276, %v328
        %s333 = sld [smem:[#allocation2 + $0x2f]]
        %v334 = vstv %s333
        %v335 = vmul.f32 %v334, %v237
        %v336 = vmul.f32 %v334, %v238
        %339 = vrot.lane.b32.xlu0 %v335, 126
        %v340 = vpop.permute.xlu0 %339
        %341 = vrot.lane.b32.xlu0 %v336, 126
        %v342 = vpop.permute.xlu0 %341
        %v345 = vadd.f32 %v289, %v340
        %v346 = vadd.f32 %v290, %v342
        %s347 = sld [smem:[#allocation2 + $0x5c]]
        %v348 = vstv %s347
        %v349 = vmul.f32 %v348, %v237
        %v350 = vmul.f32 %v348, %v238
        %353 = vrot.lane.b32.xlu0 %v349, 126
        %v354 = vpop.permute.xlu0 %353
        %355 = vrot.lane.b32.xlu0 %v350, 126
        %v356 = vpop.permute.xlu0 %355
        %v359 = vadd.f32 %v303, %v354
        %v360 = vadd.f32 %v304, %v356
        %s361 = sld [smem:[#allocation2 + $0x89]]
        %v362 = vstv %s361
        %v363 = vmul.f32 %v362, %v237
        %v364 = vmul.f32 %v362, %v238
        %367 = vrot.lane.b32.xlu0 %v363, 126
        %v368 = vpop.permute.xlu0 %367
        %369 = vrot.lane.b32.xlu0 %v364, 126
        %v370 = vpop.permute.xlu0 %369
        %v373 = vadd.f32 %v317, %v368
        %v374 = vadd.f32 %v318, %v370
        %v375 = vld [vmem:[%s231 + $0x1] sm:$0xff]
        %v376 = vld [vmem:[%s231 + $0x9] sm:$0xf]
        %s377 = sld [smem:[#allocation2 + $0x3]]
        %v378 = vstv %s377
        %v379 = vmul.f32 %v378, %v375
        %v380 = vmul.f32 %v378, %v376
        %v381 = vadd.f32 %v331, %v379
        %v382 = vadd.f32 %v332, %v380
        %s383 = sld [smem:[#allocation2 + $0x30]]
        %v384 = vstv %s383
        %v385 = vmul.f32 %v384, %v375
        %v386 = vmul.f32 %v384, %v376
        %v387 = vadd.f32 %v345, %v385
        %v388 = vadd.f32 %v346, %v386
        %s389 = sld [smem:[#allocation2 + $0x5d]]
        %v390 = vstv %s389
        %v391 = vmul.f32 %v390, %v375
        %v392 = vmul.f32 %v390, %v376
        %v393 = vadd.f32 %v359, %v391
        %v394 = vadd.f32 %v360, %v392
        %s395 = sld [smem:[#allocation2 + $0x8a]]
        %v396 = vstv %s395
        %v397 = vmul.f32 %v396, %v375
        %v398 = vmul.f32 %v396, %v376
        %v399 = vadd.f32 %v373, %v397
        %v400 = vadd.f32 %v374, %v398
        %s401 = sld [smem:[#allocation2 + $0x4]]
        %v402 = vstv %s401
        %v403 = vmul.f32 %v402, %v375
        %v404 = vmul.f32 %v402, %v376
        %407 = vrot.lane.b32.xlu0 %v403, 127
        %v408 = vpop.permute.xlu0 %407
        %409 = vrot.lane.b32.xlu0 %v404, 127
        %v410 = vpop.permute.xlu0 %409
        %v413 = vadd.f32 %v381, %v408
        %v414 = vadd.f32 %v382, %v410
        %s415 = sld [smem:[#allocation2 + $0x31]]
        %v416 = vstv %s415
        %v417 = vmul.f32 %v416, %v375
        %v418 = vmul.f32 %v416, %v376
        %421 = vrot.lane.b32.xlu0 %v417, 127
        %v422 = vpop.permute.xlu0 %421
        %423 = vrot.lane.b32.xlu0 %v418, 127
        %v424 = vpop.permute.xlu0 %423
        %v427 = vadd.f32 %v387, %v422
        %v428 = vadd.f32 %v388, %v424
        %s429 = sld [smem:[#allocation2 + $0x5e]]
        %v430 = vstv %s429
        %v431 = vmul.f32 %v430, %v375
        %v432 = vmul.f32 %v430, %v376
        %435 = vrot.lane.b32.xlu0 %v431, 127
        %v436 = vpop.permute.xlu0 %435
        %437 = vrot.lane.b32.xlu0 %v432, 127
        %v438 = vpop.permute.xlu0 %437
        %v441 = vadd.f32 %v393, %v436
        %v442 = vadd.f32 %v394, %v438
        %s443 = sld [smem:[#allocation2 + $0x8b]]
        %v444 = vstv %s443
        %v445 = vmul.f32 %v444, %v375
        %v446 = vmul.f32 %v444, %v376
        %449 = vrot.lane.b32.xlu0 %v445, 127
        %v450 = vpop.permute.xlu0 %449
        %451 = vrot.lane.b32.xlu0 %v446, 127
        %v452 = vpop.permute.xlu0 %451
        %v455 = vadd.f32 %v399, %v450
        %v456 = vadd.f32 %v400, %v452
        %s457 = sld [smem:[#allocation2 + $0x5]]
        %v458 = vstv %s457
        %v459 = vmul.f32 %v458, %v375
        %v460 = vmul.f32 %v458, %v376
        %463 = vrot.lane.b32.xlu0 %v459, 126
        %v464 = vpop.permute.xlu0 %463
        %465 = vrot.lane.b32.xlu0 %v460, 126
        %v466 = vpop.permute.xlu0 %465
        %v469 = vadd.f32 %v413, %v464
        %v470 = vadd.f32 %v414, %v466
        %s471 = sld [smem:[#allocation2 + $0x32]]
        %v472 = vstv %s471
        %v473 = vmul.f32 %v472, %v375
        %v474 = vmul.f32 %v472, %v376
        %477 = vrot.lane.b32.xlu0 %v473, 126
        %v478 = vpop.permute.xlu0 %477
        %479 = vrot.lane.b32.xlu0 %v474, 126
        %v480 = vpop.permute.xlu0 %479
        %v483 = vadd.f32 %v427, %v478
        %v484 = vadd.f32 %v428, %v480
        %s485 = sld [smem:[#allocation2 + $0x5f]]
        %v486 = vstv %s485
        %v487 = vmul.f32 %v486, %v375
        %v488 = vmul.f32 %v486, %v376
        %491 = vrot.lane.b32.xlu0 %v487, 126
        %v492 = vpop.permute.xlu0 %491
        %493 = vrot.lane.b32.xlu0 %v488, 126
        %v494 = vpop.permute.xlu0 %493
        %v497 = vadd.f32 %v441, %v492
        %v498 = vadd.f32 %v442, %v494
        %s499 = sld [smem:[#allocation2 + $0x8c]]
        %v500 = vstv %s499
        %v501 = vmul.f32 %v500, %v375
        %v502 = vmul.f32 %v500, %v376
        %505 = vrot.lane.b32.xlu0 %v501, 126
        %v506 = vpop.permute.xlu0 %505
        %507 = vrot.lane.b32.xlu0 %v502, 126
        %v508 = vpop.permute.xlu0 %507
        %v511 = vadd.f32 %v455, %v506
        %v512 = vadd.f32 %v456, %v508
        %v513 = vld [vmem:[%s231 + $0x2] sm:$0xff]
        %v514 = vld [vmem:[%s231 + $0xa] sm:$0xf]
        %s515 = sld [smem:[#allocation2 + $0x6]]
        %v516 = vstv %s515
        %v517 = vmul.f32 %v516, %v513
        %v518 = vmul.f32 %v516, %v514
        %v519 = vadd.f32 %v469, %v517
        %v520 = vadd.f32 %v470, %v518
        %s521 = sld [smem:[#allocation2 + $0x33]]
        %v522 = vstv %s521
        %v523 = vmul.f32 %v522, %v513
        %v524 = vmul.f32 %v522, %v514
        %v525 = vadd.f32 %v483, %v523
        %v526 = vadd.f32 %v484, %v524
        %s527 = sld [smem:[#allocation2 + $0x60]]
        %v528 = vstv %s527
        %v529 = vmul.f32 %v528, %v513
        %v530 = vmul.f32 %v528, %v514
        %v531 = vadd.f32 %v497, %v529
        %v532 = vadd.f32 %v498, %v530
        %s533 = sld [smem:[#allocation2 + $0x8d]]
        %v534 = vstv %s533
        %v535 = vmul.f32 %v534, %v513
        %v536 = vmul.f32 %v534, %v514
        %v537 = vadd.f32 %v511, %v535
        %v538 = vadd.f32 %v512, %v536
        %s539 = sld [smem:[#allocation2 + $0x7]]
        %v540 = vstv %s539
        %v541 = vmul.f32 %v540, %v513
        %v542 = vmul.f32 %v540, %v514
        %545 = vrot.lane.b32.xlu0 %v541, 127
        %v546 = vpop.permute.xlu0 %545
        %547 = vrot.lane.b32.xlu0 %v542, 127
        %v548 = vpop.permute.xlu0 %547
        %v551 = vadd.f32 %v519, %v546
        %v552 = vadd.f32 %v520, %v548
        %s553 = sld [smem:[#allocation2 + $0x34]]
        %v554 = vstv %s553
        %v555 = vmul.f32 %v554, %v513
        %v556 = vmul.f32 %v554, %v514
        %559 = vrot.lane.b32.xlu0 %v555, 127
        %v560 = vpop.permute.xlu0 %559
        %561 = vrot.lane.b32.xlu0 %v556, 127
        %v562 = vpop.permute.xlu0 %561
        %v565 = vadd.f32 %v525, %v560
        %v566 = vadd.f32 %v526, %v562
        %s567 = sld [smem:[#allocation2 + $0x61]]
        %v568 = vstv %s567
        %v569 = vmul.f32 %v568, %v513
        %v570 = vmul.f32 %v568, %v514
        %573 = vrot.lane.b32.xlu0 %v569, 127
        %v574 = vpop.permute.xlu0 %573
        %575 = vrot.lane.b32.xlu0 %v570, 127
        %v576 = vpop.permute.xlu0 %575
        %v579 = vadd.f32 %v531, %v574
        %v580 = vadd.f32 %v532, %v576
        %s581 = sld [smem:[#allocation2 + $0x8e]]
        %v582 = vstv %s581
        %v583 = vmul.f32 %v582, %v513
        %v584 = vmul.f32 %v582, %v514
        %587 = vrot.lane.b32.xlu0 %v583, 127
        %v588 = vpop.permute.xlu0 %587
        %589 = vrot.lane.b32.xlu0 %v584, 127
        %v590 = vpop.permute.xlu0 %589
        %v593 = vadd.f32 %v537, %v588
        %v594 = vadd.f32 %v538, %v590
        %s595 = sld [smem:[#allocation2 + $0x8]]
        %v596 = vstv %s595
        %v597 = vmul.f32 %v596, %v513
        %v598 = vmul.f32 %v596, %v514
        %601 = vrot.lane.b32.xlu0 %v597, 126
        %v602 = vpop.permute.xlu0 %601
        %603 = vrot.lane.b32.xlu0 %v598, 126
        %v604 = vpop.permute.xlu0 %603
        %v607 = vadd.f32 %v551, %v602
        %v608 = vadd.f32 %v552, %v604
        %s609 = sld [smem:[#allocation2 + $0x35]]
        %v610 = vstv %s609
        %v611 = vmul.f32 %v610, %v513
        %v612 = vmul.f32 %v610, %v514
        %615 = vrot.lane.b32.xlu0 %v611, 126
        %v616 = vpop.permute.xlu0 %615
        %617 = vrot.lane.b32.xlu0 %v612, 126
        %v618 = vpop.permute.xlu0 %617
        %v621 = vadd.f32 %v565, %v616
        %v622 = vadd.f32 %v566, %v618
        %s623 = sld [smem:[#allocation2 + $0x62]]
        %v624 = vstv %s623
        %v625 = vmul.f32 %v624, %v513
        %v626 = vmul.f32 %v624, %v514
        %629 = vrot.lane.b32.xlu0 %v625, 126
        %v630 = vpop.permute.xlu0 %629
        %631 = vrot.lane.b32.xlu0 %v626, 126
        %v632 = vpop.permute.xlu0 %631
        %v635 = vadd.f32 %v579, %v630
        %v636 = vadd.f32 %v580, %v632
        %s637 = sld [smem:[#allocation2 + $0x8f]]
        %v638 = vstv %s637
        %v639 = vmul.f32 %v638, %v513
        %v640 = vmul.f32 %v638, %v514
        %643 = vrot.lane.b32.xlu0 %v639, 126
        %v644 = vpop.permute.xlu0 %643
        %645 = vrot.lane.b32.xlu0 %v640, 126
        %v646 = vpop.permute.xlu0 %645
        %v649 = vadd.f32 %v593, %v644
        %v650 = vadd.f32 %v594, %v646
        %s651 = scalar_lea.vmem %s231, 16
        %v652 = vld [vmem:[%s651] sm:$0xff]
        %v653 = vld [vmem:[%s651 + $0x8] sm:$0xf]
        %s654 = sld [smem:[#allocation2 + $0x9]]
        %v655 = vstv %s654
        %v656 = vmul.f32 %v655, %v652
        %v657 = vmul.f32 %v655, %v653
        %v658 = vadd.f32 %v607, %v656
        %v659 = vadd.f32 %v608, %v657
        %s660 = sld [smem:[#allocation2 + $0x36]]
        %v661 = vstv %s660
        %v662 = vmul.f32 %v661, %v652
        %v663 = vmul.f32 %v661, %v653
        %v664 = vadd.f32 %v621, %v662
        %v665 = vadd.f32 %v622, %v663
        %s666 = sld [smem:[#allocation2 + $0x63]]
        %v667 = vstv %s666
        %v668 = vmul.f32 %v667, %v652
        %v669 = vmul.f32 %v667, %v653
        %v670 = vadd.f32 %v635, %v668
        %v671 = vadd.f32 %v636, %v669
        %s672 = sld [smem:[#allocation2 + $0x90]]
        %v673 = vstv %s672
        %v674 = vmul.f32 %v673, %v652
        %v675 = vmul.f32 %v673, %v653
        %v676 = vadd.f32 %v649, %v674
        %v677 = vadd.f32 %v650, %v675
        %s678 = sld [smem:[#allocation2 + $0xa]]
        %v679 = vstv %s678
        %v680 = vmul.f32 %v679, %v652
        %v681 = vmul.f32 %v679, %v653
        %684 = vrot.lane.b32.xlu0 %v680, 127
        %v685 = vpop.permute.xlu0 %684
        %686 = vrot.lane.b32.xlu0 %v681, 127
        %v687 = vpop.permute.xlu0 %686
        %v690 = vadd.f32 %v658, %v685
        %v691 = vadd.f32 %v659, %v687
        %s692 = sld [smem:[#allocation2 + $0x37]]
        %v693 = vstv %s692
        %v694 = vmul.f32 %v693, %v652
        %v695 = vmul.f32 %v693, %v653
        %698 = vrot.lane.b32.xlu0 %v694, 127
        %v699 = vpop.permute.xlu0 %698
        %700 = vrot.lane.b32.xlu0 %v695, 127
        %v701 = vpop.permute.xlu0 %700
        %v704 = vadd.f32 %v664, %v699
        %v705 = vadd.f32 %v665, %v701
        %s706 = sld [smem:[#allocation2 + $0x64]]
        %v707 = vstv %s706
        %v708 = vmul.f32 %v707, %v652
        %v709 = vmul.f32 %v707, %v653
        %712 = vrot.lane.b32.xlu0 %v708, 127
        %v713 = vpop.permute.xlu0 %712
        %714 = vrot.lane.b32.xlu0 %v709, 127
        %v715 = vpop.permute.xlu0 %714
        %v718 = vadd.f32 %v670, %v713
        %v719 = vadd.f32 %v671, %v715
        %s720 = sld [smem:[#allocation2 + $0x91]]
        %v721 = vstv %s720
        %v722 = vmul.f32 %v721, %v652
        %v723 = vmul.f32 %v721, %v653
        %726 = vrot.lane.b32.xlu0 %v722, 127
        %v727 = vpop.permute.xlu0 %726
        %728 = vrot.lane.b32.xlu0 %v723, 127
        %v729 = vpop.permute.xlu0 %728
        %v732 = vadd.f32 %v676, %v727
        %v733 = vadd.f32 %v677, %v729
        %s734 = sld [smem:[#allocation2 + $0xb]]
        %v735 = vstv %s734
        %v736 = vmul.f32 %v735, %v652
        %v737 = vmul.f32 %v735, %v653
        %740 = vrot.lane.b32.xlu0 %v736, 126
        %v741 = vpop.permute.xlu0 %740
        %742 = vrot.lane.b32.xlu0 %v737, 126
        %v743 = vpop.permute.xlu0 %742
        %v746 = vadd.f32 %v690, %v741
        %v747 = vadd.f32 %v691, %v743
        %s748 = sld [smem:[#allocation2 + $0x38]]
        %v749 = vstv %s748
        %v750 = vmul.f32 %v749, %v652
        %v751 = vmul.f32 %v749, %v653
        %754 = vrot.lane.b32.xlu0 %v750, 126
        %v755 = vpop.permute.xlu0 %754
        %756 = vrot.lane.b32.xlu0 %v751, 126
        %v757 = vpop.permute.xlu0 %756
        %v760 = vadd.f32 %v704, %v755
        %v761 = vadd.f32 %v705, %v757
        %s762 = sld [smem:[#allocation2 + $0x65]]
        %v763 = vstv %s762
        %v764 = vmul.f32 %v763, %v652
        %v765 = vmul.f32 %v763, %v653
        %768 = vrot.lane.b32.xlu0 %v764, 126
        %v769 = vpop.permute.xlu0 %768
        %770 = vrot.lane.b32.xlu0 %v765, 126
        %v771 = vpop.permute.xlu0 %770
        %v774 = vadd.f32 %v718, %v769
        %v775 = vadd.f32 %v719, %v771
        %s776 = sld [smem:[#allocation2 + $0x92]]
        %v777 = vstv %s776
        %v778 = vmul.f32 %v777, %v652
        %v779 = vmul.f32 %v777, %v653
        %782 = vrot.lane.b32.xlu0 %v778, 126
        %v783 = vpop.permute.xlu0 %782
        %784 = vrot.lane.b32.xlu0 %v779, 126
        %v785 = vpop.permute.xlu0 %784
        %v788 = vadd.f32 %v732, %v783
        %v789 = vadd.f32 %v733, %v785
        %v790 = vld [vmem:[%s651 + $0x1] sm:$0xff]
        %v791 = vld [vmem:[%s651 + $0x9] sm:$0xf]
        %s792 = sld [smem:[#allocation2 + $0xc]]
        %v793 = vstv %s792
        %v794 = vmul.f32 %v793, %v790
        %v795 = vmul.f32 %v793, %v791
        %v796 = vadd.f32 %v746, %v794
        %v797 = vadd.f32 %v747, %v795
        %s798 = sld [smem:[#allocation2 + $0x39]]
        %v799 = vstv %s798
        %v800 = vmul.f32 %v799, %v790
        %v801 = vmul.f32 %v799, %v791
        %v802 = vadd.f32 %v760, %v800
        %v803 = vadd.f32 %v761, %v801
        %s804 = sld [smem:[#allocation2 + $0x66]]
        %v805 = vstv %s804
        %v806 = vmul.f32 %v805, %v790
        %v807 = vmul.f32 %v805, %v791
        %v808 = vadd.f32 %v774, %v806
        %v809 = vadd.f32 %v775, %v807
        %s810 = sld [smem:[#allocation2 + $0x93]]
        %v811 = vstv %s810
        %v812 = vmul.f32 %v811, %v790
        %v813 = vmul.f32 %v811, %v791
        %v814 = vadd.f32 %v788, %v812
        %v815 = vadd.f32 %v789, %v813
        %s816 = sld [smem:[#allocation2 + $0xd]]
        %v817 = vstv %s816
        %v818 = vmul.f32 %v817, %v790
        %v819 = vmul.f32 %v817, %v791
        %822 = vrot.lane.b32.xlu0 %v818, 127
        %v823 = vpop.permute.xlu0 %822
        %824 = vrot.lane.b32.xlu0 %v819, 127
        %v825 = vpop.permute.xlu0 %824
        %v828 = vadd.f32 %v796, %v823
        %v829 = vadd.f32 %v797, %v825
        %s830 = sld [smem:[#allocation2 + $0x3a]]
        %v831 = vstv %s830
        %v832 = vmul.f32 %v831, %v790
        %v833 = vmul.f32 %v831, %v791
        %836 = vrot.lane.b32.xlu0 %v832, 127
        %v837 = vpop.permute.xlu0 %836
        %838 = vrot.lane.b32.xlu0 %v833, 127
        %v839 = vpop.permute.xlu0 %838
        %v842 = vadd.f32 %v802, %v837
        %v843 = vadd.f32 %v803, %v839
        %s844 = sld [smem:[#allocation2 + $0x67]]
        %v845 = vstv %s844
        %v846 = vmul.f32 %v845, %v790
        %v847 = vmul.f32 %v845, %v791
        %850 = vrot.lane.b32.xlu0 %v846, 127
        %v851 = vpop.permute.xlu0 %850
        %852 = vrot.lane.b32.xlu0 %v847, 127
        %v853 = vpop.permute.xlu0 %852
        %v856 = vadd.f32 %v808, %v851
        %v857 = vadd.f32 %v809, %v853
        %s858 = sld [smem:[#allocation2 + $0x94]]
        %v859 = vstv %s858
        %v860 = vmul.f32 %v859, %v790
        %v861 = vmul.f32 %v859, %v791
        %864 = vrot.lane.b32.xlu0 %v860, 127
        %v865 = vpop.permute.xlu0 %864
        %866 = vrot.lane.b32.xlu0 %v861, 127
        %v867 = vpop.permute.xlu0 %866
        %v870 = vadd.f32 %v814, %v865
        %v871 = vadd.f32 %v815, %v867
        %s872 = sld [smem:[#allocation2 + $0xe]]
        %v873 = vstv %s872
        %v874 = vmul.f32 %v873, %v790
        %v875 = vmul.f32 %v873, %v791
        %878 = vrot.lane.b32.xlu0 %v874, 126
        %v879 = vpop.permute.xlu0 %878
        %880 = vrot.lane.b32.xlu0 %v875, 126
        %v881 = vpop.permute.xlu0 %880
        %v884 = vadd.f32 %v828, %v879
        %v885 = vadd.f32 %v829, %v881
        %s886 = sld [smem:[#allocation2 + $0x3b]]
        %v887 = vstv %s886
        %v888 = vmul.f32 %v887, %v790
        %v889 = vmul.f32 %v887, %v791
        %892 = vrot.lane.b32.xlu0 %v888, 126
        %v893 = vpop.permute.xlu0 %892
        %894 = vrot.lane.b32.xlu0 %v889, 126
        %v895 = vpop.permute.xlu0 %894
        %v898 = vadd.f32 %v842, %v893
        %v899 = vadd.f32 %v843, %v895
        %s900 = sld [smem:[#allocation2 + $0x68]]
        %v901 = vstv %s900
        %v902 = vmul.f32 %v901, %v790
        %v903 = vmul.f32 %v901, %v791
        %906 = vrot.lane.b32.xlu0 %v902, 126
        %v907 = vpop.permute.xlu0 %906
        %908 = vrot.lane.b32.xlu0 %v903, 126
        %v909 = vpop.permute.xlu0 %908
        %v912 = vadd.f32 %v856, %v907
        %v913 = vadd.f32 %v857, %v909
        %s914 = sld [smem:[#allocation2 + $0x95]]
        %v915 = vstv %s914
        %v916 = vmul.f32 %v915, %v790
        %v917 = vmul.f32 %v915, %v791
        %920 = vrot.lane.b32.xlu0 %v916, 126
        %v921 = vpop.permute.xlu0 %920
        %922 = vrot.lane.b32.xlu0 %v917, 126
        %v923 = vpop.permute.xlu0 %922
        %v926 = vadd.f32 %v870, %v921
        %v927 = vadd.f32 %v871, %v923
        %v928 = vld [vmem:[%s651 + $0x2] sm:$0xff]
        %v929 = vld [vmem:[%s651 + $0xa] sm:$0xf]
        %s930 = sld [smem:[#allocation2 + $0xf]]
        %v931 = vstv %s930
        %v932 = vmul.f32 %v931, %v928
        %v933 = vmul.f32 %v931, %v929
        %v934 = vadd.f32 %v884, %v932
        %v935 = vadd.f32 %v885, %v933
        %s936 = sld [smem:[#allocation2 + $0x3c]]
        %v937 = vstv %s936
        %v938 = vmul.f32 %v937, %v928
        %v939 = vmul.f32 %v937, %v929
        %v940 = vadd.f32 %v898, %v938
        %v941 = vadd.f32 %v899, %v939
        %s942 = sld [smem:[#allocation2 + $0x69]]
        %v943 = vstv %s942
        %v944 = vmul.f32 %v943, %v928
        %v945 = vmul.f32 %v943, %v929
        %v946 = vadd.f32 %v912, %v944
        %v947 = vadd.f32 %v913, %v945
        %s948 = sld [smem:[#allocation2 + $0x96]]
        %v949 = vstv %s948
        %v950 = vmul.f32 %v949, %v928
        %v951 = vmul.f32 %v949, %v929
        %v952 = vadd.f32 %v926, %v950
        %v953 = vadd.f32 %v927, %v951
        %s954 = sld [smem:[#allocation2 + $0x10]]
        %v955 = vstv %s954
        %v956 = vmul.f32 %v955, %v928
        %v957 = vmul.f32 %v955, %v929
        %960 = vrot.lane.b32.xlu0 %v956, 127
        %v961 = vpop.permute.xlu0 %960
        %962 = vrot.lane.b32.xlu0 %v957, 127
        %v963 = vpop.permute.xlu0 %962
        %v966 = vadd.f32 %v934, %v961
        %v967 = vadd.f32 %v935, %v963
        %s968 = sld [smem:[#allocation2 + $0x3d]]
        %v969 = vstv %s968
        %v970 = vmul.f32 %v969, %v928
        %v971 = vmul.f32 %v969, %v929
        %974 = vrot.lane.b32.xlu0 %v970, 127
        %v975 = vpop.permute.xlu0 %974
        %976 = vrot.lane.b32.xlu0 %v971, 127
        %v977 = vpop.permute.xlu0 %976
        %v980 = vadd.f32 %v940, %v975
        %v981 = vadd.f32 %v941, %v977
        %s982 = sld [smem:[#allocation2 + $0x6a]]
        %v983 = vstv %s982
        %v984 = vmul.f32 %v983, %v928
        %v985 = vmul.f32 %v983, %v929
        %988 = vrot.lane.b32.xlu0 %v984, 127
        %v989 = vpop.permute.xlu0 %988
        %990 = vrot.lane.b32.xlu0 %v985, 127
        %v991 = vpop.permute.xlu0 %990
        %v994 = vadd.f32 %v946, %v989
        %v995 = vadd.f32 %v947, %v991
        %s996 = sld [smem:[#allocation2 + $0x97]]
        %v997 = vstv %s996
        %v998 = vmul.f32 %v997, %v928
        %v999 = vmul.f32 %v997, %v929
        %1002 = vrot.lane.b32.xlu0 %v998, 127
        %v1003 = vpop.permute.xlu0 %1002
        %1004 = vrot.lane.b32.xlu0 %v999, 127
        %v1005 = vpop.permute.xlu0 %1004
        %v1008 = vadd.f32 %v952, %v1003
        %v1009 = vadd.f32 %v953, %v1005
        %s1010 = sld [smem:[#allocation2 + $0x11]]
        %v1011 = vstv %s1010
        %v1012 = vmul.f32 %v1011, %v928
        %v1013 = vmul.f32 %v1011, %v929
        %1016 = vrot.lane.b32.xlu0 %v1012, 126
        %v1017 = vpop.permute.xlu0 %1016
        %1018 = vrot.lane.b32.xlu0 %v1013, 126
        %v1019 = vpop.permute.xlu0 %1018
        %v1022 = vadd.f32 %v966, %v1017
        %v1023 = vadd.f32 %v967, %v1019
        %s1024 = sld [smem:[#allocation2 + $0x3e]]
        %v1025 = vstv %s1024
        %v1026 = vmul.f32 %v1025, %v928
        %v1027 = vmul.f32 %v1025, %v929
        %1030 = vrot.lane.b32.xlu0 %v1026, 126
        %v1031 = vpop.permute.xlu0 %1030
        %1032 = vrot.lane.b32.xlu0 %v1027, 126
        %v1033 = vpop.permute.xlu0 %1032
        %v1036 = vadd.f32 %v980, %v1031
        %v1037 = vadd.f32 %v981, %v1033
        %s1038 = sld [smem:[#allocation2 + $0x6b]]
        %v1039 = vstv %s1038
        %v1040 = vmul.f32 %v1039, %v928
        %v1041 = vmul.f32 %v1039, %v929
        %1044 = vrot.lane.b32.xlu0 %v1040, 126
        %v1045 = vpop.permute.xlu0 %1044
        %1046 = vrot.lane.b32.xlu0 %v1041, 126
        %v1047 = vpop.permute.xlu0 %1046
        %v1050 = vadd.f32 %v994, %v1045
        %v1051 = vadd.f32 %v995, %v1047
        %s1052 = sld [smem:[#allocation2 + $0x98]]
        %v1053 = vstv %s1052
        %v1054 = vmul.f32 %v1053, %v928
        %v1055 = vmul.f32 %v1053, %v929
        %1058 = vrot.lane.b32.xlu0 %v1054, 126
        %v1059 = vpop.permute.xlu0 %1058
        %1060 = vrot.lane.b32.xlu0 %v1055, 126
        %v1061 = vpop.permute.xlu0 %1060
        %v1064 = vadd.f32 %v1008, %v1059
        %v1065 = vadd.f32 %v1009, %v1061
        %s1066 = scalar_lea.vmem %s231, 32
        %v1067 = vld [vmem:[%s1066] sm:$0xff]
        %v1068 = vld [vmem:[%s1066 + $0x8] sm:$0xf]
        %s1069 = sld [smem:[#allocation2 + $0x12]]
        %v1070 = vstv %s1069
        %v1071 = vmul.f32 %v1070, %v1067
        %v1072 = vmul.f32 %v1070, %v1068
        %v1073 = vadd.f32 %v1022, %v1071
        %v1074 = vadd.f32 %v1023, %v1072
        %s1075 = sld [smem:[#allocation2 + $0x3f]]
        %v1076 = vstv %s1075
        %v1077 = vmul.f32 %v1076, %v1067
        %v1078 = vmul.f32 %v1076, %v1068
        %v1079 = vadd.f32 %v1036, %v1077
        %v1080 = vadd.f32 %v1037, %v1078
        %s1081 = sld [smem:[#allocation2 + $0x6c]]
        %v1082 = vstv %s1081
        %v1083 = vmul.f32 %v1082, %v1067
        %v1084 = vmul.f32 %v1082, %v1068
        %v1085 = vadd.f32 %v1050, %v1083
        %v1086 = vadd.f32 %v1051, %v1084
        %s1087 = sld [smem:[#allocation2 + $0x99]]
        %v1088 = vstv %s1087
        %v1089 = vmul.f32 %v1088, %v1067
        %v1090 = vmul.f32 %v1088, %v1068
        %v1091 = vadd.f32 %v1064, %v1089
        %v1092 = vadd.f32 %v1065, %v1090
        %s1093 = sld [smem:[#allocation2 + $0x13]]
        %v1094 = vstv %s1093
        %v1095 = vmul.f32 %v1094, %v1067
        %v1096 = vmul.f32 %v1094, %v1068
        %1099 = vrot.lane.b32.xlu0 %v1095, 127
        %v1100 = vpop.permute.xlu0 %1099
        %1101 = vrot.lane.b32.xlu0 %v1096, 127
        %v1102 = vpop.permute.xlu0 %1101
        %v1105 = vadd.f32 %v1073, %v1100
        %v1106 = vadd.f32 %v1074, %v1102
        %s1107 = sld [smem:[#allocation2 + $0x40]]
        %v1108 = vstv %s1107
        %v1109 = vmul.f32 %v1108, %v1067
        %v1110 = vmul.f32 %v1108, %v1068
        %1113 = vrot.lane.b32.xlu0 %v1109, 127
        %v1114 = vpop.permute.xlu0 %1113
        %1115 = vrot.lane.b32.xlu0 %v1110, 127
        %v1116 = vpop.permute.xlu0 %1115
        %v1119 = vadd.f32 %v1079, %v1114
        %v1120 = vadd.f32 %v1080, %v1116
        %s1121 = sld [smem:[#allocation2 + $0x6d]]
        %v1122 = vstv %s1121
        %v1123 = vmul.f32 %v1122, %v1067
        %v1124 = vmul.f32 %v1122, %v1068
        %1127 = vrot.lane.b32.xlu0 %v1123, 127
        %v1128 = vpop.permute.xlu0 %1127
        %1129 = vrot.lane.b32.xlu0 %v1124, 127
        %v1130 = vpop.permute.xlu0 %1129
        %v1133 = vadd.f32 %v1085, %v1128
        %v1134 = vadd.f32 %v1086, %v1130
        %s1135 = sld [smem:[#allocation2 + $0x9a]]
        %v1136 = vstv %s1135
        %v1137 = vmul.f32 %v1136, %v1067
        %v1138 = vmul.f32 %v1136, %v1068
        %1141 = vrot.lane.b32.xlu0 %v1137, 127
        %v1142 = vpop.permute.xlu0 %1141
        %1143 = vrot.lane.b32.xlu0 %v1138, 127
        %v1144 = vpop.permute.xlu0 %1143
        %v1147 = vadd.f32 %v1091, %v1142
        %v1148 = vadd.f32 %v1092, %v1144
        %s1149 = sld [smem:[#allocation2 + $0x14]]
        %v1150 = vstv %s1149
        %v1151 = vmul.f32 %v1150, %v1067
        %v1152 = vmul.f32 %v1150, %v1068
        %1155 = vrot.lane.b32.xlu0 %v1151, 126
        %v1156 = vpop.permute.xlu0 %1155
        %1157 = vrot.lane.b32.xlu0 %v1152, 126
        %v1158 = vpop.permute.xlu0 %1157
        %v1161 = vadd.f32 %v1105, %v1156
        %v1162 = vadd.f32 %v1106, %v1158
        %s1163 = sld [smem:[#allocation2 + $0x41]]
        %v1164 = vstv %s1163
        %v1165 = vmul.f32 %v1164, %v1067
        %v1166 = vmul.f32 %v1164, %v1068
        %1169 = vrot.lane.b32.xlu0 %v1165, 126
        %v1170 = vpop.permute.xlu0 %1169
        %1171 = vrot.lane.b32.xlu0 %v1166, 126
        %v1172 = vpop.permute.xlu0 %1171
        %v1175 = vadd.f32 %v1119, %v1170
        %v1176 = vadd.f32 %v1120, %v1172
        %s1177 = sld [smem:[#allocation2 + $0x6e]]
        %v1178 = vstv %s1177
        %v1179 = vmul.f32 %v1178, %v1067
        %v1180 = vmul.f32 %v1178, %v1068
        %1183 = vrot.lane.b32.xlu0 %v1179, 126
        %v1184 = vpop.permute.xlu0 %1183
        %1185 = vrot.lane.b32.xlu0 %v1180, 126
        %v1186 = vpop.permute.xlu0 %1185
        %v1189 = vadd.f32 %v1133, %v1184
        %v1190 = vadd.f32 %v1134, %v1186
        %s1191 = sld [smem:[#allocation2 + $0x9b]]
        %v1192 = vstv %s1191
        %v1193 = vmul.f32 %v1192, %v1067
        %v1194 = vmul.f32 %v1192, %v1068
        %1197 = vrot.lane.b32.xlu0 %v1193, 126
        %v1198 = vpop.permute.xlu0 %1197
        %1199 = vrot.lane.b32.xlu0 %v1194, 126
        %v1200 = vpop.permute.xlu0 %1199
        %v1203 = vadd.f32 %v1147, %v1198
        %v1204 = vadd.f32 %v1148, %v1200
        %v1205 = vld [vmem:[%s1066 + $0x1] sm:$0xff]
        %v1206 = vld [vmem:[%s1066 + $0x9] sm:$0xf]
        %s1207 = sld [smem:[#allocation2 + $0x15]]
        %v1208 = vstv %s1207
        %v1209 = vmul.f32 %v1208, %v1205
        %v1210 = vmul.f32 %v1208, %v1206
        %v1211 = vadd.f32 %v1161, %v1209
        %v1212 = vadd.f32 %v1162, %v1210
        %s1213 = sld [smem:[#allocation2 + $0x42]]
        %v1214 = vstv %s1213
        %v1215 = vmul.f32 %v1214, %v1205
        %v1216 = vmul.f32 %v1214, %v1206
        %v1217 = vadd.f32 %v1175, %v1215
        %v1218 = vadd.f32 %v1176, %v1216
        %s1219 = sld [smem:[#allocation2 + $0x6f]]
        %v1220 = vstv %s1219
        %v1221 = vmul.f32 %v1220, %v1205
        %v1222 = vmul.f32 %v1220, %v1206
        %v1223 = vadd.f32 %v1189, %v1221
        %v1224 = vadd.f32 %v1190, %v1222
        %s1225 = sld [smem:[#allocation2 + $0x9c]]
        %v1226 = vstv %s1225
        %v1227 = vmul.f32 %v1226, %v1205
        %v1228 = vmul.f32 %v1226, %v1206
        %v1229 = vadd.f32 %v1203, %v1227
        %v1230 = vadd.f32 %v1204, %v1228
        %s1231 = sld [smem:[#allocation2 + $0x16]]
        %v1232 = vstv %s1231
        %v1233 = vmul.f32 %v1232, %v1205
        %v1234 = vmul.f32 %v1232, %v1206
        %1237 = vrot.lane.b32.xlu0 %v1233, 127
        %v1238 = vpop.permute.xlu0 %1237
        %1239 = vrot.lane.b32.xlu0 %v1234, 127
        %v1240 = vpop.permute.xlu0 %1239
        %v1243 = vadd.f32 %v1211, %v1238
        %v1244 = vadd.f32 %v1212, %v1240
        %s1245 = sld [smem:[#allocation2 + $0x43]]
        %v1246 = vstv %s1245
        %v1247 = vmul.f32 %v1246, %v1205
        %v1248 = vmul.f32 %v1246, %v1206
        %1251 = vrot.lane.b32.xlu0 %v1247, 127
        %v1252 = vpop.permute.xlu0 %1251
        %1253 = vrot.lane.b32.xlu0 %v1248, 127
        %v1254 = vpop.permute.xlu0 %1253
        %v1257 = vadd.f32 %v1217, %v1252
        %v1258 = vadd.f32 %v1218, %v1254
        %s1259 = sld [smem:[#allocation2 + $0x70]]
        %v1260 = vstv %s1259
        %v1261 = vmul.f32 %v1260, %v1205
        %v1262 = vmul.f32 %v1260, %v1206
        %1265 = vrot.lane.b32.xlu0 %v1261, 127
        %v1266 = vpop.permute.xlu0 %1265
        %1267 = vrot.lane.b32.xlu0 %v1262, 127
        %v1268 = vpop.permute.xlu0 %1267
        %v1271 = vadd.f32 %v1223, %v1266
        %v1272 = vadd.f32 %v1224, %v1268
        %s1273 = sld [smem:[#allocation2 + $0x9d]]
        %v1274 = vstv %s1273
        %v1275 = vmul.f32 %v1274, %v1205
        %v1276 = vmul.f32 %v1274, %v1206
        %1279 = vrot.lane.b32.xlu0 %v1275, 127
        %v1280 = vpop.permute.xlu0 %1279
        %1281 = vrot.lane.b32.xlu0 %v1276, 127
        %v1282 = vpop.permute.xlu0 %1281
        %v1285 = vadd.f32 %v1229, %v1280
        %v1286 = vadd.f32 %v1230, %v1282
        %s1287 = sld [smem:[#allocation2 + $0x17]]
        %v1288 = vstv %s1287
        %v1289 = vmul.f32 %v1288, %v1205
        %v1290 = vmul.f32 %v1288, %v1206
        %1293 = vrot.lane.b32.xlu0 %v1289, 126
        %v1294 = vpop.permute.xlu0 %1293
        %1295 = vrot.lane.b32.xlu0 %v1290, 126
        %v1296 = vpop.permute.xlu0 %1295
        %v1299 = vadd.f32 %v1243, %v1294
        %v1300 = vadd.f32 %v1244, %v1296
        %s1301 = sld [smem:[#allocation2 + $0x44]]
        %v1302 = vstv %s1301
        %v1303 = vmul.f32 %v1302, %v1205
        %v1304 = vmul.f32 %v1302, %v1206
        %1307 = vrot.lane.b32.xlu0 %v1303, 126
        %v1308 = vpop.permute.xlu0 %1307
        %1309 = vrot.lane.b32.xlu0 %v1304, 126
        %v1310 = vpop.permute.xlu0 %1309
        %v1313 = vadd.f32 %v1257, %v1308
        %v1314 = vadd.f32 %v1258, %v1310
        %s1315 = sld [smem:[#allocation2 + $0x71]]
        %v1316 = vstv %s1315
        %v1317 = vmul.f32 %v1316, %v1205
        %v1318 = vmul.f32 %v1316, %v1206
        %1321 = vrot.lane.b32.xlu0 %v1317, 126
        %v1322 = vpop.permute.xlu0 %1321
        %1323 = vrot.lane.b32.xlu0 %v1318, 126
        %v1324 = vpop.permute.xlu0 %1323
        %v1327 = vadd.f32 %v1271, %v1322
        %v1328 = vadd.f32 %v1272, %v1324
        %s1329 = sld [smem:[#allocation2 + $0x9e]]
        %v1330 = vstv %s1329
        %v1331 = vmul.f32 %v1330, %v1205
        %v1332 = vmul.f32 %v1330, %v1206
        %1335 = vrot.lane.b32.xlu0 %v1331, 126
        %v1336 = vpop.permute.xlu0 %1335
        %1337 = vrot.lane.b32.xlu0 %v1332, 126
        %v1338 = vpop.permute.xlu0 %1337
        %v1341 = vadd.f32 %v1285, %v1336
        %v1342 = vadd.f32 %v1286, %v1338
        %v1343 = vld [vmem:[%s1066 + $0x2] sm:$0xff]
        %v1344 = vld [vmem:[%s1066 + $0xa] sm:$0xf]
        %s1345 = sld [smem:[#allocation2 + $0x18]]
        %v1346 = vstv %s1345
        %v1347 = vmul.f32 %v1346, %v1343
        %v1348 = vmul.f32 %v1346, %v1344
        %v1349 = vadd.f32 %v1299, %v1347
        %v1350 = vadd.f32 %v1300, %v1348
        %s1351 = sld [smem:[#allocation2 + $0x45]]
        %v1352 = vstv %s1351
        %v1353 = vmul.f32 %v1352, %v1343
        %v1354 = vmul.f32 %v1352, %v1344
        %v1355 = vadd.f32 %v1313, %v1353
        %v1356 = vadd.f32 %v1314, %v1354
        %s1357 = sld [smem:[#allocation2 + $0x72]]
        %v1358 = vstv %s1357
        %v1359 = vmul.f32 %v1358, %v1343
        %v1360 = vmul.f32 %v1358, %v1344
        %v1361 = vadd.f32 %v1327, %v1359
        %v1362 = vadd.f32 %v1328, %v1360
        %s1363 = sld [smem:[#allocation2 + $0x9f]]
        %v1364 = vstv %s1363
        %v1365 = vmul.f32 %v1364, %v1343
        %v1366 = vmul.f32 %v1364, %v1344
        %v1367 = vadd.f32 %v1341, %v1365
        %v1368 = vadd.f32 %v1342, %v1366
        %s1369 = sld [smem:[#allocation2 + $0x19]]
        %v1370 = vstv %s1369
        %v1371 = vmul.f32 %v1370, %v1343
        %v1372 = vmul.f32 %v1370, %v1344
        %1375 = vrot.lane.b32.xlu0 %v1371, 127
        %v1376 = vpop.permute.xlu0 %1375
        %1377 = vrot.lane.b32.xlu0 %v1372, 127
        %v1378 = vpop.permute.xlu0 %1377
        %v1381 = vadd.f32 %v1349, %v1376
        %v1382 = vadd.f32 %v1350, %v1378
        %s1383 = sld [smem:[#allocation2 + $0x46]]
        %v1384 = vstv %s1383
        %v1385 = vmul.f32 %v1384, %v1343
        %v1386 = vmul.f32 %v1384, %v1344
        %1389 = vrot.lane.b32.xlu0 %v1385, 127
        %v1390 = vpop.permute.xlu0 %1389
        %1391 = vrot.lane.b32.xlu0 %v1386, 127
        %v1392 = vpop.permute.xlu0 %1391
        %v1395 = vadd.f32 %v1355, %v1390
        %v1396 = vadd.f32 %v1356, %v1392
        %s1397 = sld [smem:[#allocation2 + $0x73]]
        %v1398 = vstv %s1397
        %v1399 = vmul.f32 %v1398, %v1343
        %v1400 = vmul.f32 %v1398, %v1344
        %1403 = vrot.lane.b32.xlu0 %v1399, 127
        %v1404 = vpop.permute.xlu0 %1403
        %1405 = vrot.lane.b32.xlu0 %v1400, 127
        %v1406 = vpop.permute.xlu0 %1405
        %v1409 = vadd.f32 %v1361, %v1404
        %v1410 = vadd.f32 %v1362, %v1406
        %s1411 = sld [smem:[#allocation2 + $0xa0]]
        %v1412 = vstv %s1411
        %v1413 = vmul.f32 %v1412, %v1343
        %v1414 = vmul.f32 %v1412, %v1344
        %1417 = vrot.lane.b32.xlu0 %v1413, 127
        %v1418 = vpop.permute.xlu0 %1417
        %1419 = vrot.lane.b32.xlu0 %v1414, 127
        %v1420 = vpop.permute.xlu0 %1419
        %v1423 = vadd.f32 %v1367, %v1418
        %v1424 = vadd.f32 %v1368, %v1420
        %s1425 = sld [smem:[#allocation2 + $0x1a]]
        %v1426 = vstv %s1425
        %v1427 = vmul.f32 %v1426, %v1343
        %v1428 = vmul.f32 %v1426, %v1344
        %1431 = vrot.lane.b32.xlu0 %v1427, 126
        %v1432 = vpop.permute.xlu0 %1431
        %1433 = vrot.lane.b32.xlu0 %v1428, 126
        %v1434 = vpop.permute.xlu0 %1433
        %v1437 = vadd.f32 %v1381, %v1432
        %v1438 = vadd.f32 %v1382, %v1434
        %s1439 = sld [smem:[#allocation2 + $0x47]]
        %v1440 = vstv %s1439
        %v1441 = vmul.f32 %v1440, %v1343
        %v1442 = vmul.f32 %v1440, %v1344
        %1445 = vrot.lane.b32.xlu0 %v1441, 126
        %v1446 = vpop.permute.xlu0 %1445
        %1447 = vrot.lane.b32.xlu0 %v1442, 126
        %v1448 = vpop.permute.xlu0 %1447
        %v1451 = vadd.f32 %v1395, %v1446
        %v1452 = vadd.f32 %v1396, %v1448
        %s1453 = sld [smem:[#allocation2 + $0x74]]
        %v1454 = vstv %s1453
        %v1455 = vmul.f32 %v1454, %v1343
        %v1456 = vmul.f32 %v1454, %v1344
        %1459 = vrot.lane.b32.xlu0 %v1455, 126
        %v1460 = vpop.permute.xlu0 %1459
        %1461 = vrot.lane.b32.xlu0 %v1456, 126
        %v1462 = vpop.permute.xlu0 %1461
        %v1465 = vadd.f32 %v1409, %v1460
        %v1466 = vadd.f32 %v1410, %v1462
        %s1467 = sld [smem:[#allocation2 + $0xa1]]
        %v1468 = vstv %s1467
        %v1469 = vmul.f32 %v1468, %v1343
        %v1470 = vmul.f32 %v1468, %v1344
        %1473 = vrot.lane.b32.xlu0 %v1469, 126
        %v1474 = vpop.permute.xlu0 %1473
        %1475 = vrot.lane.b32.xlu0 %v1470, 126
        %v1476 = vpop.permute.xlu0 %1475
        %v1479 = vadd.f32 %v1423, %v1474
        %v1480 = vadd.f32 %v1424, %v1476
        %s1481 = scalar_lea.vmem %s231, 48
        %v1482 = vld [vmem:[%s1481] sm:$0xff]
        %v1483 = vld [vmem:[%s1481 + $0x8] sm:$0xf]
        %s1484 = sld [smem:[#allocation2 + $0x1b]]
        %v1485 = vstv %s1484
        %v1486 = vmul.f32 %v1485, %v1482
        %v1487 = vmul.f32 %v1485, %v1483
        %v1488 = vadd.f32 %v1437, %v1486
        %v1489 = vadd.f32 %v1438, %v1487
        %s1490 = sld [smem:[#allocation2 + $0x48]]
        %v1491 = vstv %s1490
        %v1492 = vmul.f32 %v1491, %v1482
        %v1493 = vmul.f32 %v1491, %v1483
        %v1494 = vadd.f32 %v1451, %v1492
        %v1495 = vadd.f32 %v1452, %v1493
        %s1496 = sld [smem:[#allocation2 + $0x75]]
        %v1497 = vstv %s1496
        %v1498 = vmul.f32 %v1497, %v1482
        %v1499 = vmul.f32 %v1497, %v1483
        %v1500 = vadd.f32 %v1465, %v1498
        %v1501 = vadd.f32 %v1466, %v1499
        %s1502 = sld [smem:[#allocation2 + $0xa2]]
        %v1503 = vstv %s1502
        %v1504 = vmul.f32 %v1503, %v1482
        %v1505 = vmul.f32 %v1503, %v1483
        %v1506 = vadd.f32 %v1479, %v1504
        %v1507 = vadd.f32 %v1480, %v1505
        %s1508 = sld [smem:[#allocation2 + $0x1c]]
        %v1509 = vstv %s1508
        %v1510 = vmul.f32 %v1509, %v1482
        %v1511 = vmul.f32 %v1509, %v1483
        %1514 = vrot.lane.b32.xlu0 %v1510, 127
        %v1515 = vpop.permute.xlu0 %1514
        %1516 = vrot.lane.b32.xlu0 %v1511, 127
        %v1517 = vpop.permute.xlu0 %1516
        %v1520 = vadd.f32 %v1488, %v1515
        %v1521 = vadd.f32 %v1489, %v1517
        %s1522 = sld [smem:[#allocation2 + $0x49]]
        %v1523 = vstv %s1522
        %v1524 = vmul.f32 %v1523, %v1482
        %v1525 = vmul.f32 %v1523, %v1483
        %1528 = vrot.lane.b32.xlu0 %v1524, 127
        %v1529 = vpop.permute.xlu0 %1528
        %1530 = vrot.lane.b32.xlu0 %v1525, 127
        %v1531 = vpop.permute.xlu0 %1530
        %v1534 = vadd.f32 %v1494, %v1529
        %v1535 = vadd.f32 %v1495, %v1531
        %s1536 = sld [smem:[#allocation2 + $0x76]]
        %v1537 = vstv %s1536
        %v1538 = vmul.f32 %v1537, %v1482
        %v1539 = vmul.f32 %v1537, %v1483
        %1542 = vrot.lane.b32.xlu0 %v1538, 127
        %v1543 = vpop.permute.xlu0 %1542
        %1544 = vrot.lane.b32.xlu0 %v1539, 127
        %v1545 = vpop.permute.xlu0 %1544
        %v1548 = vadd.f32 %v1500, %v1543
        %v1549 = vadd.f32 %v1501, %v1545
        %s1550 = sld [smem:[#allocation2 + $0xa3]]
        %v1551 = vstv %s1550
        %v1552 = vmul.f32 %v1551, %v1482
        %v1553 = vmul.f32 %v1551, %v1483
        %1556 = vrot.lane.b32.xlu0 %v1552, 127
        %v1557 = vpop.permute.xlu0 %1556
        %1558 = vrot.lane.b32.xlu0 %v1553, 127
        %v1559 = vpop.permute.xlu0 %1558
        %v1562 = vadd.f32 %v1506, %v1557
        %v1563 = vadd.f32 %v1507, %v1559
        %s1564 = sld [smem:[#allocation2 + $0x1d]]
        %v1565 = vstv %s1564
        %v1566 = vmul.f32 %v1565, %v1482
        %v1567 = vmul.f32 %v1565, %v1483
        %1570 = vrot.lane.b32.xlu0 %v1566, 126
        %v1571 = vpop.permute.xlu0 %1570
        %1572 = vrot.lane.b32.xlu0 %v1567, 126
        %v1573 = vpop.permute.xlu0 %1572
        %v1576 = vadd.f32 %v1520, %v1571
        %v1577 = vadd.f32 %v1521, %v1573
        %s1578 = sld [smem:[#allocation2 + $0x4a]]
        %v1579 = vstv %s1578
        %v1580 = vmul.f32 %v1579, %v1482
        %v1581 = vmul.f32 %v1579, %v1483
        %1584 = vrot.lane.b32.xlu0 %v1580, 126
        %v1585 = vpop.permute.xlu0 %1584
        %1586 = vrot.lane.b32.xlu0 %v1581, 126
        %v1587 = vpop.permute.xlu0 %1586
        %v1590 = vadd.f32 %v1534, %v1585
        %v1591 = vadd.f32 %v1535, %v1587
        %s1592 = sld [smem:[#allocation2 + $0x77]]
        %v1593 = vstv %s1592
        %v1594 = vmul.f32 %v1593, %v1482
        %v1595 = vmul.f32 %v1593, %v1483
        %1598 = vrot.lane.b32.xlu0 %v1594, 126
        %v1599 = vpop.permute.xlu0 %1598
        %1600 = vrot.lane.b32.xlu0 %v1595, 126
        %v1601 = vpop.permute.xlu0 %1600
        %v1604 = vadd.f32 %v1548, %v1599
        %v1605 = vadd.f32 %v1549, %v1601
        %s1606 = sld [smem:[#allocation2 + $0xa4]]
        %v1607 = vstv %s1606
        %v1608 = vmul.f32 %v1607, %v1482
        %v1609 = vmul.f32 %v1607, %v1483
        %1612 = vrot.lane.b32.xlu0 %v1608, 126
        %v1613 = vpop.permute.xlu0 %1612
        %1614 = vrot.lane.b32.xlu0 %v1609, 126
        %v1615 = vpop.permute.xlu0 %1614
        %v1618 = vadd.f32 %v1562, %v1613
        %v1619 = vadd.f32 %v1563, %v1615
        %v1620 = vld [vmem:[%s1481 + $0x1] sm:$0xff]
        %v1621 = vld [vmem:[%s1481 + $0x9] sm:$0xf]
        %s1622 = sld [smem:[#allocation2 + $0x1e]]
        %v1623 = vstv %s1622
        %v1624 = vmul.f32 %v1623, %v1620
        %v1625 = vmul.f32 %v1623, %v1621
        %v1626 = vadd.f32 %v1576, %v1624
        %v1627 = vadd.f32 %v1577, %v1625
        %s1628 = sld [smem:[#allocation2 + $0x4b]]
        %v1629 = vstv %s1628
        %v1630 = vmul.f32 %v1629, %v1620
        %v1631 = vmul.f32 %v1629, %v1621
        %v1632 = vadd.f32 %v1590, %v1630
        %v1633 = vadd.f32 %v1591, %v1631
        %s1634 = sld [smem:[#allocation2 + $0x78]]
        %v1635 = vstv %s1634
        %v1636 = vmul.f32 %v1635, %v1620
        %v1637 = vmul.f32 %v1635, %v1621
        %v1638 = vadd.f32 %v1604, %v1636
        %v1639 = vadd.f32 %v1605, %v1637
        %s1640 = sld [smem:[#allocation2 + $0xa5]]
        %v1641 = vstv %s1640
        %v1642 = vmul.f32 %v1641, %v1620
        %v1643 = vmul.f32 %v1641, %v1621
        %v1644 = vadd.f32 %v1618, %v1642
        %v1645 = vadd.f32 %v1619, %v1643
        %s1646 = sld [smem:[#allocation2 + $0x1f]]
        %v1647 = vstv %s1646
        %v1648 = vmul.f32 %v1647, %v1620
        %v1649 = vmul.f32 %v1647, %v1621
        %1652 = vrot.lane.b32.xlu0 %v1648, 127
        %v1653 = vpop.permute.xlu0 %1652
        %1654 = vrot.lane.b32.xlu0 %v1649, 127
        %v1655 = vpop.permute.xlu0 %1654
        %v1658 = vadd.f32 %v1626, %v1653
        %v1659 = vadd.f32 %v1627, %v1655
        %s1660 = sld [smem:[#allocation2 + $0x4c]]
        %v1661 = vstv %s1660
        %v1662 = vmul.f32 %v1661, %v1620
        %v1663 = vmul.f32 %v1661, %v1621
        %1666 = vrot.lane.b32.xlu0 %v1662, 127
        %v1667 = vpop.permute.xlu0 %1666
        %1668 = vrot.lane.b32.xlu0 %v1663, 127
        %v1669 = vpop.permute.xlu0 %1668
        %v1672 = vadd.f32 %v1632, %v1667
        %v1673 = vadd.f32 %v1633, %v1669
        %s1674 = sld [smem:[#allocation2 + $0x79]]
        %v1675 = vstv %s1674
        %v1676 = vmul.f32 %v1675, %v1620
        %v1677 = vmul.f32 %v1675, %v1621
        %1680 = vrot.lane.b32.xlu0 %v1676, 127
        %v1681 = vpop.permute.xlu0 %1680
        %1682 = vrot.lane.b32.xlu0 %v1677, 127
        %v1683 = vpop.permute.xlu0 %1682
        %v1686 = vadd.f32 %v1638, %v1681
        %v1687 = vadd.f32 %v1639, %v1683
        %s1688 = sld [smem:[#allocation2 + $0xa6]]
        %v1689 = vstv %s1688
        %v1690 = vmul.f32 %v1689, %v1620
        %v1691 = vmul.f32 %v1689, %v1621
        %1694 = vrot.lane.b32.xlu0 %v1690, 127
        %v1695 = vpop.permute.xlu0 %1694
        %1696 = vrot.lane.b32.xlu0 %v1691, 127
        %v1697 = vpop.permute.xlu0 %1696
        %v1700 = vadd.f32 %v1644, %v1695
        %v1701 = vadd.f32 %v1645, %v1697
        %s1702 = sld [smem:[#allocation2 + $0x20]]
        %v1703 = vstv %s1702
        %v1704 = vmul.f32 %v1703, %v1620
        %v1705 = vmul.f32 %v1703, %v1621
        %1708 = vrot.lane.b32.xlu0 %v1704, 126
        %v1709 = vpop.permute.xlu0 %1708
        %1710 = vrot.lane.b32.xlu0 %v1705, 126
        %v1711 = vpop.permute.xlu0 %1710
        %v1714 = vadd.f32 %v1658, %v1709
        %v1715 = vadd.f32 %v1659, %v1711
        %s1716 = sld [smem:[#allocation2 + $0x4d]]
        %v1717 = vstv %s1716
        %v1718 = vmul.f32 %v1717, %v1620
        %v1719 = vmul.f32 %v1717, %v1621
        %1722 = vrot.lane.b32.xlu0 %v1718, 126
        %v1723 = vpop.permute.xlu0 %1722
        %1724 = vrot.lane.b32.xlu0 %v1719, 126
        %v1725 = vpop.permute.xlu0 %1724
        %v1728 = vadd.f32 %v1672, %v1723
        %v1729 = vadd.f32 %v1673, %v1725
        %s1730 = sld [smem:[#allocation2 + $0x7a]]
        %v1731 = vstv %s1730
        %v1732 = vmul.f32 %v1731, %v1620
        %v1733 = vmul.f32 %v1731, %v1621
        %1736 = vrot.lane.b32.xlu0 %v1732, 126
        %v1737 = vpop.permute.xlu0 %1736
        %1738 = vrot.lane.b32.xlu0 %v1733, 126
        %v1739 = vpop.permute.xlu0 %1738
        %v1742 = vadd.f32 %v1686, %v1737
        %v1743 = vadd.f32 %v1687, %v1739
        %s1744 = sld [smem:[#allocation2 + $0xa7]]
        %v1745 = vstv %s1744
        %v1746 = vmul.f32 %v1745, %v1620
        %v1747 = vmul.f32 %v1745, %v1621
        %1750 = vrot.lane.b32.xlu0 %v1746, 126
        %v1751 = vpop.permute.xlu0 %1750
        %1752 = vrot.lane.b32.xlu0 %v1747, 126
        %v1753 = vpop.permute.xlu0 %1752
        %v1756 = vadd.f32 %v1700, %v1751
        %v1757 = vadd.f32 %v1701, %v1753
        %v1758 = vld [vmem:[%s1481 + $0x2] sm:$0xff]
        %v1759 = vld [vmem:[%s1481 + $0xa] sm:$0xf]
        %s1760 = sld [smem:[#allocation2 + $0x21]]
        %v1761 = vstv %s1760
        %v1762 = vmul.f32 %v1761, %v1758
        %v1763 = vmul.f32 %v1761, %v1759
        %v1764 = vadd.f32 %v1714, %v1762
        %v1765 = vadd.f32 %v1715, %v1763
        %s1766 = sld [smem:[#allocation2 + $0x4e]]
        %v1767 = vstv %s1766
        %v1768 = vmul.f32 %v1767, %v1758
        %v1769 = vmul.f32 %v1767, %v1759
        %v1770 = vadd.f32 %v1728, %v1768
        %v1771 = vadd.f32 %v1729, %v1769
        %s1772 = sld [smem:[#allocation2 + $0x7b]]
        %v1773 = vstv %s1772
        %v1774 = vmul.f32 %v1773, %v1758
        %v1775 = vmul.f32 %v1773, %v1759
        %v1776 = vadd.f32 %v1742, %v1774
        %v1777 = vadd.f32 %v1743, %v1775
        %s1778 = sld [smem:[#allocation2 + $0xa8]]
        %v1779 = vstv %s1778
        %v1780 = vmul.f32 %v1779, %v1758
        %v1781 = vmul.f32 %v1779, %v1759
        %v1782 = vadd.f32 %v1756, %v1780
        %v1783 = vadd.f32 %v1757, %v1781
        %s1784 = sld [smem:[#allocation2 + $0x22]]
        %v1785 = vstv %s1784
        %v1786 = vmul.f32 %v1785, %v1758
        %v1787 = vmul.f32 %v1785, %v1759
        %1790 = vrot.lane.b32.xlu0 %v1786, 127
        %v1791 = vpop.permute.xlu0 %1790
        %1792 = vrot.lane.b32.xlu0 %v1787, 127
        %v1793 = vpop.permute.xlu0 %1792
        %v1796 = vadd.f32 %v1764, %v1791
        %v1797 = vadd.f32 %v1765, %v1793
        %s1798 = sld [smem:[#allocation2 + $0x4f]]
        %v1799 = vstv %s1798
        %v1800 = vmul.f32 %v1799, %v1758
        %v1801 = vmul.f32 %v1799, %v1759
        %1804 = vrot.lane.b32.xlu0 %v1800, 127
        %v1805 = vpop.permute.xlu0 %1804
        %1806 = vrot.lane.b32.xlu0 %v1801, 127
        %v1807 = vpop.permute.xlu0 %1806
        %v1810 = vadd.f32 %v1770, %v1805
        %v1811 = vadd.f32 %v1771, %v1807
        %s1812 = sld [smem:[#allocation2 + $0x7c]]
        %v1813 = vstv %s1812
        %v1814 = vmul.f32 %v1813, %v1758
        %v1815 = vmul.f32 %v1813, %v1759
        %1818 = vrot.lane.b32.xlu0 %v1814, 127
        %v1819 = vpop.permute.xlu0 %1818
        %1820 = vrot.lane.b32.xlu0 %v1815, 127
        %v1821 = vpop.permute.xlu0 %1820
        %v1824 = vadd.f32 %v1776, %v1819
        %v1825 = vadd.f32 %v1777, %v1821
        %s1826 = sld [smem:[#allocation2 + $0xa9]]
        %v1827 = vstv %s1826
        %v1828 = vmul.f32 %v1827, %v1758
        %v1829 = vmul.f32 %v1827, %v1759
        %1832 = vrot.lane.b32.xlu0 %v1828, 127
        %v1833 = vpop.permute.xlu0 %1832
        %1834 = vrot.lane.b32.xlu0 %v1829, 127
        %v1835 = vpop.permute.xlu0 %1834
        %v1838 = vadd.f32 %v1782, %v1833
        %v1839 = vadd.f32 %v1783, %v1835
        %s1840 = sld [smem:[#allocation2 + $0x23]]
        %v1841 = vstv %s1840
        %v1842 = vmul.f32 %v1841, %v1758
        %v1843 = vmul.f32 %v1841, %v1759
        %1846 = vrot.lane.b32.xlu0 %v1842, 126
        %v1847 = vpop.permute.xlu0 %1846
        %1848 = vrot.lane.b32.xlu0 %v1843, 126
        %v1849 = vpop.permute.xlu0 %1848
        %v1852 = vadd.f32 %v1796, %v1847
        %v1853 = vadd.f32 %v1797, %v1849
        %s1854 = sld [smem:[#allocation2 + $0x50]]
        %v1855 = vstv %s1854
        %v1856 = vmul.f32 %v1855, %v1758
        %v1857 = vmul.f32 %v1855, %v1759
        %1860 = vrot.lane.b32.xlu0 %v1856, 126
        %v1861 = vpop.permute.xlu0 %1860
        %1862 = vrot.lane.b32.xlu0 %v1857, 126
        %v1863 = vpop.permute.xlu0 %1862
        %v1866 = vadd.f32 %v1810, %v1861
        %v1867 = vadd.f32 %v1811, %v1863
        %s1868 = sld [smem:[#allocation2 + $0x7d]]
        %v1869 = vstv %s1868
        %v1870 = vmul.f32 %v1869, %v1758
        %v1871 = vmul.f32 %v1869, %v1759
        %1874 = vrot.lane.b32.xlu0 %v1870, 126
        %v1875 = vpop.permute.xlu0 %1874
        %1876 = vrot.lane.b32.xlu0 %v1871, 126
        %v1877 = vpop.permute.xlu0 %1876
        %v1880 = vadd.f32 %v1824, %v1875
        %v1881 = vadd.f32 %v1825, %v1877
        %s1882 = sld [smem:[#allocation2 + $0xaa]]
        %v1883 = vstv %s1882
        %v1884 = vmul.f32 %v1883, %v1758
        %v1885 = vmul.f32 %v1883, %v1759
        %1888 = vrot.lane.b32.xlu0 %v1884, 126
        %v1889 = vpop.permute.xlu0 %1888
        %1890 = vrot.lane.b32.xlu0 %v1885, 126
        %v1891 = vpop.permute.xlu0 %1890
        %v1894 = vadd.f32 %v1838, %v1889
        %v1895 = vadd.f32 %v1839, %v1891
        %s1896 = scalar_lea.vmem %s231, 64
        %v1897 = vld [vmem:[%s1896] sm:$0xff]
        %v1898 = vld [vmem:[%s1896 + $0x8] sm:$0xf]
        %s1899 = sld [smem:[#allocation2 + $0x24]]
        %v1900 = vstv %s1899
        %v1901 = vmul.f32 %v1900, %v1897
        %v1902 = vmul.f32 %v1900, %v1898
        %v1903 = vadd.f32 %v1852, %v1901
        %v1904 = vadd.f32 %v1853, %v1902
        %s1905 = sld [smem:[#allocation2 + $0x51]]
        %v1906 = vstv %s1905
        %v1907 = vmul.f32 %v1906, %v1897
        %v1908 = vmul.f32 %v1906, %v1898
        %v1909 = vadd.f32 %v1866, %v1907
        %v1910 = vadd.f32 %v1867, %v1908
        %s1911 = sld [smem:[#allocation2 + $0x7e]]
        %v1912 = vstv %s1911
        %v1913 = vmul.f32 %v1912, %v1897
        %v1914 = vmul.f32 %v1912, %v1898
        %v1915 = vadd.f32 %v1880, %v1913
        %v1916 = vadd.f32 %v1881, %v1914
        %s1917 = sld [smem:[#allocation2 + $0xab]]
        %v1918 = vstv %s1917
        %v1919 = vmul.f32 %v1918, %v1897
        %v1920 = vmul.f32 %v1918, %v1898
        %v1921 = vadd.f32 %v1894, %v1919
        %v1922 = vadd.f32 %v1895, %v1920
        %s1923 = sld [smem:[#allocation2 + $0x25]]
        %v1924 = vstv %s1923
        %v1925 = vmul.f32 %v1924, %v1897
        %v1926 = vmul.f32 %v1924, %v1898
        %1929 = vrot.lane.b32.xlu0 %v1925, 127
        %v1930 = vpop.permute.xlu0 %1929
        %1931 = vrot.lane.b32.xlu0 %v1926, 127
        %v1932 = vpop.permute.xlu0 %1931
        %v1935 = vadd.f32 %v1903, %v1930
        %v1936 = vadd.f32 %v1904, %v1932
        %s1937 = sld [smem:[#allocation2 + $0x52]]
        %v1938 = vstv %s1937
        %v1939 = vmul.f32 %v1938, %v1897
        %v1940 = vmul.f32 %v1938, %v1898
        %1943 = vrot.lane.b32.xlu0 %v1939, 127
        %v1944 = vpop.permute.xlu0 %1943
        %1945 = vrot.lane.b32.xlu0 %v1940, 127
        %v1946 = vpop.permute.xlu0 %1945
        %v1949 = vadd.f32 %v1909, %v1944
        %v1950 = vadd.f32 %v1910, %v1946
        %s1951 = sld [smem:[#allocation2 + $0x7f]]
        %v1952 = vstv %s1951
        %v1953 = vmul.f32 %v1952, %v1897
        %v1954 = vmul.f32 %v1952, %v1898
        %1957 = vrot.lane.b32.xlu0 %v1953, 127
        %v1958 = vpop.permute.xlu0 %1957
        %1959 = vrot.lane.b32.xlu0 %v1954, 127
        %v1960 = vpop.permute.xlu0 %1959
        %v1963 = vadd.f32 %v1915, %v1958
        %v1964 = vadd.f32 %v1916, %v1960
        %s1965 = sld [smem:[#allocation2 + $0xac]]
        %v1966 = vstv %s1965
        %v1967 = vmul.f32 %v1966, %v1897
        %v1968 = vmul.f32 %v1966, %v1898
        %1971 = vrot.lane.b32.xlu0 %v1967, 127
        %v1972 = vpop.permute.xlu0 %1971
        %1973 = vrot.lane.b32.xlu0 %v1968, 127
        %v1974 = vpop.permute.xlu0 %1973
        %v1977 = vadd.f32 %v1921, %v1972
        %v1978 = vadd.f32 %v1922, %v1974
        %s1979 = sld [smem:[#allocation2 + $0x26]]
        %v1980 = vstv %s1979
        %v1981 = vmul.f32 %v1980, %v1897
        %v1982 = vmul.f32 %v1980, %v1898
        %1985 = vrot.lane.b32.xlu0 %v1981, 126
        %v1986 = vpop.permute.xlu0 %1985
        %1987 = vrot.lane.b32.xlu0 %v1982, 126
        %v1988 = vpop.permute.xlu0 %1987
        %v1991 = vadd.f32 %v1935, %v1986
        %v1992 = vadd.f32 %v1936, %v1988
        %s1993 = sld [smem:[#allocation2 + $0x53]]
        %v1994 = vstv %s1993
        %v1995 = vmul.f32 %v1994, %v1897
        %v1996 = vmul.f32 %v1994, %v1898
        %1999 = vrot.lane.b32.xlu0 %v1995, 126
        %v2000 = vpop.permute.xlu0 %1999
        %2001 = vrot.lane.b32.xlu0 %v1996, 126
        %v2002 = vpop.permute.xlu0 %2001
        %v2005 = vadd.f32 %v1949, %v2000
        %v2006 = vadd.f32 %v1950, %v2002
        %s2007 = sld [smem:[#allocation2 + $0x80]]
        %v2008 = vstv %s2007
        %v2009 = vmul.f32 %v2008, %v1897
        %v2010 = vmul.f32 %v2008, %v1898
        %2013 = vrot.lane.b32.xlu0 %v2009, 126
        %v2014 = vpop.permute.xlu0 %2013
        %2015 = vrot.lane.b32.xlu0 %v2010, 126
        %v2016 = vpop.permute.xlu0 %2015
        %v2019 = vadd.f32 %v1963, %v2014
        %v2020 = vadd.f32 %v1964, %v2016
        %s2021 = sld [smem:[#allocation2 + $0xad]]
        %v2022 = vstv %s2021
        %v2023 = vmul.f32 %v2022, %v1897
        %v2024 = vmul.f32 %v2022, %v1898
        %2027 = vrot.lane.b32.xlu0 %v2023, 126
        %v2028 = vpop.permute.xlu0 %2027
        %2029 = vrot.lane.b32.xlu0 %v2024, 126
        %v2030 = vpop.permute.xlu0 %2029
        %v2033 = vadd.f32 %v1977, %v2028
        %v2034 = vadd.f32 %v1978, %v2030
        %v2035 = vld [vmem:[%s1896 + $0x1] sm:$0xff]
        %v2036 = vld [vmem:[%s1896 + $0x9] sm:$0xf]
        %s2037 = sld [smem:[#allocation2 + $0x27]]
        %v2038 = vstv %s2037
        %v2039 = vmul.f32 %v2038, %v2035
        %v2040 = vmul.f32 %v2038, %v2036
        %v2041 = vadd.f32 %v1991, %v2039
        %v2042 = vadd.f32 %v1992, %v2040
        %s2043 = sld [smem:[#allocation2 + $0x54]]
        %v2044 = vstv %s2043
        %v2045 = vmul.f32 %v2044, %v2035
        %v2046 = vmul.f32 %v2044, %v2036
        %v2047 = vadd.f32 %v2005, %v2045
        %v2048 = vadd.f32 %v2006, %v2046
        %s2049 = sld [smem:[#allocation2 + $0x81]]
        %v2050 = vstv %s2049
        %v2051 = vmul.f32 %v2050, %v2035
        %v2052 = vmul.f32 %v2050, %v2036
        %v2053 = vadd.f32 %v2019, %v2051
        %v2054 = vadd.f32 %v2020, %v2052
        %s2055 = sld [smem:[#allocation2 + $0xae]]
        %v2056 = vstv %s2055
        %v2057 = vmul.f32 %v2056, %v2035
        %v2058 = vmul.f32 %v2056, %v2036
        %v2059 = vadd.f32 %v2033, %v2057
        %v2060 = vadd.f32 %v2034, %v2058
        %s2061 = sld [smem:[#allocation2 + $0x28]]
        %v2062 = vstv %s2061
        %v2063 = vmul.f32 %v2062, %v2035
        %v2064 = vmul.f32 %v2062, %v2036
        %2067 = vrot.lane.b32.xlu0 %v2063, 127
        %v2068 = vpop.permute.xlu0 %2067
        %2069 = vrot.lane.b32.xlu0 %v2064, 127
        %v2070 = vpop.permute.xlu0 %2069
        %v2073 = vadd.f32 %v2041, %v2068
        %v2074 = vadd.f32 %v2042, %v2070
        %s2075 = sld [smem:[#allocation2 + $0x55]]
        %v2076 = vstv %s2075
        %v2077 = vmul.f32 %v2076, %v2035
        %v2078 = vmul.f32 %v2076, %v2036
        %2081 = vrot.lane.b32.xlu0 %v2077, 127
        %v2082 = vpop.permute.xlu0 %2081
        %2083 = vrot.lane.b32.xlu0 %v2078, 127
        %v2084 = vpop.permute.xlu0 %2083
        %v2087 = vadd.f32 %v2047, %v2082
        %v2088 = vadd.f32 %v2048, %v2084
        %s2089 = sld [smem:[#allocation2 + $0x82]]
        %v2090 = vstv %s2089
        %v2091 = vmul.f32 %v2090, %v2035
        %v2092 = vmul.f32 %v2090, %v2036
        %2095 = vrot.lane.b32.xlu0 %v2091, 127
        %v2096 = vpop.permute.xlu0 %2095
        %2097 = vrot.lane.b32.xlu0 %v2092, 127
        %v2098 = vpop.permute.xlu0 %2097
        %v2101 = vadd.f32 %v2053, %v2096
        %v2102 = vadd.f32 %v2054, %v2098
        %s2103 = sld [smem:[#allocation2 + $0xaf]]
        %v2104 = vstv %s2103
        %v2105 = vmul.f32 %v2104, %v2035
        %v2106 = vmul.f32 %v2104, %v2036
        %2109 = vrot.lane.b32.xlu0 %v2105, 127
        %v2110 = vpop.permute.xlu0 %2109
        %2111 = vrot.lane.b32.xlu0 %v2106, 127
        %v2112 = vpop.permute.xlu0 %2111
        %v2115 = vadd.f32 %v2059, %v2110
        %v2116 = vadd.f32 %v2060, %v2112
        %s2117 = sld [smem:[#allocation2 + $0x29]]
        %v2118 = vstv %s2117
        %v2119 = vmul.f32 %v2118, %v2035
        %v2120 = vmul.f32 %v2118, %v2036
        %2123 = vrot.lane.b32.xlu0 %v2119, 126
        %v2124 = vpop.permute.xlu0 %2123
        %2125 = vrot.lane.b32.xlu0 %v2120, 126
        %v2126 = vpop.permute.xlu0 %2125
        %v2129 = vadd.f32 %v2073, %v2124
        %v2130 = vadd.f32 %v2074, %v2126
        %s2131 = sld [smem:[#allocation2 + $0x56]]
        %v2132 = vstv %s2131
        %v2133 = vmul.f32 %v2132, %v2035
        %v2134 = vmul.f32 %v2132, %v2036
        %2137 = vrot.lane.b32.xlu0 %v2133, 126
        %v2138 = vpop.permute.xlu0 %2137
        %2139 = vrot.lane.b32.xlu0 %v2134, 126
        %v2140 = vpop.permute.xlu0 %2139
        %v2143 = vadd.f32 %v2087, %v2138
        %v2144 = vadd.f32 %v2088, %v2140
        %s2145 = sld [smem:[#allocation2 + $0x83]]
        %v2146 = vstv %s2145
        %v2147 = vmul.f32 %v2146, %v2035
        %v2148 = vmul.f32 %v2146, %v2036
        %2151 = vrot.lane.b32.xlu0 %v2147, 126
        %v2152 = vpop.permute.xlu0 %2151
        %2153 = vrot.lane.b32.xlu0 %v2148, 126
        %v2154 = vpop.permute.xlu0 %2153
        %v2157 = vadd.f32 %v2101, %v2152
        %v2158 = vadd.f32 %v2102, %v2154
        %s2159 = sld [smem:[#allocation2 + $0xb0]]
        %v2160 = vstv %s2159
        %v2161 = vmul.f32 %v2160, %v2035
        %v2162 = vmul.f32 %v2160, %v2036
        %2165 = vrot.lane.b32.xlu0 %v2161, 126
        %v2166 = vpop.permute.xlu0 %2165
        %2167 = vrot.lane.b32.xlu0 %v2162, 126
        %v2168 = vpop.permute.xlu0 %2167
        %v2171 = vadd.f32 %v2115, %v2166
        %v2172 = vadd.f32 %v2116, %v2168
        %v2173 = vld [vmem:[%s1896 + $0x2] sm:$0xff]
        %v2174 = vld [vmem:[%s1896 + $0xa] sm:$0xf]
        %s2175 = sld [smem:[#allocation2 + $0x2a]]
        %v2176 = vstv %s2175
        %v2177 = vmul.f32 %v2176, %v2173
        %v2178 = vmul.f32 %v2176, %v2174
        %v2179 = vadd.f32 %v2129, %v2177
        %v2180 = vadd.f32 %v2130, %v2178
        %s2181 = sld [smem:[#allocation2 + $0x57]]
        %v2182 = vstv %s2181
        %v2183 = vmul.f32 %v2182, %v2173
        %v2184 = vmul.f32 %v2182, %v2174
        %v2185 = vadd.f32 %v2143, %v2183
        %v2186 = vadd.f32 %v2144, %v2184
        %s2187 = sld [smem:[#allocation2 + $0x84]]
        %v2188 = vstv %s2187
        %v2189 = vmul.f32 %v2188, %v2173
        %v2190 = vmul.f32 %v2188, %v2174
        %v2191 = vadd.f32 %v2157, %v2189
        %v2192 = vadd.f32 %v2158, %v2190
        %s2193 = sld [smem:[#allocation2 + $0xb1]]
        %v2194 = vstv %s2193
        %v2195 = vmul.f32 %v2194, %v2173
        %v2196 = vmul.f32 %v2194, %v2174
        %v2197 = vadd.f32 %v2171, %v2195
        %v2198 = vadd.f32 %v2172, %v2196
        %s2199 = sld [smem:[#allocation2 + $0x2b]]
        %v2200 = vstv %s2199
        %v2201 = vmul.f32 %v2200, %v2173
        %v2202 = vmul.f32 %v2200, %v2174
        %2205 = vrot.lane.b32.xlu0 %v2201, 127
        %v2206 = vpop.permute.xlu0 %2205
        %2207 = vrot.lane.b32.xlu0 %v2202, 127
        %v2208 = vpop.permute.xlu0 %2207
        %v2211 = vadd.f32 %v2179, %v2206
        %v2212 = vadd.f32 %v2180, %v2208
        %s2213 = sld [smem:[#allocation2 + $0x58]]
        %v2214 = vstv %s2213
        %v2215 = vmul.f32 %v2214, %v2173
        %v2216 = vmul.f32 %v2214, %v2174
        %2219 = vrot.lane.b32.xlu0 %v2215, 127
        %v2220 = vpop.permute.xlu0 %2219
        %2221 = vrot.lane.b32.xlu0 %v2216, 127
        %v2222 = vpop.permute.xlu0 %2221
        %v2225 = vadd.f32 %v2185, %v2220
        %v2226 = vadd.f32 %v2186, %v2222
        %s2227 = sld [smem:[#allocation2 + $0x85]]
        %v2228 = vstv %s2227
        %v2229 = vmul.f32 %v2228, %v2173
        %v2230 = vmul.f32 %v2228, %v2174
        %2233 = vrot.lane.b32.xlu0 %v2229, 127
        %v2234 = vpop.permute.xlu0 %2233
        %2235 = vrot.lane.b32.xlu0 %v2230, 127
        %v2236 = vpop.permute.xlu0 %2235
        %v2239 = vadd.f32 %v2191, %v2234
        %v2240 = vadd.f32 %v2192, %v2236
        %s2241 = sld [smem:[#allocation2 + $0xb2]]
        %v2242 = vstv %s2241
        %v2243 = vmul.f32 %v2242, %v2173
        %v2244 = vmul.f32 %v2242, %v2174
        %2247 = vrot.lane.b32.xlu0 %v2243, 127
        %v2248 = vpop.permute.xlu0 %2247
        %2249 = vrot.lane.b32.xlu0 %v2244, 127
        %v2250 = vpop.permute.xlu0 %2249
        %v2253 = vadd.f32 %v2197, %v2248
        %v2254 = vadd.f32 %v2198, %v2250
        %s2255 = sld [smem:[#allocation2 + $0x2c]]
        %v2256 = vstv %s2255
        %v2257 = vmul.f32 %v2256, %v2173
        %v2258 = vmul.f32 %v2256, %v2174
        %2261 = vrot.lane.b32.xlu0 %v2257, 126
        %v2262 = vpop.permute.xlu0 %2261
        %2263 = vrot.lane.b32.xlu0 %v2258, 126
        %v2264 = vpop.permute.xlu0 %2263
        %v2267 = vadd.f32 %v2211, %v2262
        %v2268 = vadd.f32 %v2212, %v2264
        %s2269 = sld [smem:[#allocation2 + $0x59]]
        %v2270 = vstv %s2269
        %v2271 = vmul.f32 %v2270, %v2173
        %v2272 = vmul.f32 %v2270, %v2174
        %2275 = vrot.lane.b32.xlu0 %v2271, 126
        %v2276 = vpop.permute.xlu0 %2275
        %2277 = vrot.lane.b32.xlu0 %v2272, 126
        %v2278 = vpop.permute.xlu0 %2277
        %v2281 = vadd.f32 %v2225, %v2276
        %v2282 = vadd.f32 %v2226, %v2278
        %s2283 = sld [smem:[#allocation2 + $0x86]]
        %v2284 = vstv %s2283
        %v2285 = vmul.f32 %v2284, %v2173
        %v2286 = vmul.f32 %v2284, %v2174
        %2289 = vrot.lane.b32.xlu0 %v2285, 126
        %v2290 = vpop.permute.xlu0 %2289
        %2291 = vrot.lane.b32.xlu0 %v2286, 126
        %v2292 = vpop.permute.xlu0 %2291
        %v2295 = vadd.f32 %v2239, %v2290
        %v2296 = vadd.f32 %v2240, %v2292
        %s2297 = sld [smem:[#allocation2 + $0xb3]]
        %v2298 = vstv %s2297
        %v2299 = vmul.f32 %v2298, %v2173
        %v2300 = vmul.f32 %v2298, %v2174
        %2303 = vrot.lane.b32.xlu0 %v2299, 126
        %v2304 = vpop.permute.xlu0 %2303
        %2305 = vrot.lane.b32.xlu0 %v2300, 126
        %v2306 = vpop.permute.xlu0 %2305
        %v2309 = vadd.f32 %v2253, %v2304
        %v2310 = vadd.f32 %v2254, %v2306
        %vm2311 = vcmask 97280
        %2312 = vst.msk [vmem:[%s236] sm:$0xff] %vm2311, %v2267
        %vm2313 = vcmask 93184
        %2314 = vst.msk [vmem:[%s236 + $0x8] sm:$0xf] %vm2313, %v2268
        %v2315 = vsel %vm2311, %v2267, 0.0
        %v2316 = vsel %vm2313, %v2268, 0.0
        %v2317 = vadd.f32 %v2315, %v2316
        %2318 = vadd.xlane.f32.xlu0 %v2317
        %v2319 = vpop.xlane.xlu0 %2318
        %v2320 = vrot.slane %v2319, 4
        %v2321 = vadd.f32 %v2319, %v2320
        %v2322 = vrot.slane %v2321, 2
        %v2323 = vadd.f32 %v2321, %v2322
        %v2324 = vrot.slane %v2323, 1
        %v2325 = vadd.f32 %v2323, %v2324
        %s2326 = vtos %v2325
        %s2327 = sadd.f32 %s2326, 0.0
        %v2328 = vmul.f32 %v2267, %v2267
        %v2329 = vmul.f32 %v2268, %v2268
        %v2330 = vsel %vm2311, %v2328, 0.0
        %v2331 = vsel %vm2313, %v2329, 0.0
        %v2332 = vadd.f32 %v2330, %v2331
        %2333 = vadd.xlane.f32.xlu0 %v2332
        %v2334 = vpop.xlane.xlu0 %2333
        %v2335 = vrot.slane %v2334, 4
        %v2336 = vadd.f32 %v2334, %v2335
        %v2337 = vrot.slane %v2336, 2
        %v2338 = vadd.f32 %v2336, %v2337
        %v2339 = vrot.slane %v2338, 1
        %v2340 = vadd.f32 %v2338, %v2339
        %s2341 = vtos %v2340
        %s2342 = sadd.f32 %s2341, 0.0
        %s2343 = scalar_lea.vmem %s236, 16
        %2344 = vst.msk [vmem:[%s2343] sm:$0xff] %vm2311, %v2281
        %2345 = vst.msk [vmem:[%s2343 + $0x8] sm:$0xf] %vm2313, %v2282
        %v2346 = vsel %vm2311, %v2281, 0.0
        %v2347 = vsel %vm2313, %v2282, 0.0
        %v2348 = vadd.f32 %v2346, %v2347
        %2349 = vadd.xlane.f32.xlu0 %v2348
        %v2350 = vpop.xlane.xlu0 %2349
        %v2351 = vrot.slane %v2350, 4
        %v2352 = vadd.f32 %v2350, %v2351
        %v2353 = vrot.slane %v2352, 2
        %v2354 = vadd.f32 %v2352, %v2353
        %v2355 = vrot.slane %v2354, 1
        %v2356 = vadd.f32 %v2354, %v2355
        %s2357 = vtos %v2356
        %s2358 = sadd.f32 %s2357, 0.0
        %v2359 = vmul.f32 %v2281, %v2281
        %v2360 = vmul.f32 %v2282, %v2282
        %v2361 = vsel %vm2311, %v2359, 0.0
        %v2362 = vsel %vm2313, %v2360, 0.0
        %v2363 = vadd.f32 %v2361, %v2362
        %2364 = vadd.xlane.f32.xlu0 %v2363
        %v2365 = vpop.xlane.xlu0 %2364
        %v2366 = vrot.slane %v2365, 4
        %v2367 = vadd.f32 %v2365, %v2366
        %v2368 = vrot.slane %v2367, 2
        %v2369 = vadd.f32 %v2367, %v2368
        %v2370 = vrot.slane %v2369, 1
        %v2371 = vadd.f32 %v2369, %v2370
        %s2372 = vtos %v2371
        %s2373 = sadd.f32 %s2372, 0.0
        %s2374 = scalar_lea.vmem %s236, 32
        %2375 = vst.msk [vmem:[%s2374] sm:$0xff] %vm2311, %v2295
        %2376 = vst.msk [vmem:[%s2374 + $0x8] sm:$0xf] %vm2313, %v2296
        %v2377 = vsel %vm2311, %v2295, 0.0
        %v2378 = vsel %vm2313, %v2296, 0.0
        %v2379 = vadd.f32 %v2377, %v2378
        %2380 = vadd.xlane.f32.xlu0 %v2379
        %v2381 = vpop.xlane.xlu0 %2380
        %v2382 = vrot.slane %v2381, 4
        %v2383 = vadd.f32 %v2381, %v2382
        %v2384 = vrot.slane %v2383, 2
        %v2385 = vadd.f32 %v2383, %v2384
        %v2386 = vrot.slane %v2385, 1
        %v2387 = vadd.f32 %v2385, %v2386
        %s2388 = vtos %v2387
        %s2389 = sadd.f32 %s2388, 0.0
        %v2390 = vmul.f32 %v2295, %v2295
        %v2391 = vmul.f32 %v2296, %v2296
        %v2392 = vsel %vm2311, %v2390, 0.0
        %v2393 = vsel %vm2313, %v2391, 0.0
        %v2394 = vadd.f32 %v2392, %v2393
        %2395 = vadd.xlane.f32.xlu0 %v2394
        %v2396 = vpop.xlane.xlu0 %2395
        %v2397 = vrot.slane %v2396, 4
        %v2398 = vadd.f32 %v2396, %v2397
        %v2399 = vrot.slane %v2398, 2
        %v2400 = vadd.f32 %v2398, %v2399
        %v2401 = vrot.slane %v2400, 1
        %v2402 = vadd.f32 %v2400, %v2401
        %s2403 = vtos %v2402
        %s2404 = sadd.f32 %s2403, 0.0
        %s2405 = scalar_lea.vmem %s236, 48
        %2406 = vst.msk [vmem:[%s2405] sm:$0xff] %vm2311, %v2309
        %2407 = vst.msk [vmem:[%s2405 + $0x8] sm:$0xf] %vm2313, %v2310
        %v2408 = vsel %vm2311, %v2309, 0.0
        %v2409 = vsel %vm2313, %v2310, 0.0
        %v2410 = vadd.f32 %v2408, %v2409
        %2411 = vadd.xlane.f32.xlu0 %v2410
        %v2412 = vpop.xlane.xlu0 %2411
        %v2413 = vrot.slane %v2412, 4
        %v2414 = vadd.f32 %v2412, %v2413
        %v2415 = vrot.slane %v2414, 2
        %v2416 = vadd.f32 %v2414, %v2415
        %v2417 = vrot.slane %v2416, 1
        %v2418 = vadd.f32 %v2416, %v2417
        %s2419 = vtos %v2418
        %s2420 = sadd.f32 %s2419, 0.0
        %v2421 = vmul.f32 %v2309, %v2309
        %v2422 = vmul.f32 %v2310, %v2310
        %v2423 = vsel %vm2311, %v2421, 0.0
        %v2424 = vsel %vm2313, %v2422, 0.0
        %v2425 = vadd.f32 %v2423, %v2424
        %2426 = vadd.xlane.f32.xlu0 %v2425
        %v2427 = vpop.xlane.xlu0 %2426
        %v2428 = vrot.slane %v2427, 4
        %v2429 = vadd.f32 %v2427, %v2428
        %v2430 = vrot.slane %v2429, 2
        %v2431 = vadd.f32 %v2429, %v2430
        %v2432 = vrot.slane %v2431, 1
        %v2433 = vadd.f32 %v2431, %v2432
        %s2434 = vtos %v2433
        %s2435 = sadd.f32 %s2434, 0.0
        %s2436 = smul.f32 %s2327, 0.0069444445
        %s2437 = smul.f32 %s2342, 0.0069444445
        %s2438 = smul.f32 %s2436, %s2436
        %s2439 = ssub.f32 %s2437, %s2438
        %s2440 = smax.f32 %s2439, 0.0
        %s2441 = sld [smem:[#allocation4]]
        %s2442 = sadd.f32 %s2440, 1e-05
        %v2443 = vstv %s2442
        %v2444 = vrsqrt.pop %v2443
        %v2445 = vmul.f32 %v2444, %v2443
        %v2446 = vmul.f32 %v2445, %v2444
        %v2447 = vmul.f32 0.5, %v2446
        %v2448 = vsub.f32 1.5, %v2447
        %v2449 = vmul.f32 %v2444, %v2448
        %vm2450 = vweird.f32 %v2443
        %vm2451 = vweird.f32 %v2444
        %vm2452 = vmor %vm2450, %vm2451
        %v2453 = vsel %vm2452, %v2444, %v2449
        %s2454 = vtos %v2453
        %s2455 = smul.f32 %s2441, %s2454
        %s2456 = sld [smem:[#allocation6]]
        %s2457 = smul.f32 %s2436, %s2455
        %s2458 = ssub.f32 %s2456, %s2457
        %v2459 = vld [vmem:[%s236] sm:$0xff]
        %v2460 = vld [vmem:[%s236 + $0x8] sm:$0xf]
        %v2461 = vstv %s2455
        %v2462 = vmul.f32 %v2459, %v2461
        %v2463 = vmul.f32 %v2460, %v2461
        %v2464 = vstv %s2458
        %v2465 = vadd.f32 %v2462, %v2464
        %v2466 = vadd.f32 %v2463, %v2464
        %v2467 = vmax.f32 %v2465, 0.0
        %v2468 = vmax.f32 %v2466, 0.0
        %2469 = vst.msk [vmem:[%s236] sm:$0xff] %vm2311, %v2467
        %2470 = vst.msk [vmem:[%s236 + $0x8] sm:$0xf] %vm2313, %v2468
        %s2471 = smul.f32 %s2358, 0.0069444445
        %s2472 = smul.f32 %s2373, 0.0069444445
        %s2473 = smul.f32 %s2471, %s2471
        %s2474 = ssub.f32 %s2472, %s2473
        %s2475 = smax.f32 %s2474, 0.0
        %s2476 = sld [smem:[#allocation4 + $0x1]]
        %s2477 = sadd.f32 %s2475, 1e-05
        %v2478 = vstv %s2477
        %v2479 = vrsqrt.pop %v2478
        %v2480 = vmul.f32 %v2479, %v2478
        %v2481 = vmul.f32 %v2480, %v2479
        %v2482 = vmul.f32 0.5, %v2481
        %v2483 = vsub.f32 1.5, %v2482
        %v2484 = vmul.f32 %v2479, %v2483
        %vm2485 = vweird.f32 %v2478
        %vm2486 = vweird.f32 %v2479
        %vm2487 = vmor %vm2485, %vm2486
        %v2488 = vsel %vm2487, %v2479, %v2484
        %s2489 = vtos %v2488
        %s2490 = smul.f32 %s2476, %s2489
        %s2491 = sld [smem:[#allocation6 + $0x1]]
        %s2492 = smul.f32 %s2471, %s2490
        %s2493 = ssub.f32 %s2491, %s2492
        %v2494 = vld [vmem:[%s2343] sm:$0xff]
        %v2495 = vld [vmem:[%s2343 + $0x8] sm:$0xf]
        %v2496 = vstv %s2490
        %v2497 = vmul.f32 %v2494, %v2496
        %v2498 = vmul.f32 %v2495, %v2496
        %v2499 = vstv %s2493
        %v2500 = vadd.f32 %v2497, %v2499
        %v2501 = vadd.f32 %v2498, %v2499
        %v2502 = vmax.f32 %v2500, 0.0
        %v2503 = vmax.f32 %v2501, 0.0
        %2504 = vst.msk [vmem:[%s2343] sm:$0xff] %vm2311, %v2502
        %2505 = vst.msk [vmem:[%s2343 + $0x8] sm:$0xf] %vm2313, %v2503
        %s2506 = smul.f32 %s2389, 0.0069444445
        %s2507 = smul.f32 %s2404, 0.0069444445
        %s2508 = smul.f32 %s2506, %s2506
        %s2509 = ssub.f32 %s2507, %s2508
        %s2510 = smax.f32 %s2509, 0.0
        %s2511 = sld [smem:[#allocation4 + $0x2]]
        %s2512 = sadd.f32 %s2510, 1e-05
        %v2513 = vstv %s2512
        %v2514 = vrsqrt.pop %v2513
        %v2515 = vmul.f32 %v2514, %v2513
        %v2516 = vmul.f32 %v2515, %v2514
        %v2517 = vmul.f32 0.5, %v2516
        %v2518 = vsub.f32 1.5, %v2517
        %v2519 = vmul.f32 %v2514, %v2518
        %vm2520 = vweird.f32 %v2513
        %vm2521 = vweird.f32 %v2514
        %vm2522 = vmor %vm2520, %vm2521
        %v2523 = vsel %vm2522, %v2514, %v2519
        %s2524 = vtos %v2523
        %s2525 = smul.f32 %s2511, %s2524
        %s2526 = sld [smem:[#allocation6 + $0x2]]
        %s2527 = smul.f32 %s2506, %s2525
        %s2528 = ssub.f32 %s2526, %s2527
        %v2529 = vld [vmem:[%s2374] sm:$0xff]
        %v2530 = vld [vmem:[%s2374 + $0x8] sm:$0xf]
        %v2531 = vstv %s2525
        %v2532 = vmul.f32 %v2529, %v2531
        %v2533 = vmul.f32 %v2530, %v2531
        %v2534 = vstv %s2528
        %v2535 = vadd.f32 %v2532, %v2534
        %v2536 = vadd.f32 %v2533, %v2534
        %v2537 = vmax.f32 %v2535, 0.0
        %v2538 = vmax.f32 %v2536, 0.0
        %2539 = vst.msk [vmem:[%s2374] sm:$0xff] %vm2311, %v2537
        %2540 = vst.msk [vmem:[%s2374 + $0x8] sm:$0xf] %vm2313, %v2538
        %s2541 = smul.f32 %s2420, 0.0069444445
        %s2542 = smul.f32 %s2435, 0.0069444445
        %s2543 = smul.f32 %s2541, %s2541
        %s2544 = ssub.f32 %s2542, %s2543
        %s2545 = smax.f32 %s2544, 0.0
        %s2546 = sld [smem:[#allocation4 + $0x3]]
        %s2547 = sadd.f32 %s2545, 1e-05
        %v2548 = vstv %s2547
        %v2549 = vrsqrt.pop %v2548
        %v2550 = vmul.f32 %v2549, %v2548
        %v2551 = vmul.f32 %v2550, %v2549
        %v2552 = vmul.f32 0.5, %v2551
        %v2553 = vsub.f32 1.5, %v2552
        %v2554 = vmul.f32 %v2549, %v2553
        %vm2555 = vweird.f32 %v2548
        %vm2556 = vweird.f32 %v2549
        %vm2557 = vmor %vm2555, %vm2556
        %v2558 = vsel %vm2557, %v2549, %v2554
        %s2559 = vtos %v2558
        %s2560 = smul.f32 %s2546, %s2559
        %s2561 = sld [smem:[#allocation6 + $0x3]]
        %s2562 = smul.f32 %s2541, %s2560
        %s2563 = ssub.f32 %s2561, %s2562
        %v2564 = vld [vmem:[%s2405] sm:$0xff]
        %v2565 = vld [vmem:[%s2405 + $0x8] sm:$0xf]
        %v2566 = vstv %s2560
        %v2567 = vmul.f32 %v2564, %v2566
        %v2568 = vmul.f32 %v2565, %v2566
        %v2569 = vstv %s2563
        %v2570 = vadd.f32 %v2567, %v2569
        %v2571 = vadd.f32 %v2568, %v2569
        %v2572 = vmax.f32 %v2570, 0.0
        %v2573 = vmax.f32 %v2571, 0.0
        %2574 = vst.msk [vmem:[%s2405] sm:$0xff] %vm2311, %v2572
        %2575 = vst.msk [vmem:[%s2405 + $0x8] sm:$0xf] %vm2313, %v2573
        %p2576 = scmp.lt.s32.totalorder %s17, 1
        %s2577 = scalar_select %p2576, %s17, 1
        %s2578 = smul.addr %s2577, 8
        %s2579 = smul.addr %s2578, 8
        %s2580 = scalar_lea.vmem %s4, %s2579
        // Predicated region
        $region49: #{tpu_custom_call.1} parent=35 // pred_check
          %p2581 = pneg %p124
        $region50: #{tpu_custom_call.1} parent=35 // pred_check_branch
          %2583 = sbr.rel (%p2581) target = $region52
        $region51: #{tpu_custom_call.1} parent=35 // pred_region
          _
        $region52: #{tpu_custom_call.1} parent=35 // pred_fallthru
          _
      $region36: #{tpu_custom_call.1} parent=5 // pred_fallthru
        _
      %p2584 = scmp.le.s32.totalorder 2, %s12
      // Predicated region
      $region53: #{tpu_custom_call.1} parent=5 // pred_check
        %p2585 = pneg %p2584
      $region54: #{tpu_custom_call.1} parent=5 // pred_check_branch
        %2587 = sbr.rel (%p2585) target = $region56
      $region55: #{tpu_custom_call.1} parent=5 // pred_region
        %s2588 = ssub.s32 %s12, 2
        // Predicated region
        $region57: #{tpu_custom_call.1} parent=55 // pred_check
          %p2589 = pneg %p130
        $region58: #{tpu_custom_call.1} parent=55 // pred_check_branch
          %2591 = sbr.rel (%p2589) target = $region60
        $region59: #{tpu_custom_call.1} parent=55 // pred_region
          %p2592 = scmp.lt.s32.totalorder %s18, 1
          %s2593 = scalar_select %p2592, %s18, 1
          %s2594 = smul.addr %s2593, 8
          %s2595 = smul.addr %s2594, 8
          %s2596 = scalar_lea.vmem %s4, %s2595
        $region60: #{tpu_custom_call.1} parent=55 // pred_fallthru
          _
      $region56: #{tpu_custom_call.1} parent=5 // pred_fallthru
        _
    $region6: #{tpu_custom_call.1} parent=1 // loop_footer
      %s16 = sadd.s32 1, %s12
    $region7: #{tpu_custom_call.1} parent=1 // loop_footer_branch
      %11 = sbr.rel target = $region3
    $region8: #{tpu_custom_call.1} parent=1 // loop_exit
      _
    %2597 = vsyncpa [#allocation3], 1
    %s2598 = scalar_lea.sflag [#allocation3], 1
    %2599 = vsyncpa %s2598, 1
    %2600 = vsyncpa [#allocation5], 1

</llo_original>
